<compile_context>
chip_gen: v7x
topology: tpu7x:2x2x1
jax: 0.10.0
libtpu: 0.0.40
codegen_flags: <defaults>
</compile_context>

<pallas_src>
import jax
import jax.numpy as jnp
import numpy as np
from jax.experimental import pallas as pl

# ----------------------------- config (small, deterministic) -----------------------------
B = 2                       # batch_size (num_graphs)
N_NODES = 8                 # cfg.N_stations
N_HISTORY = 8               # cfg.N_history (sequence length)
N_FEAT = 2                  # features per node per time step
IN_FEAT = N_HISTORY * N_FEAT        # cfg.in_features_per_node = 16
GAT_HEADS = 2
NUM_GAT_LAYERS = 2
D_IN = N_NODES * N_FEAT + 4         # cfg.N_in_features_per_step_with_global (with time feats)
LSTM1_H = 32
LSTM2_H = 32
OUT_FEAT = 2                        # cfg.out_features_per_node
NEG_SLOPE = 0.2                     # GATConv LeakyReLU default
NEG_INF = -1e30


# ----------------------------- fused STGAT kernel -----------------------------
def _make_stgat_kernel(num_gat_layers):
    BN = B * N_NODES
    F = IN_FEAT
    H = GAT_HEADS
    T = N_HISTORY
    f = N_FEAT
    Nn = N_NODES
    H1 = LSTM1_H
    H2 = LSTM2_H

    def kernel(x_ref, adjb_ref, tf_ref, *refs):
        gat_refs = refs[:4 * num_gat_layers]
        (sel_ref, wnj_ref, wtime_ref, b1_ref, whh1_ref,
         wih2_ref, whh2_ref, b2_ref, wlin_ref, blin_ref, out_ref) = refs[4 * num_gat_layers:]

        # ---------------- stacked GAT layers, whole batch at once ----------------
        x = x_ref[...]                       # (B*N, F) float32
        adj_bias = adjb_ref[...]             # (B*N, B*N): 0 on (block-diag) edges, -1e30 else
        inv_h = jnp.float32(1.0 / H)
        for l in range(num_gat_layers):
            w_ref, asrcb_ref, adst_ref, gb_ref = gat_refs[4 * l: 4 * l + 4]
            W = w_ref[...]                   # (F, H*F)
            asrc_blk = asrcb_ref[...]        # (H, H*F) block-expanded att_src
            a_dst = adst_ref[...]            # (H, F)
            g_bias = gb_ref[...]             # (1, F)

            xh_all = jnp.dot(x, W, preferred_element_type=jnp.float32)        # (BN, H*F)
            # per-source logits for all heads in ONE small matmul: (H, BN)
            src_rows = jax.lax.dot_general(
                asrc_blk, xh_all, (((1,), (1,)), ((), ())),
                preferred_element_type=jnp.float32)

            acc = jnp.zeros((BN, F), jnp.float32)
            for h in range(H):
                xh = xh_all[:, h * F:(h + 1) * F]                              # (BN, F)
                # per-destination logit: VPU multiply + lane reduce (no tiny MXU dot)
                dst_col = jnp.sum(xh * a_dst[h:h + 1, :], axis=-1, keepdims=True)  # (BN, 1)
                s = dst_col + src_rows[h:h + 1, :]                             # (BN, BN)
                s = jnp.where(s > 0, s, NEG_SLOPE * s)                         # leaky relu
                s = s + adj_bias                                               # additive mask
                p = jnp.exp(s - jnp.max(s, axis=-1, keepdims=True))
                attn = p * pl.reciprocal(jnp.sum(p, axis=-1, keepdims=True), approx=True)
                acc = acc + jnp.dot(attn, xh, preferred_element_type=jnp.float32)
            x = acc * inv_h + g_bias         # concat=False -> mean over heads + bias
        # TODO(synk): nn.Dropout is identity in eval mode; stochastic training dropout skipped.

        # ------- hoisted LSTM1 input projection (reshuffle folded into weights) -------
        # x_seq[t, b, n*f+j] = x[b*N+n, t*f+j]; the (B,N,T,f)->(T,B,N*f) permutation is
        # absorbed into host-prepacked `sel` / `wnj`, so no in-kernel relayout is needed and
        # all T per-step input matmuls move off the serial recurrence chain.
        sel = sel_ref[...]                   # (f, T, T*f) one-hot column selectors
        wnj = wnj_ref[...]                   # (f, N, 4*H1) permuted wih1 node rows
        wtime = wtime_ref[...]               # (4, 4*H1)
        g1x = []                             # per batch element: (T, 4*H1), lane-dense (128)
        for b in range(B):
            xg_b = x[b * Nn:(b + 1) * Nn, :]                                   # (N, T*f)
            acc_b = jnp.dot(tf_ref[b], wtime, preferred_element_type=jnp.float32)   # (T, 4H1)
            for j in range(f):
                # A_T[t, n] = xg_b[n, t*f+j]
                A_T = jax.lax.dot_general(sel[j], xg_b, (((1,), (1,)), ((), ())),
                                          preferred_element_type=jnp.float32)       # (T, N)
                acc_b = acc_b + jnp.dot(A_T, wnj[j], preferred_element_type=jnp.float32)
            g1x.append(acc_b)

        # ---------------- LSTM1 -> LSTM2 recurrence (gate order i,f,g,o) ----------------
        whh1 = whh1_ref[...]; b1 = b1_ref[...]
        wih2 = wih2_ref[...]; whh2 = whh2_ref[...]; b2 = b2_ref[...]

        def gates(g, Hd):
            # one sigmoid + one tanh pass over the full 4*Hd lane row, then static slices
            sg = jax.nn.sigmoid(g)
            th = jnp.tanh(g)
            return (sg[:, 0:Hd], sg[:, Hd:2 * Hd], th[:, 2 * Hd:3 * Hd], sg[:, 3 * Hd:4 * Hd])

        h1 = jnp.zeros((B, H1), jnp.float32); c1 = jnp.zeros((B, H1), jnp.float32)
        h2 = jnp.zeros((B, H2), jnp.float32); c2 = jnp.zeros((B, H2), jnp.float32)
        for t in range(T):                   # short static sequence -> unrolled
            x1 = jnp.concatenate([g1x[b][t:t + 1, :] for b in range(B)], axis=0)     # (B, 4H1)
            g1 = x1 + jnp.dot(h1, whh1, preferred_element_type=jnp.float32) + b1
            i1, f1, gg1, o1 = gates(g1, H1)
            c1 = f1 * c1 + i1 * gg1
            h1 = o1 * jnp.tanh(c1)

            g2 = (jnp.dot(h1, wih2, preferred_element_type=jnp.float32)
                  + jnp.dot(h2, whh2, preferred_element_type=jnp.float32) + b2)
            i2, f2, gg2, o2 = gates(g2, H2)
            c2 = f2 * c2 + i2 * gg2
            h2 = o2 * jnp.tanh(c2)

        out_ref[...] = (jnp.dot(h2, wlin_ref[...], preferred_element_type=jnp.float32)
                        + blin_ref[...])

    return kernel


# ----------------------------- host-side packing + wrapper -----------------------------
def pack_operands(x_nodes, adj, time_features, params):
    """One-time host packing: block-diagonal attention mask + permuted LSTM1 input weights."""
    f32 = jnp.float32
    x = x_nodes.reshape(B * N_NODES, IN_FEAT).astype(f32)

    # block-diagonal additive attention bias over the batched graphs (0 on edges, -1e30 else)
    adj_full = jnp.kron(jnp.eye(B, dtype=f32), adj.astype(f32))
    adj_bias = jnp.where(adj_full > 0, 0.0, NEG_INF).astype(f32)

    gat_ops = []
    for (W, a_src, a_dst, bias) in params["gat"]:
        asrc_blk = jnp.zeros((GAT_HEADS, GAT_HEADS * IN_FEAT), f32)
        for h in range(GAT_HEADS):
            asrc_blk = asrc_blk.at[h, h * IN_FEAT:(h + 1) * IN_FEAT].set(a_src[h])
        gat_ops += [W.astype(f32), asrc_blk, a_dst.astype(f32), bias.astype(f32)]

    # one-hot selectors: sel[j, t, t*f+j] = 1  ->  A_T[t, n] = xg_b[n, t*f+j]
    sel = np.zeros((N_FEAT, N_HISTORY, N_HISTORY * N_FEAT), np.float32)
    for j in range(N_FEAT):
        for t in range(N_HISTORY):
            sel[j, t, t * N_FEAT + j] = 1.0
    sel = jnp.asarray(sel)

    # permuted node rows of wih1: wnj[j, n, :] = wih1[n*f+j, :]
    wih1 = params["wih1"].astype(f32)
    wnj = jnp.transpose(wih1[:N_NODES * N_FEAT].reshape(N_NODES, N_FEAT, 4 * LSTM1_H), (1, 0, 2))
    wtime = wih1[N_NODES * N_FEAT:]          # (4, 4*H1) rows for the global time features

    ops = [x, adj_bias, time_features.astype(f32)] + gat_ops + [
        sel, wnj, wtime,
        params["b1"].astype(f32), params["whh1"].astype(f32),
        params["wih2"].astype(f32), params["whh2"].astype(f32), params["b2"].astype(f32),
        params["wlin"].astype(f32), params["blin"].astype(f32)]
    return ops


def stgat_forward(x_nodes, adj, time_features, params):
    """x_nodes: (B*N, IN_FEAT), adj: (N, N), time_features: (B, T, 4) -> (B*N, OUT_FEAT)."""
    ops = pack_operands(x_nodes, adj, time_features, params)
    kernel = _make_stgat_kernel(NUM_GAT_LAYERS)
    out = pl.pallas_call(
        kernel,
        out_shape=jax.ShapeDtypeStruct((B, N_NODES * OUT_FEAT), jnp.float32),
        cost_estimate=pl.CostEstimate(flops=400_000, transcendentals=8_000,
                                      bytes_accessed=200_000),
    )(*ops)
    return out.reshape(B * N_NODES, OUT_FEAT)


# ----------------------------- deterministic parameter / input construction -----------------------------
def xavier_uniform(key, shape, fan_in, fan_out):
    a = jnp.sqrt(6.0 / (fan_in + fan_out))
    return jax.random.uniform(key, shape, jnp.float32, -a, a)


def make_params(key):
    params = {"gat": []}
    for _ in range(NUM_GAT_LAYERS):
        key, k1, k2, k3 = jax.random.split(key, 4)
        W = xavier_uniform(k1, (IN_FEAT, GAT_HEADS * IN_FEAT), IN_FEAT, GAT_HEADS * IN_FEAT)
        a_src = xavier_uniform(k2, (GAT_HEADS, IN_FEAT), IN_FEAT, 1)
        a_dst = xavier_uniform(k3, (GAT_HEADS, IN_FEAT), IN_FEAT, 1)
        bias = jnp.zeros((1, IN_FEAT), jnp.float32)
        params["gat"].append((W, a_src, a_dst, bias))

    key, k1, k2, k3, k4, k5, k6 = jax.random.split(key, 7)
    # LSTM weights stored transposed relative to PyTorch: (in, 4*hidden)
    params["wih1"] = xavier_uniform(k1, (D_IN, 4 * LSTM1_H), D_IN, 4 * LSTM1_H)
    params["whh1"] = xavier_uniform(k2, (LSTM1_H, 4 * LSTM1_H), LSTM1_H, 4 * LSTM1_H)
    params["b1"] = jnp.zeros((1, 4 * LSTM1_H), jnp.float32)     # b_ih + b_hh, init to 0
    params["wih2"] = xavier_uniform(k3, (LSTM1_H, 4 * LSTM2_H), LSTM1_H, 4 * LSTM2_H)
    params["whh2"] = xavier_uniform(k4, (LSTM2_H, 4 * LSTM2_H), LSTM2_H, 4 * LSTM2_H)
    params["b2"] = jnp.zeros((1, 4 * LSTM2_H), jnp.float32)
    params["wlin"] = xavier_uniform(k5, (LSTM2_H, N_NODES * OUT_FEAT), LSTM2_H, N_NODES * OUT_FEAT)
    lim = 1.0 / jnp.sqrt(jnp.float32(LSTM2_H))
    params["blin"] = jax.random.uniform(k6, (1, N_NODES * OUT_FEAT), jnp.float32, -lim, lim)
    return params


def make_adjacency(edge_index, n_nodes):
    """Dense adjacency: adj[dst, src] = 1, plus self loops (GATConv add_self_loops=True)."""
    src, dst = edge_index[0], edge_index[1]
    adj = jnp.zeros((n_nodes, n_nodes), jnp.float32).at[dst, src].set(1.0)
    return jnp.maximum(adj, jnp.eye(n_nodes, dtype=jnp.float32))


if __name__ == "__main__":
    key = jax.random.PRNGKey(0)
    kp, kx, kt = jax.random.split(key, 3)

    params = make_params(kp)

    # batch.x for a PyG batch of B identical ring graphs with N_NODES nodes each
    x_nodes = jax.random.normal(kx, (B * N_NODES, IN_FEAT), jnp.float32)
    time_features = jax.random.normal(kt, (B, N_HISTORY, 4), jnp.float32)

    # ring graph edge_index (same structure per graph in the batch)
    src = jnp.arange(N_NODES, dtype=jnp.int32)
    dst = (src + 1) % N_NODES
    edge_index = jnp.stack([jnp.concatenate([src, dst]), jnp.concatenate([dst, src])])
    adj = make_adjacency(edge_index, N_NODES)

    out = stgat_forward(x_nodes, adj, time_features, params)
    out = jax.block_until_ready(out)
    assert out.shape == (B * N_NODES, OUT_FEAT)
    print("KERNEL_OK")
</pallas_src>

<mosaic_0001>
module attributes {stable_mosaic.version = 11 : i64} {
  func.func @kernel(%arg0: memref<16x16xf32, #tpu.memory_space<vmem>>, %arg1: memref<16x16xf32, #tpu.memory_space<vmem>>, %arg2: memref<2x8x4xf32, #tpu.memory_space<vmem>>, %arg3: memref<16x32xf32, #tpu.memory_space<vmem>>, %arg4: memref<2x32xf32, #tpu.memory_space<vmem>>, %arg5: memref<2x16xf32, #tpu.memory_space<vmem>>, %arg6: memref<1x16xf32, #tpu.memory_space<vmem>>, %arg7: memref<16x32xf32, #tpu.memory_space<vmem>>, %arg8: memref<2x32xf32, #tpu.memory_space<vmem>>, %arg9: memref<2x16xf32, #tpu.memory_space<vmem>>, %arg10: memref<1x16xf32, #tpu.memory_space<vmem>>, %arg11: memref<2x8x16xf32, #tpu.memory_space<vmem>>, %arg12: memref<2x8x128xf32, #tpu.memory_space<vmem>>, %arg13: memref<4x128xf32, #tpu.memory_space<vmem>>, %arg14: memref<1x128xf32, #tpu.memory_space<vmem>>, %arg15: memref<32x128xf32, #tpu.memory_space<vmem>>, %arg16: memref<32x128xf32, #tpu.memory_space<vmem>>, %arg17: memref<32x128xf32, #tpu.memory_space<vmem>>, %arg18: memref<1x128xf32, #tpu.memory_space<vmem>>, %arg19: memref<32x16xf32, #tpu.memory_space<vmem>>, %arg20: memref<1x16xf32, #tpu.memory_space<vmem>>, %arg21: memref<2x16xf32, #tpu.memory_space<vmem>>) attributes {dimension_semantics = [], scalar_prefetch = 0 : i64, scratch_operands = 0 : i64, tpu.core_type = #tpu.core_type<tc>} {
    %c0 = arith.constant 0 : index
    %c0_0 = arith.constant 0 : index
    %0 = vector.load %arg0[%c0, %c0_0] : memref<16x16xf32, #tpu.memory_space<vmem>>, vector<16x16xf32>
    %c0_1 = arith.constant 0 : index
    %c0_2 = arith.constant 0 : index
    %1 = vector.load %arg1[%c0_1, %c0_2] : memref<16x16xf32, #tpu.memory_space<vmem>>, vector<16x16xf32>
    %c0_3 = arith.constant 0 : index
    %c0_4 = arith.constant 0 : index
    %2 = vector.load %arg3[%c0_3, %c0_4] : memref<16x32xf32, #tpu.memory_space<vmem>>, vector<16x32xf32>
    %c0_5 = arith.constant 0 : index
    %c0_6 = arith.constant 0 : index
    %3 = vector.load %arg4[%c0_5, %c0_6] : memref<2x32xf32, #tpu.memory_space<vmem>>, vector<2x32xf32>
    %c0_7 = arith.constant 0 : index
    %c0_8 = arith.constant 0 : index
    %4 = vector.load %arg5[%c0_7, %c0_8] : memref<2x16xf32, #tpu.memory_space<vmem>>, vector<2x16xf32>
    %c0_9 = arith.constant 0 : index
    %c0_10 = arith.constant 0 : index
    %5 = vector.load %arg6[%c0_9, %c0_10] : memref<1x16xf32, #tpu.memory_space<vmem>>, vector<1x16xf32>
    %cst = arith.constant dense<0.000000e+00> : vector<16x32xf32>
    %6 = tpu.matmul %0, %2, %cst {dimension_numbers = #tpu.dot_dimension_numbers<[1], [0], [0], [1], [0, 0, 1, 1], [], []>} : vector<16x16xf32>, vector<16x32xf32>, vector<16x32xf32> -> vector<16x32xf32>
    %cst_11 = arith.constant dense<0.000000e+00> : vector<2x16xf32>
    %7 = tpu.matmul %3, %6, %cst_11 {dimension_numbers = #tpu.dot_dimension_numbers<[1], [1], [0], [0], [0, 0, 1, 0], [], []>} : vector<2x32xf32>, vector<16x32xf32>, vector<2x16xf32> -> vector<2x16xf32>
    %cst_12 = arith.constant 0.000000e+00 : f32
    %8 = vector.broadcast %cst_12 : f32 to vector<16x16xf32>
    %9 = vector.extract_strided_slice %6 {offsets = [0, 0], sizes = [16, 16], strides = [1, 1]} : vector<16x32xf32> to vector<16x16xf32>
    %10 = vector.extract_strided_slice %4 {offsets = [0, 0], sizes = [1, 16], strides = [1, 1]} : vector<2x16xf32> to vector<1x16xf32>
    %11 = vector.broadcast %10 : vector<1x16xf32> to vector<16x16xf32>
    %12 = arith.mulf %9, %11 : vector<16x16xf32>
    %cst_13 = arith.constant dense<0.000000e+00> : vector<16xf32>
    %13 = vector.multi_reduction <add>, %12, %cst_13 [1] : vector<16x16xf32> to vector<16xf32>
    %14 = vector.shape_cast %13 : vector<16xf32> to vector<16x1xf32>
    %15 = vector.extract_strided_slice %7 {offsets = [0, 0], sizes = [1, 16], strides = [1, 1]} : vector<2x16xf32> to vector<1x16xf32>
    %16 = vector.broadcast %14 : vector<16x1xf32> to vector<16x16xf32>
    %17 = vector.broadcast %15 : vector<1x16xf32> to vector<16x16xf32>
    %18 = arith.addf %16, %17 : vector<16x16xf32>
    %cst_14 = arith.constant 0.000000e+00 : f32
    %19 = vector.broadcast %cst_14 : f32 to vector<16x16xf32>
    %20 = arith.cmpf ogt, %18, %19 : vector<16x16xf32>
    %cst_15 = arith.constant 2.000000e-01 : f32
    %21 = vector.broadcast %cst_15 : f32 to vector<16x16xf32>
    %22 = arith.mulf %21, %18 : vector<16x16xf32>
    %23 = arith.select %20, %18, %22 : vector<16x16xi1>, vector<16x16xf32>
    %24 = arith.addf %23, %1 : vector<16x16xf32>
    %cst_16 = arith.constant dense<0xFF800000> : vector<16xf32>
    %25 = vector.multi_reduction <maximumf>, %24, %cst_16 [1] : vector<16x16xf32> to vector<16xf32>
    %26 = vector.shape_cast %25 : vector<16xf32> to vector<16x1xf32>
    %27 = vector.broadcast %26 : vector<16x1xf32> to vector<16x16xf32>
    %28 = arith.subf %24, %27 : vector<16x16xf32>
    %29 = math.exp %28 : vector<16x16xf32>
    %cst_17 = arith.constant dense<0.000000e+00> : vector<16xf32>
    %30 = vector.multi_reduction <add>, %29, %cst_17 [1] : vector<16x16xf32> to vector<16xf32>
    %31 = vector.shape_cast %30 : vector<16xf32> to vector<16x1xf32>
    %32 = tpu.reciprocal %31 {approx = true} : vector<16x1xf32> -> vector<16x1xf32>
    %33 = vector.broadcast %32 : vector<16x1xf32> to vector<16x16xf32>
    %34 = arith.mulf %29, %33 : vector<16x16xf32>
    %cst_18 = arith.constant dense<0.000000e+00> : vector<16x16xf32>
    %35 = tpu.matmul %34, %9, %cst_18 {dimension_numbers = #tpu.dot_dimension_numbers<[1], [0], [0], [1], [0, 0, 1, 1], [], []>} : vector<16x16xf32>, vector<16x16xf32>, vector<16x16xf32> -> vector<16x16xf32>
    %36 = arith.addf %8, %35 : vector<16x16xf32>
    %37 = vector.extract_strided_slice %6 {offsets = [0, 16], sizes = [16, 16], strides = [1, 1]} : vector<16x32xf32> to vector<16x16xf32>
    %38 = vector.extract_strided_slice %4 {offsets = [1, 0], sizes = [1, 16], strides = [1, 1]} : vector<2x16xf32> to vector<1x16xf32>
    %39 = vector.broadcast %38 : vector<1x16xf32> to vector<16x16xf32>
    %40 = arith.mulf %37, %39 : vector<16x16xf32>
    %cst_19 = arith.constant dense<0.000000e+00> : vector<16xf32>
    %41 = vector.multi_reduction <add>, %40, %cst_19 [1] : vector<16x16xf32> to vector<16xf32>
    %42 = vector.shape_cast %41 : vector<16xf32> to vector<16x1xf32>
    %43 = vector.extract_strided_slice %7 {offsets = [1, 0], sizes = [1, 16], strides = [1, 1]} : vector<2x16xf32> to vector<1x16xf32>
    %44 = vector.broadcast %42 : vector<16x1xf32> to vector<16x16xf32>
    %45 = vector.broadcast %43 : vector<1x16xf32> to vector<16x16xf32>
    %46 = arith.addf %44, %45 : vector<16x16xf32>
    %cst_20 = arith.constant 0.000000e+00 : f32
    %47 = vector.broadcast %cst_20 : f32 to vector<16x16xf32>
    %48 = arith.cmpf ogt, %46, %47 : vector<16x16xf32>
    %cst_21 = arith.constant 2.000000e-01 : f32
    %49 = vector.broadcast %cst_21 : f32 to vector<16x16xf32>
    %50 = arith.mulf %49, %46 : vector<16x16xf32>
    %51 = arith.select %48, %46, %50 : vector<16x16xi1>, vector<16x16xf32>
    %52 = arith.addf %51, %1 : vector<16x16xf32>
    %cst_22 = arith.constant dense<0xFF800000> : vector<16xf32>
    %53 = vector.multi_reduction <maximumf>, %52, %cst_22 [1] : vector<16x16xf32> to vector<16xf32>
    %54 = vector.shape_cast %53 : vector<16xf32> to vector<16x1xf32>
    %55 = vector.broadcast %54 : vector<16x1xf32> to vector<16x16xf32>
    %56 = arith.subf %52, %55 : vector<16x16xf32>
    %57 = math.exp %56 : vector<16x16xf32>
    %cst_23 = arith.constant dense<0.000000e+00> : vector<16xf32>
    %58 = vector.multi_reduction <add>, %57, %cst_23 [1] : vector<16x16xf32> to vector<16xf32>
    %59 = vector.shape_cast %58 : vector<16xf32> to vector<16x1xf32>
    %60 = tpu.reciprocal %59 {approx = true} : vector<16x1xf32> -> vector<16x1xf32>
    %61 = vector.broadcast %60 : vector<16x1xf32> to vector<16x16xf32>
    %62 = arith.mulf %57, %61 : vector<16x16xf32>
    %cst_24 = arith.constant dense<0.000000e+00> : vector<16x16xf32>
    %63 = tpu.matmul %62, %37, %cst_24 {dimension_numbers = #tpu.dot_dimension_numbers<[1], [0], [0], [1], [0, 0, 1, 1], [], []>} : vector<16x16xf32>, vector<16x16xf32>, vector<16x16xf32> -> vector<16x16xf32>
    %64 = arith.addf %36, %63 : vector<16x16xf32>
    %cst_25 = arith.constant 5.000000e-01 : f32
    %65 = vector.broadcast %cst_25 : f32 to vector<16x16xf32>
    %66 = arith.mulf %64, %65 : vector<16x16xf32>
    %67 = vector.broadcast %5 : vector<1x16xf32> to vector<16x16xf32>
    %68 = arith.addf %66, %67 : vector<16x16xf32>
    %c0_26 = arith.constant 0 : index
    %c0_27 = arith.constant 0 : index
    %69 = vector.load %arg7[%c0_26, %c0_27] : memref<16x32xf32, #tpu.memory_space<vmem>>, vector<16x32xf32>
    %c0_28 = arith.constant 0 : index
    %c0_29 = arith.constant 0 : index
    %70 = vector.load %arg8[%c0_28, %c0_29] : memref<2x32xf32, #tpu.memory_space<vmem>>, vector<2x32xf32>
    %c0_30 = arith.constant 0 : index
    %c0_31 = arith.constant 0 : index
    %71 = vector.load %arg9[%c0_30, %c0_31] : memref<2x16xf32, #tpu.memory_space<vmem>>, vector<2x16xf32>
    %c0_32 = arith.constant 0 : index
    %c0_33 = arith.constant 0 : index
    %72 = vector.load %arg10[%c0_32, %c0_33] : memref<1x16xf32, #tpu.memory_space<vmem>>, vector<1x16xf32>
    %cst_34 = arith.constant dense<0.000000e+00> : vector<16x32xf32>
    %73 = tpu.matmul %68, %69, %cst_34 {dimension_numbers = #tpu.dot_dimension_numbers<[1], [0], [0], [1], [0, 0, 1, 1], [], []>} : vector<16x16xf32>, vector<16x32xf32>, vector<16x32xf32> -> vector<16x32xf32>
    %cst_35 = arith.constant dense<0.000000e+00> : vector<2x16xf32>
    %74 = tpu.matmul %70, %73, %cst_35 {dimension_numbers = #tpu.dot_dimension_numbers<[1], [1], [0], [0], [0, 0, 1, 0], [], []>} : vector<2x32xf32>, vector<16x32xf32>, vector<2x16xf32> -> vector<2x16xf32>
    %cst_36 = arith.constant 0.000000e+00 : f32
    %75 = vector.broadcast %cst_36 : f32 to vector<16x16xf32>
    %76 = vector.extract_strided_slice %73 {offsets = [0, 0], sizes = [16, 16], strides = [1, 1]} : vector<16x32xf32> to vector<16x16xf32>
    %77 = vector.extract_strided_slice %71 {offsets = [0, 0], sizes = [1, 16], strides = [1, 1]} : vector<2x16xf32> to vector<1x16xf32>
    %78 = vector.broadcast %77 : vector<1x16xf32> to vector<16x16xf32>
    %79 = arith.mulf %76, %78 : vector<16x16xf32>
    %cst_37 = arith.constant dense<0.000000e+00> : vector<16xf32>
    %80 = vector.multi_reduction <add>, %79, %cst_37 [1] : vector<16x16xf32> to vector<16xf32>
    %81 = vector.shape_cast %80 : vector<16xf32> to vector<16x1xf32>
    %82 = vector.extract_strided_slice %74 {offsets = [0, 0], sizes = [1, 16], strides = [1, 1]} : vector<2x16xf32> to vector<1x16xf32>
    %83 = vector.broadcast %81 : vector<16x1xf32> to vector<16x16xf32>
    %84 = vector.broadcast %82 : vector<1x16xf32> to vector<16x16xf32>
    %85 = arith.addf %83, %84 : vector<16x16xf32>
    %cst_38 = arith.constant 0.000000e+00 : f32
    %86 = vector.broadcast %cst_38 : f32 to vector<16x16xf32>
    %87 = arith.cmpf ogt, %85, %86 : vector<16x16xf32>
    %cst_39 = arith.constant 2.000000e-01 : f32
    %88 = vector.broadcast %cst_39 : f32 to vector<16x16xf32>
    %89 = arith.mulf %88, %85 : vector<16x16xf32>
    %90 = arith.select %87, %85, %89 : vector<16x16xi1>, vector<16x16xf32>
    %91 = arith.addf %90, %1 : vector<16x16xf32>
    %cst_40 = arith.constant dense<0xFF800000> : vector<16xf32>
    %92 = vector.multi_reduction <maximumf>, %91, %cst_40 [1] : vector<16x16xf32> to vector<16xf32>
    %93 = vector.shape_cast %92 : vector<16xf32> to vector<16x1xf32>
    %94 = vector.broadcast %93 : vector<16x1xf32> to vector<16x16xf32>
    %95 = arith.subf %91, %94 : vector<16x16xf32>
    %96 = math.exp %95 : vector<16x16xf32>
    %cst_41 = arith.constant dense<0.000000e+00> : vector<16xf32>
    %97 = vector.multi_reduction <add>, %96, %cst_41 [1] : vector<16x16xf32> to vector<16xf32>
    %98 = vector.shape_cast %97 : vector<16xf32> to vector<16x1xf32>
    %99 = tpu.reciprocal %98 {approx = true} : vector<16x1xf32> -> vector<16x1xf32>
    %100 = vector.broadcast %99 : vector<16x1xf32> to vector<16x16xf32>
    %101 = arith.mulf %96, %100 : vector<16x16xf32>
    %cst_42 = arith.constant dense<0.000000e+00> : vector<16x16xf32>
    %102 = tpu.matmul %101, %76, %cst_42 {dimension_numbers = #tpu.dot_dimension_numbers<[1], [0], [0], [1], [0, 0, 1, 1], [], []>} : vector<16x16xf32>, vector<16x16xf32>, vector<16x16xf32> -> vector<16x16xf32>
    %103 = arith.addf %75, %102 : vector<16x16xf32>
    %104 = vector.extract_strided_slice %73 {offsets = [0, 16], sizes = [16, 16], strides = [1, 1]} : vector<16x32xf32> to vector<16x16xf32>
    %105 = vector.extract_strided_slice %71 {offsets = [1, 0], sizes = [1, 16], strides = [1, 1]} : vector<2x16xf32> to vector<1x16xf32>
    %106 = vector.broadcast %105 : vector<1x16xf32> to vector<16x16xf32>
    %107 = arith.mulf %104, %106 : vector<16x16xf32>
    %cst_43 = arith.constant dense<0.000000e+00> : vector<16xf32>
    %108 = vector.multi_reduction <add>, %107, %cst_43 [1] : vector<16x16xf32> to vector<16xf32>
    %109 = vector.shape_cast %108 : vector<16xf32> to vector<16x1xf32>
    %110 = vector.extract_strided_slice %74 {offsets = [1, 0], sizes = [1, 16], strides = [1, 1]} : vector<2x16xf32> to vector<1x16xf32>
    %111 = vector.broadcast %109 : vector<16x1xf32> to vector<16x16xf32>
    %112 = vector.broadcast %110 : vector<1x16xf32> to vector<16x16xf32>
    %113 = arith.addf %111, %112 : vector<16x16xf32>
    %cst_44 = arith.constant 0.000000e+00 : f32
    %114 = vector.broadcast %cst_44 : f32 to vector<16x16xf32>
    %115 = arith.cmpf ogt, %113, %114 : vector<16x16xf32>
    %cst_45 = arith.constant 2.000000e-01 : f32
    %116 = vector.broadcast %cst_45 : f32 to vector<16x16xf32>
    %117 = arith.mulf %116, %113 : vector<16x16xf32>
    %118 = arith.select %115, %113, %117 : vector<16x16xi1>, vector<16x16xf32>
    %119 = arith.addf %118, %1 : vector<16x16xf32>
    %cst_46 = arith.constant dense<0xFF800000> : vector<16xf32>
    %120 = vector.multi_reduction <maximumf>, %119, %cst_46 [1] : vector<16x16xf32> to vector<16xf32>
    %121 = vector.shape_cast %120 : vector<16xf32> to vector<16x1xf32>
    %122 = vector.broadcast %121 : vector<16x1xf32> to vector<16x16xf32>
    %123 = arith.subf %119, %122 : vector<16x16xf32>
    %124 = math.exp %123 : vector<16x16xf32>
    %cst_47 = arith.constant dense<0.000000e+00> : vector<16xf32>
    %125 = vector.multi_reduction <add>, %124, %cst_47 [1] : vector<16x16xf32> to vector<16xf32>
    %126 = vector.shape_cast %125 : vector<16xf32> to vector<16x1xf32>
    %127 = tpu.reciprocal %126 {approx = true} : vector<16x1xf32> -> vector<16x1xf32>
    %128 = vector.broadcast %127 : vector<16x1xf32> to vector<16x16xf32>
    %129 = arith.mulf %124, %128 : vector<16x16xf32>
    %cst_48 = arith.constant dense<0.000000e+00> : vector<16x16xf32>
    %130 = tpu.matmul %129, %104, %cst_48 {dimension_numbers = #tpu.dot_dimension_numbers<[1], [0], [0], [1], [0, 0, 1, 1], [], []>} : vector<16x16xf32>, vector<16x16xf32>, vector<16x16xf32> -> vector<16x16xf32>
    %131 = arith.addf %103, %130 : vector<16x16xf32>
    %cst_49 = arith.constant 5.000000e-01 : f32
    %132 = vector.broadcast %cst_49 : f32 to vector<16x16xf32>
    %133 = arith.mulf %131, %132 : vector<16x16xf32>
    %134 = vector.broadcast %72 : vector<1x16xf32> to vector<16x16xf32>
    %135 = arith.addf %133, %134 : vector<16x16xf32>
    %c0_50 = arith.constant 0 : index
    %c0_51 = arith.constant 0 : index
    %c0_52 = arith.constant 0 : index
    %136 = vector.load %arg11[%c0_50, %c0_51, %c0_52] : memref<2x8x16xf32, #tpu.memory_space<vmem>>, vector<2x8x16xf32>
    %c0_53 = arith.constant 0 : index
    %c0_54 = arith.constant 0 : index
    %c0_55 = arith.constant 0 : index
    %137 = vector.load %arg12[%c0_53, %c0_54, %c0_55] : memref<2x8x128xf32, #tpu.memory_space<vmem>>, vector<2x8x128xf32>
    %c0_56 = arith.constant 0 : index
    %c0_57 = arith.constant 0 : index
    %138 = vector.load %arg13[%c0_56, %c0_57] : memref<4x128xf32, #tpu.memory_space<vmem>>, vector<4x128xf32>
    %139 = vector.extract_strided_slice %135 {offsets = [0, 0], sizes = [8, 16], strides = [1, 1]} : vector<16x16xf32> to vector<8x16xf32>
    %c0_58 = arith.constant 0 : index
    %c0_59 = arith.constant 0 : index
    %c0_60 = arith.constant 0 : index
    %140 = vector.load %arg2[%c0_58, %c0_59, %c0_60] : memref<2x8x4xf32, #tpu.memory_space<vmem>>, vector<1x8x4xf32>
    %141 = vector.shape_cast %140 : vector<1x8x4xf32> to vector<8x4xf32>
    %cst_61 = arith.constant dense<0.000000e+00> : vector<8x128xf32>
    %142 = tpu.matmul %141, %138, %cst_61 {dimension_numbers = #tpu.dot_dimension_numbers<[1], [0], [0], [1], [0, 0, 1, 1], [], []>} : vector<8x4xf32>, vector<4x128xf32>, vector<8x128xf32> -> vector<8x128xf32>
    %143 = vector.extract_strided_slice %136 {offsets = [0, 0, 0], sizes = [1, 8, 16], strides = [1, 1, 1]} : vector<2x8x16xf32> to vector<1x8x16xf32>
    %144 = vector.shape_cast %143 : vector<1x8x16xf32> to vector<8x16xf32>
    %cst_62 = arith.constant dense<0.000000e+00> : vector<8x8xf32>
    %145 = tpu.matmul %144, %139, %cst_62 {dimension_numbers = #tpu.dot_dimension_numbers<[1], [1], [0], [0], [0, 0, 1, 0], [], []>} : vector<8x16xf32>, vector<8x16xf32>, vector<8x8xf32> -> vector<8x8xf32>
    %146 = vector.extract_strided_slice %137 {offsets = [0, 0, 0], sizes = [1, 8, 128], strides = [1, 1, 1]} : vector<2x8x128xf32> to vector<1x8x128xf32>
    %147 = vector.shape_cast %146 : vector<1x8x128xf32> to vector<8x128xf32>
    %cst_63 = arith.constant dense<0.000000e+00> : vector<8x128xf32>
    %148 = tpu.matmul %145, %147, %cst_63 {dimension_numbers = #tpu.dot_dimension_numbers<[1], [0], [0], [1], [0, 0, 1, 1], [], []>} : vector<8x8xf32>, vector<8x128xf32>, vector<8x128xf32> -> vector<8x128xf32>
    %149 = arith.addf %142, %148 : vector<8x128xf32>
    %150 = vector.extract_strided_slice %136 {offsets = [1, 0, 0], sizes = [1, 8, 16], strides = [1, 1, 1]} : vector<2x8x16xf32> to vector<1x8x16xf32>
    %151 = vector.shape_cast %150 : vector<1x8x16xf32> to vector<8x16xf32>
    %cst_64 = arith.constant dense<0.000000e+00> : vector<8x8xf32>
    %152 = tpu.matmul %151, %139, %cst_64 {dimension_numbers = #tpu.dot_dimension_numbers<[1], [1], [0], [0], [0, 0, 1, 0], [], []>} : vector<8x16xf32>, vector<8x16xf32>, vector<8x8xf32> -> vector<8x8xf32>
    %153 = vector.extract_strided_slice %137 {offsets = [1, 0, 0], sizes = [1, 8, 128], strides = [1, 1, 1]} : vector<2x8x128xf32> to vector<1x8x128xf32>
    %154 = vector.shape_cast %153 : vector<1x8x128xf32> to vector<8x128xf32>
    %cst_65 = arith.constant dense<0.000000e+00> : vector<8x128xf32>
    %155 = tpu.matmul %152, %154, %cst_65 {dimension_numbers = #tpu.dot_dimension_numbers<[1], [0], [0], [1], [0, 0, 1, 1], [], []>} : vector<8x8xf32>, vector<8x128xf32>, vector<8x128xf32> -> vector<8x128xf32>
    %156 = arith.addf %149, %155 : vector<8x128xf32>
    %157 = vector.extract_strided_slice %135 {offsets = [8, 0], sizes = [8, 16], strides = [1, 1]} : vector<16x16xf32> to vector<8x16xf32>
    %c1 = arith.constant 1 : index
    %c0_66 = arith.constant 0 : index
    %c0_67 = arith.constant 0 : index
    %158 = vector.load %arg2[%c1, %c0_66, %c0_67] : memref<2x8x4xf32, #tpu.memory_space<vmem>>, vector<1x8x4xf32>
    %159 = vector.shape_cast %158 : vector<1x8x4xf32> to vector<8x4xf32>
    %cst_68 = arith.constant dense<0.000000e+00> : vector<8x128xf32>
    %160 = tpu.matmul %159, %138, %cst_68 {dimension_numbers = #tpu.dot_dimension_numbers<[1], [0], [0], [1], [0, 0, 1, 1], [], []>} : vector<8x4xf32>, vector<4x128xf32>, vector<8x128xf32> -> vector<8x128xf32>
    %161 = vector.extract_strided_slice %136 {offsets = [0, 0, 0], sizes = [1, 8, 16], strides = [1, 1, 1]} : vector<2x8x16xf32> to vector<1x8x16xf32>
    %162 = vector.shape_cast %161 : vector<1x8x16xf32> to vector<8x16xf32>
    %cst_69 = arith.constant dense<0.000000e+00> : vector<8x8xf32>
    %163 = tpu.matmul %162, %157, %cst_69 {dimension_numbers = #tpu.dot_dimension_numbers<[1], [1], [0], [0], [0, 0, 1, 0], [], []>} : vector<8x16xf32>, vector<8x16xf32>, vector<8x8xf32> -> vector<8x8xf32>
    %164 = vector.extract_strided_slice %137 {offsets = [0, 0, 0], sizes = [1, 8, 128], strides = [1, 1, 1]} : vector<2x8x128xf32> to vector<1x8x128xf32>
    %165 = vector.shape_cast %164 : vector<1x8x128xf32> to vector<8x128xf32>
    %cst_70 = arith.constant dense<0.000000e+00> : vector<8x128xf32>
    %166 = tpu.matmul %163, %165, %cst_70 {dimension_numbers = #tpu.dot_dimension_numbers<[1], [0], [0], [1], [0, 0, 1, 1], [], []>} : vector<8x8xf32>, vector<8x128xf32>, vector<8x128xf32> -> vector<8x128xf32>
    %167 = arith.addf %160, %166 : vector<8x128xf32>
    %168 = vector.extract_strided_slice %136 {offsets = [1, 0, 0], sizes = [1, 8, 16], strides = [1, 1, 1]} : vector<2x8x16xf32> to vector<1x8x16xf32>
    %169 = vector.shape_cast %168 : vector<1x8x16xf32> to vector<8x16xf32>
    %cst_71 = arith.constant dense<0.000000e+00> : vector<8x8xf32>
    %170 = tpu.matmul %169, %157, %cst_71 {dimension_numbers = #tpu.dot_dimension_numbers<[1], [1], [0], [0], [0, 0, 1, 0], [], []>} : vector<8x16xf32>, vector<8x16xf32>, vector<8x8xf32> -> vector<8x8xf32>
    %171 = vector.extract_strided_slice %137 {offsets = [1, 0, 0], sizes = [1, 8, 128], strides = [1, 1, 1]} : vector<2x8x128xf32> to vector<1x8x128xf32>
    %172 = vector.shape_cast %171 : vector<1x8x128xf32> to vector<8x128xf32>
    %cst_72 = arith.constant dense<0.000000e+00> : vector<8x128xf32>
    %173 = tpu.matmul %170, %172, %cst_72 {dimension_numbers = #tpu.dot_dimension_numbers<[1], [0], [0], [1], [0, 0, 1, 1], [], []>} : vector<8x8xf32>, vector<8x128xf32>, vector<8x128xf32> -> vector<8x128xf32>
    %174 = arith.addf %167, %173 : vector<8x128xf32>
    %c0_73 = arith.constant 0 : index
    %c0_74 = arith.constant 0 : index
    %175 = vector.load %arg15[%c0_73, %c0_74] : memref<32x128xf32, #tpu.memory_space<vmem>>, vector<32x128xf32>
    %c0_75 = arith.constant 0 : index
    %c0_76 = arith.constant 0 : index
    %176 = vector.load %arg14[%c0_75, %c0_76] : memref<1x128xf32, #tpu.memory_space<vmem>>, vector<1x128xf32>
    %c0_77 = arith.constant 0 : index
    %c0_78 = arith.constant 0 : index
    %177 = vector.load %arg16[%c0_77, %c0_78] : memref<32x128xf32, #tpu.memory_space<vmem>>, vector<32x128xf32>
    %c0_79 = arith.constant 0 : index
    %c0_80 = arith.constant 0 : index
    %178 = vector.load %arg17[%c0_79, %c0_80] : memref<32x128xf32, #tpu.memory_space<vmem>>, vector<32x128xf32>
    %c0_81 = arith.constant 0 : index
    %c0_82 = arith.constant 0 : index
    %179 = vector.load %arg18[%c0_81, %c0_82] : memref<1x128xf32, #tpu.memory_space<vmem>>, vector<1x128xf32>
    %cst_83 = arith.constant 0.000000e+00 : f32
    %180 = vector.broadcast %cst_83 : f32 to vector<2x32xf32>
    %cst_84 = arith.constant 0.000000e+00 : f32
    %181 = vector.broadcast %cst_84 : f32 to vector<2x32xf32>
    %cst_85 = arith.constant 0.000000e+00 : f32
    %182 = vector.broadcast %cst_85 : f32 to vector<2x32xf32>
    %cst_86 = arith.constant 0.000000e+00 : f32
    %183 = vector.broadcast %cst_86 : f32 to vector<2x32xf32>
    %184 = vector.extract_strided_slice %156 {offsets = [0, 0], sizes = [1, 128], strides = [1, 1]} : vector<8x128xf32> to vector<1x128xf32>
    %185 = vector.extract_strided_slice %174 {offsets = [0, 0], sizes = [1, 128], strides = [1, 1]} : vector<8x128xf32> to vector<1x128xf32>
    %186 = tpu.concatenate %184, %185 in 0 : vector<1x128xf32>, vector<1x128xf32> -> vector<2x128xf32>
    %cst_87 = arith.constant dense<0.000000e+00> : vector<2x128xf32>
    %187 = tpu.matmul %180, %175, %cst_87 {dimension_numbers = #tpu.dot_dimension_numbers<[1], [0], [0], [1], [0, 0, 1, 1], [], []>} : vector<2x32xf32>, vector<32x128xf32>, vector<2x128xf32> -> vector<2x128xf32>
    %188 = arith.addf %186, %187 : vector<2x128xf32>
    %189 = vector.broadcast %176 : vector<1x128xf32> to vector<2x128xf32>
    %190 = arith.addf %188, %189 : vector<2x128xf32>
    %191 = arith.negf %190 : vector<2x128xf32>
    %192 = math.exp %191 : vector<2x128xf32>
    %cst_88 = arith.constant 1.000000e+00 : f32
    %193 = vector.broadcast %cst_88 : f32 to vector<2x128xf32>
    %194 = arith.addf %193, %192 : vector<2x128xf32>
    %195 = arith.divf %193, %194 : vector<2x128xf32>
    %196 = math.tanh %190 : vector<2x128xf32>
    %197 = vector.extract_strided_slice %195 {offsets = [0, 0], sizes = [2, 32], strides = [1, 1]} : vector<2x128xf32> to vector<2x32xf32>
    %198 = vector.extract_strided_slice %195 {offsets = [0, 32], sizes = [2, 32], strides = [1, 1]} : vector<2x128xf32> to vector<2x32xf32>
    %199 = vector.extract_strided_slice %196 {offsets = [0, 64], sizes = [2, 32], strides = [1, 1]} : vector<2x128xf32> to vector<2x32xf32>
    %200 = vector.extract_strided_slice %195 {offsets = [0, 96], sizes = [2, 32], strides = [1, 1]} : vector<2x128xf32> to vector<2x32xf32>
    %201 = arith.mulf %198, %181 : vector<2x32xf32>
    %202 = arith.mulf %197, %199 : vector<2x32xf32>
    %203 = arith.addf %201, %202 : vector<2x32xf32>
    %204 = math.tanh %203 : vector<2x32xf32>
    %205 = arith.mulf %200, %204 : vector<2x32xf32>
    %cst_89 = arith.constant dense<0.000000e+00> : vector<2x128xf32>
    %206 = tpu.matmul %205, %177, %cst_89 {dimension_numbers = #tpu.dot_dimension_numbers<[1], [0], [0], [1], [0, 0, 1, 1], [], []>} : vector<2x32xf32>, vector<32x128xf32>, vector<2x128xf32> -> vector<2x128xf32>
    %cst_90 = arith.constant dense<0.000000e+00> : vector<2x128xf32>
    %207 = tpu.matmul %182, %178, %cst_90 {dimension_numbers = #tpu.dot_dimension_numbers<[1], [0], [0], [1], [0, 0, 1, 1], [], []>} : vector<2x32xf32>, vector<32x128xf32>, vector<2x128xf32> -> vector<2x128xf32>
    %208 = arith.addf %206, %207 : vector<2x128xf32>
    %209 = vector.broadcast %179 : vector<1x128xf32> to vector<2x128xf32>
    %210 = arith.addf %208, %209 : vector<2x128xf32>
    %211 = arith.negf %210 : vector<2x128xf32>
    %212 = math.exp %211 : vector<2x128xf32>
    %cst_91 = arith.constant 1.000000e+00 : f32
    %213 = vector.broadcast %cst_91 : f32 to vector<2x128xf32>
    %214 = arith.addf %213, %212 : vector<2x128xf32>
    %215 = arith.divf %213, %214 : vector<2x128xf32>
    %216 = math.tanh %210 : vector<2x128xf32>
    %217 = vector.extract_strided_slice %215 {offsets = [0, 0], sizes = [2, 32], strides = [1, 1]} : vector<2x128xf32> to vector<2x32xf32>
    %218 = vector.extract_strided_slice %215 {offsets = [0, 32], sizes = [2, 32], strides = [1, 1]} : vector<2x128xf32> to vector<2x32xf32>
    %219 = vector.extract_strided_slice %216 {offsets = [0, 64], sizes = [2, 32], strides = [1, 1]} : vector<2x128xf32> to vector<2x32xf32>
    %220 = vector.extract_strided_slice %215 {offsets = [0, 96], sizes = [2, 32], strides = [1, 1]} : vector<2x128xf32> to vector<2x32xf32>
    %221 = arith.mulf %218, %183 : vector<2x32xf32>
    %222 = arith.mulf %217, %219 : vector<2x32xf32>
    %223 = arith.addf %221, %222 : vector<2x32xf32>
    %224 = math.tanh %223 : vector<2x32xf32>
    %225 = arith.mulf %220, %224 : vector<2x32xf32>
    %226 = vector.extract_strided_slice %156 {offsets = [1, 0], sizes = [1, 128], strides = [1, 1]} : vector<8x128xf32> to vector<1x128xf32>
    %227 = vector.extract_strided_slice %174 {offsets = [1, 0], sizes = [1, 128], strides = [1, 1]} : vector<8x128xf32> to vector<1x128xf32>
    %228 = tpu.concatenate %226, %227 in 0 : vector<1x128xf32>, vector<1x128xf32> -> vector<2x128xf32>
    %cst_92 = arith.constant dense<0.000000e+00> : vector<2x128xf32>
    %229 = tpu.matmul %205, %175, %cst_92 {dimension_numbers = #tpu.dot_dimension_numbers<[1], [0], [0], [1], [0, 0, 1, 1], [], []>} : vector<2x32xf32>, vector<32x128xf32>, vector<2x128xf32> -> vector<2x128xf32>
    %230 = arith.addf %228, %229 : vector<2x128xf32>
    %231 = vector.broadcast %176 : vector<1x128xf32> to vector<2x128xf32>
    %232 = arith.addf %230, %231 : vector<2x128xf32>
    %233 = arith.negf %232 : vector<2x128xf32>
    %234 = math.exp %233 : vector<2x128xf32>
    %cst_93 = arith.constant 1.000000e+00 : f32
    %235 = vector.broadcast %cst_93 : f32 to vector<2x128xf32>
    %236 = arith.addf %235, %234 : vector<2x128xf32>
    %237 = arith.divf %235, %236 : vector<2x128xf32>
    %238 = math.tanh %232 : vector<2x128xf32>
    %239 = vector.extract_strided_slice %237 {offsets = [0, 0], sizes = [2, 32], strides = [1, 1]} : vector<2x128xf32> to vector<2x32xf32>
    %240 = vector.extract_strided_slice %237 {offsets = [0, 32], sizes = [2, 32], strides = [1, 1]} : vector<2x128xf32> to vector<2x32xf32>
    %241 = vector.extract_strided_slice %238 {offsets = [0, 64], sizes = [2, 32], strides = [1, 1]} : vector<2x128xf32> to vector<2x32xf32>
    %242 = vector.extract_strided_slice %237 {offsets = [0, 96], sizes = [2, 32], strides = [1, 1]} : vector<2x128xf32> to vector<2x32xf32>
    %243 = arith.mulf %240, %203 : vector<2x32xf32>
    %244 = arith.mulf %239, %241 : vector<2x32xf32>
    %245 = arith.addf %243, %244 : vector<2x32xf32>
    %246 = math.tanh %245 : vector<2x32xf32>
    %247 = arith.mulf %242, %246 : vector<2x32xf32>
    %cst_94 = arith.constant dense<0.000000e+00> : vector<2x128xf32>
    %248 = tpu.matmul %247, %177, %cst_94 {dimension_numbers = #tpu.dot_dimension_numbers<[1], [0], [0], [1], [0, 0, 1, 1], [], []>} : vector<2x32xf32>, vector<32x128xf32>, vector<2x128xf32> -> vector<2x128xf32>
    %cst_95 = arith.constant dense<0.000000e+00> : vector<2x128xf32>
    %249 = tpu.matmul %225, %178, %cst_95 {dimension_numbers = #tpu.dot_dimension_numbers<[1], [0], [0], [1], [0, 0, 1, 1], [], []>} : vector<2x32xf32>, vector<32x128xf32>, vector<2x128xf32> -> vector<2x128xf32>
    %250 = arith.addf %248, %249 : vector<2x128xf32>
    %251 = vector.broadcast %179 : vector<1x128xf32> to vector<2x128xf32>
    %252 = arith.addf %250, %251 : vector<2x128xf32>
    %253 = arith.negf %252 : vector<2x128xf32>
    %254 = math.exp %253 : vector<2x128xf32>
    %cst_96 = arith.constant 1.000000e+00 : f32
    %255 = vector.broadcast %cst_96 : f32 to vector<2x128xf32>
    %256 = arith.addf %255, %254 : vector<2x128xf32>
    %257 = arith.divf %255, %256 : vector<2x128xf32>
    %258 = math.tanh %252 : vector<2x128xf32>
    %259 = vector.extract_strided_slice %257 {offsets = [0, 0], sizes = [2, 32], strides = [1, 1]} : vector<2x128xf32> to vector<2x32xf32>
    %260 = vector.extract_strided_slice %257 {offsets = [0, 32], sizes = [2, 32], strides = [1, 1]} : vector<2x128xf32> to vector<2x32xf32>
    %261 = vector.extract_strided_slice %258 {offsets = [0, 64], sizes = [2, 32], strides = [1, 1]} : vector<2x128xf32> to vector<2x32xf32>
    %262 = vector.extract_strided_slice %257 {offsets = [0, 96], sizes = [2, 32], strides = [1, 1]} : vector<2x128xf32> to vector<2x32xf32>
    %263 = arith.mulf %260, %223 : vector<2x32xf32>
    %264 = arith.mulf %259, %261 : vector<2x32xf32>
    %265 = arith.addf %263, %264 : vector<2x32xf32>
    %266 = math.tanh %265 : vector<2x32xf32>
    %267 = arith.mulf %262, %266 : vector<2x32xf32>
    %268 = vector.extract_strided_slice %156 {offsets = [2, 0], sizes = [1, 128], strides = [1, 1]} : vector<8x128xf32> to vector<1x128xf32>
    %269 = vector.extract_strided_slice %174 {offsets = [2, 0], sizes = [1, 128], strides = [1, 1]} : vector<8x128xf32> to vector<1x128xf32>
    %270 = tpu.concatenate %268, %269 in 0 : vector<1x128xf32>, vector<1x128xf32> -> vector<2x128xf32>
    %cst_97 = arith.constant dense<0.000000e+00> : vector<2x128xf32>
    %271 = tpu.matmul %247, %175, %cst_97 {dimension_numbers = #tpu.dot_dimension_numbers<[1], [0], [0], [1], [0, 0, 1, 1], [], []>} : vector<2x32xf32>, vector<32x128xf32>, vector<2x128xf32> -> vector<2x128xf32>
    %272 = arith.addf %270, %271 : vector<2x128xf32>
    %273 = vector.broadcast %176 : vector<1x128xf32> to vector<2x128xf32>
    %274 = arith.addf %272, %273 : vector<2x128xf32>
    %275 = arith.negf %274 : vector<2x128xf32>
    %276 = math.exp %275 : vector<2x128xf32>
    %cst_98 = arith.constant 1.000000e+00 : f32
    %277 = vector.broadcast %cst_98 : f32 to vector<2x128xf32>
    %278 = arith.addf %277, %276 : vector<2x128xf32>
    %279 = arith.divf %277, %278 : vector<2x128xf32>
    %280 = math.tanh %274 : vector<2x128xf32>
    %281 = vector.extract_strided_slice %279 {offsets = [0, 0], sizes = [2, 32], strides = [1, 1]} : vector<2x128xf32> to vector<2x32xf32>
    %282 = vector.extract_strided_slice %279 {offsets = [0, 32], sizes = [2, 32], strides = [1, 1]} : vector<2x128xf32> to vector<2x32xf32>
    %283 = vector.extract_strided_slice %280 {offsets = [0, 64], sizes = [2, 32], strides = [1, 1]} : vector<2x128xf32> to vector<2x32xf32>
    %284 = vector.extract_strided_slice %279 {offsets = [0, 96], sizes = [2, 32], strides = [1, 1]} : vector<2x128xf32> to vector<2x32xf32>
    %285 = arith.mulf %282, %245 : vector<2x32xf32>
    %286 = arith.mulf %281, %283 : vector<2x32xf32>
    %287 = arith.addf %285, %286 : vector<2x32xf32>
    %288 = math.tanh %287 : vector<2x32xf32>
    %289 = arith.mulf %284, %288 : vector<2x32xf32>
    %cst_99 = arith.constant dense<0.000000e+00> : vector<2x128xf32>
    %290 = tpu.matmul %289, %177, %cst_99 {dimension_numbers = #tpu.dot_dimension_numbers<[1], [0], [0], [1], [0, 0, 1, 1], [], []>} : vector<2x32xf32>, vector<32x128xf32>, vector<2x128xf32> -> vector<2x128xf32>
    %cst_100 = arith.constant dense<0.000000e+00> : vector<2x128xf32>
    %291 = tpu.matmul %267, %178, %cst_100 {dimension_numbers = #tpu.dot_dimension_numbers<[1], [0], [0], [1], [0, 0, 1, 1], [], []>} : vector<2x32xf32>, vector<32x128xf32>, vector<2x128xf32> -> vector<2x128xf32>
    %292 = arith.addf %290, %291 : vector<2x128xf32>
    %293 = vector.broadcast %179 : vector<1x128xf32> to vector<2x128xf32>
    %294 = arith.addf %292, %293 : vector<2x128xf32>
    %295 = arith.negf %294 : vector<2x128xf32>
    %296 = math.exp %295 : vector<2x128xf32>
    %cst_101 = arith.constant 1.000000e+00 : f32
    %297 = vector.broadcast %cst_101 : f32 to vector<2x128xf32>
    %298 = arith.addf %297, %296 : vector<2x128xf32>
    %299 = arith.divf %297, %298 : vector<2x128xf32>
    %300 = math.tanh %294 : vector<2x128xf32>
    %301 = vector.extract_strided_slice %299 {offsets = [0, 0], sizes = [2, 32], strides = [1, 1]} : vector<2x128xf32> to vector<2x32xf32>
    %302 = vector.extract_strided_slice %299 {offsets = [0, 32], sizes = [2, 32], strides = [1, 1]} : vector<2x128xf32> to vector<2x32xf32>
    %303 = vector.extract_strided_slice %300 {offsets = [0, 64], sizes = [2, 32], strides = [1, 1]} : vector<2x128xf32> to vector<2x32xf32>
    %304 = vector.extract_strided_slice %299 {offsets = [0, 96], sizes = [2, 32], strides = [1, 1]} : vector<2x128xf32> to vector<2x32xf32>
    %305 = arith.mulf %302, %265 : vector<2x32xf32>
    %306 = arith.mulf %301, %303 : vector<2x32xf32>
    %307 = arith.addf %305, %306 : vector<2x32xf32>
    %308 = math.tanh %307 : vector<2x32xf32>
    %309 = arith.mulf %304, %308 : vector<2x32xf32>
    %310 = vector.extract_strided_slice %156 {offsets = [3, 0], sizes = [1, 128], strides = [1, 1]} : vector<8x128xf32> to vector<1x128xf32>
    %311 = vector.extract_strided_slice %174 {offsets = [3, 0], sizes = [1, 128], strides = [1, 1]} : vector<8x128xf32> to vector<1x128xf32>
    %312 = tpu.concatenate %310, %311 in 0 : vector<1x128xf32>, vector<1x128xf32> -> vector<2x128xf32>
    %cst_102 = arith.constant dense<0.000000e+00> : vector<2x128xf32>
    %313 = tpu.matmul %289, %175, %cst_102 {dimension_numbers = #tpu.dot_dimension_numbers<[1], [0], [0], [1], [0, 0, 1, 1], [], []>} : vector<2x32xf32>, vector<32x128xf32>, vector<2x128xf32> -> vector<2x128xf32>
    %314 = arith.addf %312, %313 : vector<2x128xf32>
    %315 = vector.broadcast %176 : vector<1x128xf32> to vector<2x128xf32>
    %316 = arith.addf %314, %315 : vector<2x128xf32>
    %317 = arith.negf %316 : vector<2x128xf32>
    %318 = math.exp %317 : vector<2x128xf32>
    %cst_103 = arith.constant 1.000000e+00 : f32
    %319 = vector.broadcast %cst_103 : f32 to vector<2x128xf32>
    %320 = arith.addf %319, %318 : vector<2x128xf32>
    %321 = arith.divf %319, %320 : vector<2x128xf32>
    %322 = math.tanh %316 : vector<2x128xf32>
    %323 = vector.extract_strided_slice %321 {offsets = [0, 0], sizes = [2, 32], strides = [1, 1]} : vector<2x128xf32> to vector<2x32xf32>
    %324 = vector.extract_strided_slice %321 {offsets = [0, 32], sizes = [2, 32], strides = [1, 1]} : vector<2x128xf32> to vector<2x32xf32>
    %325 = vector.extract_strided_slice %322 {offsets = [0, 64], sizes = [2, 32], strides = [1, 1]} : vector<2x128xf32> to vector<2x32xf32>
    %326 = vector.extract_strided_slice %321 {offsets = [0, 96], sizes = [2, 32], strides = [1, 1]} : vector<2x128xf32> to vector<2x32xf32>
    %327 = arith.mulf %324, %287 : vector<2x32xf32>
    %328 = arith.mulf %323, %325 : vector<2x32xf32>
    %329 = arith.addf %327, %328 : vector<2x32xf32>
    %330 = math.tanh %329 : vector<2x32xf32>
    %331 = arith.mulf %326, %330 : vector<2x32xf32>
    %cst_104 = arith.constant dense<0.000000e+00> : vector<2x128xf32>
    %332 = tpu.matmul %331, %177, %cst_104 {dimension_numbers = #tpu.dot_dimension_numbers<[1], [0], [0], [1], [0, 0, 1, 1], [], []>} : vector<2x32xf32>, vector<32x128xf32>, vector<2x128xf32> -> vector<2x128xf32>
    %cst_105 = arith.constant dense<0.000000e+00> : vector<2x128xf32>
    %333 = tpu.matmul %309, %178, %cst_105 {dimension_numbers = #tpu.dot_dimension_numbers<[1], [0], [0], [1], [0, 0, 1, 1], [], []>} : vector<2x32xf32>, vector<32x128xf32>, vector<2x128xf32> -> vector<2x128xf32>
    %334 = arith.addf %332, %333 : vector<2x128xf32>
    %335 = vector.broadcast %179 : vector<1x128xf32> to vector<2x128xf32>
    %336 = arith.addf %334, %335 : vector<2x128xf32>
    %337 = arith.negf %336 : vector<2x128xf32>
    %338 = math.exp %337 : vector<2x128xf32>
    %cst_106 = arith.constant 1.000000e+00 : f32
    %339 = vector.broadcast %cst_106 : f32 to vector<2x128xf32>
    %340 = arith.addf %339, %338 : vector<2x128xf32>
    %341 = arith.divf %339, %340 : vector<2x128xf32>
    %342 = math.tanh %336 : vector<2x128xf32>
    %343 = vector.extract_strided_slice %341 {offsets = [0, 0], sizes = [2, 32], strides = [1, 1]} : vector<2x128xf32> to vector<2x32xf32>
    %344 = vector.extract_strided_slice %341 {offsets = [0, 32], sizes = [2, 32], strides = [1, 1]} : vector<2x128xf32> to vector<2x32xf32>
    %345 = vector.extract_strided_slice %342 {offsets = [0, 64], sizes = [2, 32], strides = [1, 1]} : vector<2x128xf32> to vector<2x32xf32>
    %346 = vector.extract_strided_slice %341 {offsets = [0, 96], sizes = [2, 32], strides = [1, 1]} : vector<2x128xf32> to vector<2x32xf32>
    %347 = arith.mulf %344, %307 : vector<2x32xf32>
    %348 = arith.mulf %343, %345 : vector<2x32xf32>
    %349 = arith.addf %347, %348 : vector<2x32xf32>
    %350 = math.tanh %349 : vector<2x32xf32>
    %351 = arith.mulf %346, %350 : vector<2x32xf32>
    %352 = vector.extract_strided_slice %156 {offsets = [4, 0], sizes = [1, 128], strides = [1, 1]} : vector<8x128xf32> to vector<1x128xf32>
    %353 = vector.extract_strided_slice %174 {offsets = [4, 0], sizes = [1, 128], strides = [1, 1]} : vector<8x128xf32> to vector<1x128xf32>
    %354 = tpu.concatenate %352, %353 in 0 : vector<1x128xf32>, vector<1x128xf32> -> vector<2x128xf32>
    %cst_107 = arith.constant dense<0.000000e+00> : vector<2x128xf32>
    %355 = tpu.matmul %331, %175, %cst_107 {dimension_numbers = #tpu.dot_dimension_numbers<[1], [0], [0], [1], [0, 0, 1, 1], [], []>} : vector<2x32xf32>, vector<32x128xf32>, vector<2x128xf32> -> vector<2x128xf32>
    %356 = arith.addf %354, %355 : vector<2x128xf32>
    %357 = vector.broadcast %176 : vector<1x128xf32> to vector<2x128xf32>
    %358 = arith.addf %356, %357 : vector<2x128xf32>
    %359 = arith.negf %358 : vector<2x128xf32>
    %360 = math.exp %359 : vector<2x128xf32>
    %cst_108 = arith.constant 1.000000e+00 : f32
    %361 = vector.broadcast %cst_108 : f32 to vector<2x128xf32>
    %362 = arith.addf %361, %360 : vector<2x128xf32>
    %363 = arith.divf %361, %362 : vector<2x128xf32>
    %364 = math.tanh %358 : vector<2x128xf32>
    %365 = vector.extract_strided_slice %363 {offsets = [0, 0], sizes = [2, 32], strides = [1, 1]} : vector<2x128xf32> to vector<2x32xf32>
    %366 = vector.extract_strided_slice %363 {offsets = [0, 32], sizes = [2, 32], strides = [1, 1]} : vector<2x128xf32> to vector<2x32xf32>
    %367 = vector.extract_strided_slice %364 {offsets = [0, 64], sizes = [2, 32], strides = [1, 1]} : vector<2x128xf32> to vector<2x32xf32>
    %368 = vector.extract_strided_slice %363 {offsets = [0, 96], sizes = [2, 32], strides = [1, 1]} : vector<2x128xf32> to vector<2x32xf32>
    %369 = arith.mulf %366, %329 : vector<2x32xf32>
    %370 = arith.mulf %365, %367 : vector<2x32xf32>
    %371 = arith.addf %369, %370 : vector<2x32xf32>
    %372 = math.tanh %371 : vector<2x32xf32>
    %373 = arith.mulf %368, %372 : vector<2x32xf32>
    %cst_109 = arith.constant dense<0.000000e+00> : vector<2x128xf32>
    %374 = tpu.matmul %373, %177, %cst_109 {dimension_numbers = #tpu.dot_dimension_numbers<[1], [0], [0], [1], [0, 0, 1, 1], [], []>} : vector<2x32xf32>, vector<32x128xf32>, vector<2x128xf32> -> vector<2x128xf32>
    %cst_110 = arith.constant dense<0.000000e+00> : vector<2x128xf32>
    %375 = tpu.matmul %351, %178, %cst_110 {dimension_numbers = #tpu.dot_dimension_numbers<[1], [0], [0], [1], [0, 0, 1, 1], [], []>} : vector<2x32xf32>, vector<32x128xf32>, vector<2x128xf32> -> vector<2x128xf32>
    %376 = arith.addf %374, %375 : vector<2x128xf32>
    %377 = vector.broadcast %179 : vector<1x128xf32> to vector<2x128xf32>
    %378 = arith.addf %376, %377 : vector<2x128xf32>
    %379 = arith.negf %378 : vector<2x128xf32>
    %380 = math.exp %379 : vector<2x128xf32>
    %cst_111 = arith.constant 1.000000e+00 : f32
    %381 = vector.broadcast %cst_111 : f32 to vector<2x128xf32>
    %382 = arith.addf %381, %380 : vector<2x128xf32>
    %383 = arith.divf %381, %382 : vector<2x128xf32>
    %384 = math.tanh %378 : vector<2x128xf32>
    %385 = vector.extract_strided_slice %383 {offsets = [0, 0], sizes = [2, 32], strides = [1, 1]} : vector<2x128xf32> to vector<2x32xf32>
    %386 = vector.extract_strided_slice %383 {offsets = [0, 32], sizes = [2, 32], strides = [1, 1]} : vector<2x128xf32> to vector<2x32xf32>
    %387 = vector.extract_strided_slice %384 {offsets = [0, 64], sizes = [2, 32], strides = [1, 1]} : vector<2x128xf32> to vector<2x32xf32>
    %388 = vector.extract_strided_slice %383 {offsets = [0, 96], sizes = [2, 32], strides = [1, 1]} : vector<2x128xf32> to vector<2x32xf32>
    %389 = arith.mulf %386, %349 : vector<2x32xf32>
    %390 = arith.mulf %385, %387 : vector<2x32xf32>
    %391 = arith.addf %389, %390 : vector<2x32xf32>
    %392 = math.tanh %391 : vector<2x32xf32>
    %393 = arith.mulf %388, %392 : vector<2x32xf32>
    %394 = vector.extract_strided_slice %156 {offsets = [5, 0], sizes = [1, 128], strides = [1, 1]} : vector<8x128xf32> to vector<1x128xf32>
    %395 = vector.extract_strided_slice %174 {offsets = [5, 0], sizes = [1, 128], strides = [1, 1]} : vector<8x128xf32> to vector<1x128xf32>
    %396 = tpu.concatenate %394, %395 in 0 : vector<1x128xf32>, vector<1x128xf32> -> vector<2x128xf32>
    %cst_112 = arith.constant dense<0.000000e+00> : vector<2x128xf32>
    %397 = tpu.matmul %373, %175, %cst_112 {dimension_numbers = #tpu.dot_dimension_numbers<[1], [0], [0], [1], [0, 0, 1, 1], [], []>} : vector<2x32xf32>, vector<32x128xf32>, vector<2x128xf32> -> vector<2x128xf32>
    %398 = arith.addf %396, %397 : vector<2x128xf32>
    %399 = vector.broadcast %176 : vector<1x128xf32> to vector<2x128xf32>
    %400 = arith.addf %398, %399 : vector<2x128xf32>
    %401 = arith.negf %400 : vector<2x128xf32>
    %402 = math.exp %401 : vector<2x128xf32>
    %cst_113 = arith.constant 1.000000e+00 : f32
    %403 = vector.broadcast %cst_113 : f32 to vector<2x128xf32>
    %404 = arith.addf %403, %402 : vector<2x128xf32>
    %405 = arith.divf %403, %404 : vector<2x128xf32>
    %406 = math.tanh %400 : vector<2x128xf32>
    %407 = vector.extract_strided_slice %405 {offsets = [0, 0], sizes = [2, 32], strides = [1, 1]} : vector<2x128xf32> to vector<2x32xf32>
    %408 = vector.extract_strided_slice %405 {offsets = [0, 32], sizes = [2, 32], strides = [1, 1]} : vector<2x128xf32> to vector<2x32xf32>
    %409 = vector.extract_strided_slice %406 {offsets = [0, 64], sizes = [2, 32], strides = [1, 1]} : vector<2x128xf32> to vector<2x32xf32>
    %410 = vector.extract_strided_slice %405 {offsets = [0, 96], sizes = [2, 32], strides = [1, 1]} : vector<2x128xf32> to vector<2x32xf32>
    %411 = arith.mulf %408, %371 : vector<2x32xf32>
    %412 = arith.mulf %407, %409 : vector<2x32xf32>
    %413 = arith.addf %411, %412 : vector<2x32xf32>
    %414 = math.tanh %413 : vector<2x32xf32>
    %415 = arith.mulf %410, %414 : vector<2x32xf32>
    %cst_114 = arith.constant dense<0.000000e+00> : vector<2x128xf32>
    %416 = tpu.matmul %415, %177, %cst_114 {dimension_numbers = #tpu.dot_dimension_numbers<[1], [0], [0], [1], [0, 0, 1, 1], [], []>} : vector<2x32xf32>, vector<32x128xf32>, vector<2x128xf32> -> vector<2x128xf32>
    %cst_115 = arith.constant dense<0.000000e+00> : vector<2x128xf32>
    %417 = tpu.matmul %393, %178, %cst_115 {dimension_numbers = #tpu.dot_dimension_numbers<[1], [0], [0], [1], [0, 0, 1, 1], [], []>} : vector<2x32xf32>, vector<32x128xf32>, vector<2x128xf32> -> vector<2x128xf32>
    %418 = arith.addf %416, %417 : vector<2x128xf32>
    %419 = vector.broadcast %179 : vector<1x128xf32> to vector<2x128xf32>
    %420 = arith.addf %418, %419 : vector<2x128xf32>
    %421 = arith.negf %420 : vector<2x128xf32>
    %422 = math.exp %421 : vector<2x128xf32>
    %cst_116 = arith.constant 1.000000e+00 : f32
    %423 = vector.broadcast %cst_116 : f32 to vector<2x128xf32>
    %424 = arith.addf %423, %422 : vector<2x128xf32>
    %425 = arith.divf %423, %424 : vector<2x128xf32>
    %426 = math.tanh %420 : vector<2x128xf32>
    %427 = vector.extract_strided_slice %425 {offsets = [0, 0], sizes = [2, 32], strides = [1, 1]} : vector<2x128xf32> to vector<2x32xf32>
    %428 = vector.extract_strided_slice %425 {offsets = [0, 32], sizes = [2, 32], strides = [1, 1]} : vector<2x128xf32> to vector<2x32xf32>
    %429 = vector.extract_strided_slice %426 {offsets = [0, 64], sizes = [2, 32], strides = [1, 1]} : vector<2x128xf32> to vector<2x32xf32>
    %430 = vector.extract_strided_slice %425 {offsets = [0, 96], sizes = [2, 32], strides = [1, 1]} : vector<2x128xf32> to vector<2x32xf32>
    %431 = arith.mulf %428, %391 : vector<2x32xf32>
    %432 = arith.mulf %427, %429 : vector<2x32xf32>
    %433 = arith.addf %431, %432 : vector<2x32xf32>
    %434 = math.tanh %433 : vector<2x32xf32>
    %435 = arith.mulf %430, %434 : vector<2x32xf32>
    %436 = vector.extract_strided_slice %156 {offsets = [6, 0], sizes = [1, 128], strides = [1, 1]} : vector<8x128xf32> to vector<1x128xf32>
    %437 = vector.extract_strided_slice %174 {offsets = [6, 0], sizes = [1, 128], strides = [1, 1]} : vector<8x128xf32> to vector<1x128xf32>
    %438 = tpu.concatenate %436, %437 in 0 : vector<1x128xf32>, vector<1x128xf32> -> vector<2x128xf32>
    %cst_117 = arith.constant dense<0.000000e+00> : vector<2x128xf32>
    %439 = tpu.matmul %415, %175, %cst_117 {dimension_numbers = #tpu.dot_dimension_numbers<[1], [0], [0], [1], [0, 0, 1, 1], [], []>} : vector<2x32xf32>, vector<32x128xf32>, vector<2x128xf32> -> vector<2x128xf32>
    %440 = arith.addf %438, %439 : vector<2x128xf32>
    %441 = vector.broadcast %176 : vector<1x128xf32> to vector<2x128xf32>
    %442 = arith.addf %440, %441 : vector<2x128xf32>
    %443 = arith.negf %442 : vector<2x128xf32>
    %444 = math.exp %443 : vector<2x128xf32>
    %cst_118 = arith.constant 1.000000e+00 : f32
    %445 = vector.broadcast %cst_118 : f32 to vector<2x128xf32>
    %446 = arith.addf %445, %444 : vector<2x128xf32>
    %447 = arith.divf %445, %446 : vector<2x128xf32>
    %448 = math.tanh %442 : vector<2x128xf32>
    %449 = vector.extract_strided_slice %447 {offsets = [0, 0], sizes = [2, 32], strides = [1, 1]} : vector<2x128xf32> to vector<2x32xf32>
    %450 = vector.extract_strided_slice %447 {offsets = [0, 32], sizes = [2, 32], strides = [1, 1]} : vector<2x128xf32> to vector<2x32xf32>
    %451 = vector.extract_strided_slice %448 {offsets = [0, 64], sizes = [2, 32], strides = [1, 1]} : vector<2x128xf32> to vector<2x32xf32>
    %452 = vector.extract_strided_slice %447 {offsets = [0, 96], sizes = [2, 32], strides = [1, 1]} : vector<2x128xf32> to vector<2x32xf32>
    %453 = arith.mulf %450, %413 : vector<2x32xf32>
    %454 = arith.mulf %449, %451 : vector<2x32xf32>
    %455 = arith.addf %453, %454 : vector<2x32xf32>
    %456 = math.tanh %455 : vector<2x32xf32>
    %457 = arith.mulf %452, %456 : vector<2x32xf32>
    %cst_119 = arith.constant dense<0.000000e+00> : vector<2x128xf32>
    %458 = tpu.matmul %457, %177, %cst_119 {dimension_numbers = #tpu.dot_dimension_numbers<[1], [0], [0], [1], [0, 0, 1, 1], [], []>} : vector<2x32xf32>, vector<32x128xf32>, vector<2x128xf32> -> vector<2x128xf32>
    %cst_120 = arith.constant dense<0.000000e+00> : vector<2x128xf32>
    %459 = tpu.matmul %435, %178, %cst_120 {dimension_numbers = #tpu.dot_dimension_numbers<[1], [0], [0], [1], [0, 0, 1, 1], [], []>} : vector<2x32xf32>, vector<32x128xf32>, vector<2x128xf32> -> vector<2x128xf32>
    %460 = arith.addf %458, %459 : vector<2x128xf32>
    %461 = vector.broadcast %179 : vector<1x128xf32> to vector<2x128xf32>
    %462 = arith.addf %460, %461 : vector<2x128xf32>
    %463 = arith.negf %462 : vector<2x128xf32>
    %464 = math.exp %463 : vector<2x128xf32>
    %cst_121 = arith.constant 1.000000e+00 : f32
    %465 = vector.broadcast %cst_121 : f32 to vector<2x128xf32>
    %466 = arith.addf %465, %464 : vector<2x128xf32>
    %467 = arith.divf %465, %466 : vector<2x128xf32>
    %468 = math.tanh %462 : vector<2x128xf32>
    %469 = vector.extract_strided_slice %467 {offsets = [0, 0], sizes = [2, 32], strides = [1, 1]} : vector<2x128xf32> to vector<2x32xf32>
    %470 = vector.extract_strided_slice %467 {offsets = [0, 32], sizes = [2, 32], strides = [1, 1]} : vector<2x128xf32> to vector<2x32xf32>
    %471 = vector.extract_strided_slice %468 {offsets = [0, 64], sizes = [2, 32], strides = [1, 1]} : vector<2x128xf32> to vector<2x32xf32>
    %472 = vector.extract_strided_slice %467 {offsets = [0, 96], sizes = [2, 32], strides = [1, 1]} : vector<2x128xf32> to vector<2x32xf32>
    %473 = arith.mulf %470, %433 : vector<2x32xf32>
    %474 = arith.mulf %469, %471 : vector<2x32xf32>
    %475 = arith.addf %473, %474 : vector<2x32xf32>
    %476 = math.tanh %475 : vector<2x32xf32>
    %477 = arith.mulf %472, %476 : vector<2x32xf32>
    %478 = vector.extract_strided_slice %156 {offsets = [7, 0], sizes = [1, 128], strides = [1, 1]} : vector<8x128xf32> to vector<1x128xf32>
    %479 = vector.extract_strided_slice %174 {offsets = [7, 0], sizes = [1, 128], strides = [1, 1]} : vector<8x128xf32> to vector<1x128xf32>
    %480 = tpu.concatenate %478, %479 in 0 : vector<1x128xf32>, vector<1x128xf32> -> vector<2x128xf32>
    %cst_122 = arith.constant dense<0.000000e+00> : vector<2x128xf32>
    %481 = tpu.matmul %457, %175, %cst_122 {dimension_numbers = #tpu.dot_dimension_numbers<[1], [0], [0], [1], [0, 0, 1, 1], [], []>} : vector<2x32xf32>, vector<32x128xf32>, vector<2x128xf32> -> vector<2x128xf32>
    %482 = arith.addf %480, %481 : vector<2x128xf32>
    %483 = vector.broadcast %176 : vector<1x128xf32> to vector<2x128xf32>
    %484 = arith.addf %482, %483 : vector<2x128xf32>
    %485 = arith.negf %484 : vector<2x128xf32>
    %486 = math.exp %485 : vector<2x128xf32>
    %cst_123 = arith.constant 1.000000e+00 : f32
    %487 = vector.broadcast %cst_123 : f32 to vector<2x128xf32>
    %488 = arith.addf %487, %486 : vector<2x128xf32>
    %489 = arith.divf %487, %488 : vector<2x128xf32>
    %490 = math.tanh %484 : vector<2x128xf32>
    %491 = vector.extract_strided_slice %489 {offsets = [0, 0], sizes = [2, 32], strides = [1, 1]} : vector<2x128xf32> to vector<2x32xf32>
    %492 = vector.extract_strided_slice %489 {offsets = [0, 32], sizes = [2, 32], strides = [1, 1]} : vector<2x128xf32> to vector<2x32xf32>
    %493 = vector.extract_strided_slice %490 {offsets = [0, 64], sizes = [2, 32], strides = [1, 1]} : vector<2x128xf32> to vector<2x32xf32>
    %494 = vector.extract_strided_slice %489 {offsets = [0, 96], sizes = [2, 32], strides = [1, 1]} : vector<2x128xf32> to vector<2x32xf32>
    %495 = arith.mulf %492, %455 : vector<2x32xf32>
    %496 = arith.mulf %491, %493 : vector<2x32xf32>
    %497 = arith.addf %495, %496 : vector<2x32xf32>
    %498 = math.tanh %497 : vector<2x32xf32>
    %499 = arith.mulf %494, %498 : vector<2x32xf32>
    %cst_124 = arith.constant dense<0.000000e+00> : vector<2x128xf32>
    %500 = tpu.matmul %499, %177, %cst_124 {dimension_numbers = #tpu.dot_dimension_numbers<[1], [0], [0], [1], [0, 0, 1, 1], [], []>} : vector<2x32xf32>, vector<32x128xf32>, vector<2x128xf32> -> vector<2x128xf32>
    %cst_125 = arith.constant dense<0.000000e+00> : vector<2x128xf32>
    %501 = tpu.matmul %477, %178, %cst_125 {dimension_numbers = #tpu.dot_dimension_numbers<[1], [0], [0], [1], [0, 0, 1, 1], [], []>} : vector<2x32xf32>, vector<32x128xf32>, vector<2x128xf32> -> vector<2x128xf32>
    %502 = arith.addf %500, %501 : vector<2x128xf32>
    %503 = vector.broadcast %179 : vector<1x128xf32> to vector<2x128xf32>
    %504 = arith.addf %502, %503 : vector<2x128xf32>
    %505 = arith.negf %504 : vector<2x128xf32>
    %506 = math.exp %505 : vector<2x128xf32>
    %cst_126 = arith.constant 1.000000e+00 : f32
    %507 = vector.broadcast %cst_126 : f32 to vector<2x128xf32>
    %508 = arith.addf %507, %506 : vector<2x128xf32>
    %509 = arith.divf %507, %508 : vector<2x128xf32>
    %510 = math.tanh %504 : vector<2x128xf32>
    %511 = vector.extract_strided_slice %509 {offsets = [0, 0], sizes = [2, 32], strides = [1, 1]} : vector<2x128xf32> to vector<2x32xf32>
    %512 = vector.extract_strided_slice %509 {offsets = [0, 32], sizes = [2, 32], strides = [1, 1]} : vector<2x128xf32> to vector<2x32xf32>
    %513 = vector.extract_strided_slice %510 {offsets = [0, 64], sizes = [2, 32], strides = [1, 1]} : vector<2x128xf32> to vector<2x32xf32>
    %514 = vector.extract_strided_slice %509 {offsets = [0, 96], sizes = [2, 32], strides = [1, 1]} : vector<2x128xf32> to vector<2x32xf32>
    %515 = arith.mulf %512, %475 : vector<2x32xf32>
    %516 = arith.mulf %511, %513 : vector<2x32xf32>
    %517 = arith.addf %515, %516 : vector<2x32xf32>
    %518 = math.tanh %517 : vector<2x32xf32>
    %519 = arith.mulf %514, %518 : vector<2x32xf32>
    %c0_127 = arith.constant 0 : index
    %c0_128 = arith.constant 0 : index
    %520 = vector.load %arg19[%c0_127, %c0_128] : memref<32x16xf32, #tpu.memory_space<vmem>>, vector<32x16xf32>
    %cst_129 = arith.constant dense<0.000000e+00> : vector<2x16xf32>
    %521 = tpu.matmul %519, %520, %cst_129 {dimension_numbers = #tpu.dot_dimension_numbers<[1], [0], [0], [1], [0, 0, 1, 1], [], []>} : vector<2x32xf32>, vector<32x16xf32>, vector<2x16xf32> -> vector<2x16xf32>
    %c0_130 = arith.constant 0 : index
    %c0_131 = arith.constant 0 : index
    %522 = vector.load %arg20[%c0_130, %c0_131] : memref<1x16xf32, #tpu.memory_space<vmem>>, vector<1x16xf32>
    %523 = vector.broadcast %522 : vector<1x16xf32> to vector<2x16xf32>
    %524 = arith.addf %521, %523 : vector<2x16xf32>
    %c0_132 = arith.constant 0 : index
    %c0_133 = arith.constant 0 : index
    %525 = vector.load %arg21[%c0_132, %c0_133] : memref<2x16xf32, #tpu.memory_space<vmem>>, vector<2x16xf32>
    tpu.vector_store %arg21[%c0_132, %c0_133], %524 {strides = array<i32>} : memref<2x16xf32, #tpu.memory_space<vmem>>, vector<2x16xf32>,
    return
  }
}

</mosaic_0001>

<llo_original>
// kernel: tpu_custom_call.1
$region0: #{tpu_custom_call.1}
  #allocation0 [shape = 'u32[]', space=smem, size = 0x4, offset = 0x4, fixed_abs, tag = 'smem constant byte address 0x4 - core index']
  #allocation1 [shape = 'u32[144,128]{1,0:T(1,128)}', space=vmem, size = 0x12000, scoped, tag = 'internal scratch']
  %s0 = inlined_call_operand.hbm [shape: f32[16,16], index: 0, kind: input, shape index: {}]
  %s1 = inlined_call_operand.hbm [shape: f32[16,16], index: 1, kind: input, shape index: {}]
  %s2 = inlined_call_operand.vmem [shape: f32[2,8,4], index: 2, kind: input, shape index: {}]
  %s3 = inlined_call_operand.hbm [shape: f32[16,32], index: 3, kind: input, shape index: {}]
  %s4 = inlined_call_operand.hbm [shape: f32[2,32], index: 4, kind: input, shape index: {}]
  %s5 = inlined_call_operand.hbm [shape: f32[2,16], index: 5, kind: input, shape index: {}]
  %s6 = inlined_call_operand.vmem [shape: f32[1,16], index: 6, kind: input, shape index: {}]
  %s7 = inlined_call_operand.hbm [shape: f32[16,32], index: 7, kind: input, shape index: {}]
  %s8 = inlined_call_operand.hbm [shape: f32[2,32], index: 8, kind: input, shape index: {}]
  %s9 = inlined_call_operand.hbm [shape: f32[2,16], index: 9, kind: input, shape index: {}]
  %s10 = inlined_call_operand.hbm [shape: f32[1,16], index: 10, kind: input, shape index: {}]
  %s11 = inlined_call_operand.hbm [shape: f32[2,8,16], index: 11, kind: input, shape index: {}]
  %s12 = inlined_call_operand.hbm [shape: f32[2,8,128], index: 12, kind: input, shape index: {}]
  %s13 = inlined_call_operand.vmem [shape: f32[4,128], index: 13, kind: input, shape index: {}]
  %s14 = inlined_call_operand.vmem [shape: f32[1,128], index: 14, kind: input, shape index: {}]
  %s15 = inlined_call_operand.vmem [shape: f32[32,128], index: 15, kind: input, shape index: {}]
  %s16 = inlined_call_operand.vmem [shape: f32[32,128], index: 16, kind: input, shape index: {}]
  %s17 = inlined_call_operand.vmem [shape: f32[32,128], index: 17, kind: input, shape index: {}]
  %s18 = inlined_call_operand.vmem [shape: f32[1,128], index: 18, kind: input, shape index: {}]
  %s19 = inlined_call_operand.vmem [shape: f32[32,16], index: 19, kind: input, shape index: {}]
  %s20 = inlined_call_operand.vmem [shape: f32[1,16], index: 20, kind: input, shape index: {}]
  %s21 = inlined_call_operand.hbm [shape: f32[2,16], index: 21, kind: output, shape index: {}]
  %s22 = sld [smem:[#allocation0]]
  $region138: #{tpu_custom_call.1} parent=0
    _
  %s24 = ssub.s32 1, %s22
  %s25 = scalar_select 0, %s24, %s22
  $region1: #{tpu_custom_call.1} parent=0
    #allocation2 [shape = 'u8[8192]{0}', space=vmem, size = 0x2000, scoped, tag = 'input window, operand 0, single buffered']
    #allocation3 [shape = 's32[1]{0}', space=sflag, size = 0x4, scoped, tag = 'scoped memory for tpu_custom_call.1']
    #allocation4 [shape = 's32[1]{0}', space=sflag, size = 0x4, scoped, tag = 'scoped memory for tpu_custom_call.1']
    #allocation5 [shape = 'u8[8192]{0}', space=vmem, size = 0x2000, scoped, tag = 'input window, operand 1, single buffered']
    #allocation6 [shape = 's32[1]{0}', space=sflag, size = 0x4, scoped, tag = 'scoped memory for tpu_custom_call.1']
    #allocation7 [shape = 'u8[8192]{0}', space=vmem, size = 0x2000, scoped, tag = 'input window, operand 3, single buffered']
    #allocation8 [shape = 'u8[1024]{0}', space=vmem, size = 0x400, scoped, tag = 'input window, operand 4, single buffered']
    #allocation9 [shape = 's32[1]{0}', space=sflag, size = 0x4, scoped, tag = 'scoped memory for tpu_custom_call.1']
    #allocation10 [shape = 'u8[1024]{0}', space=vmem, size = 0x400, scoped, tag = 'input window, operand 5, single buffered']
    #allocation11 [shape = 'u8[8192]{0}', space=vmem, size = 0x2000, scoped, tag = 'input window, operand 7, single buffered']
    #allocation12 [shape = 's32[1]{0}', space=sflag, size = 0x4, scoped, tag = 'scoped memory for tpu_custom_call.1']
    #allocation13 [shape = 'u8[1024]{0}', space=vmem, size = 0x400, scoped, tag = 'input window, operand 8, single buffered']
    #allocation14 [shape = 'u8[1024]{0}', space=vmem, size = 0x400, scoped, tag = 'input window, operand 9, single buffered']
    #allocation15 [shape = 's32[1]{0}', space=sflag, size = 0x4, scoped, tag = 'scoped memory for tpu_custom_call.1']
    #allocation16 [shape = 'u8[512]{0}', space=vmem, size = 0x400, scoped, tag = 'input window, operand 10, single buffered']
    #allocation17 [shape = 'u8[8192]{0}', space=vmem, size = 0x2000, scoped, tag = 'input window, operand 11, single buffered']
    #allocation18 [shape = 's32[1]{0}', space=sflag, size = 0x4, scoped, tag = 'scoped memory for tpu_custom_call.1']
    #allocation19 [shape = 'u8[8192]{0}', space=vmem, size = 0x2000, scoped, tag = 'input window, operand 12, single buffered']
    #allocation20 [shape = 'u8[1024]{0}', space=vmem, size = 0x400, scoped, tag = 'output window, operand 0, single buffered']
    %26 = vsyncpa [#allocation3], 0
    %27 = vsyncpa [#allocation6], 0
    %28 = vsyncpa [#allocation9], 0
    %29 = vsyncpa [#allocation12], 0
    %30 = vsyncpa [#allocation15], 0
    %31 = vsyncpa [#allocation18], 0
    %32 = vsyncpa [#allocation4], 0
    // Predicated region
    $region2: #{tpu_custom_call.1} parent=1 // pred_check
      _
    $region3: #{tpu_custom_call.1} parent=1 // pred_check_branch
      %34 = sbr.rel (0) target = $region5
    $region4: #{tpu_custom_call.1} parent=1 // pred_region
      %s36 = ssub.s32 256, 256
      %37 = vsyncadd [#allocation3], %s36
      %s38 = sshll.u32 [#allocation2], 4
      %s39 = int_to_ptr.vmem [resolvable:$true] %s38
      %44 = dma.hbm_to_vmem [thread:$0]  %s0, 256, %s39, [#allocation3], 128, 128, 8
    $region5: #{tpu_custom_call.1} parent=1 // pred_fallthru
      _
    // Predicated region
    $region6: #{tpu_custom_call.1} parent=1 // pred_check
      _
    $region7: #{tpu_custom_call.1} parent=1 // pred_check_branch
      %46 = sbr.rel (0) target = $region9
    $region8: #{tpu_custom_call.1} parent=1 // pred_region
      %s48 = ssub.s32 256, 256
      %49 = vsyncadd [#allocation6], %s48
      %s50 = sshll.u32 [#allocation5], 4
      %s51 = int_to_ptr.vmem [resolvable:$true] %s50
      %56 = dma.hbm_to_vmem [thread:$0]  %s1, 256, %s51, [#allocation6], 128, 128, 8
    $region9: #{tpu_custom_call.1} parent=1 // pred_fallthru
      _
    // Predicated region
    $region10: #{tpu_custom_call.1} parent=1 // pred_check
      _
    $region11: #{tpu_custom_call.1} parent=1 // pred_check_branch
      %58 = sbr.rel (0) target = $region13
    $region12: #{tpu_custom_call.1} parent=1 // pred_region
      _
    $region13: #{tpu_custom_call.1} parent=1 // pred_fallthru
      _
    // Predicated region
    $region14: #{tpu_custom_call.1} parent=1 // pred_check
      _
    $region15: #{tpu_custom_call.1} parent=1 // pred_check_branch
      %60 = sbr.rel (0) target = $region17
    $region16: #{tpu_custom_call.1} parent=1 // pred_region
      %s62 = ssub.s32 256, 256
      %63 = vsyncadd [#allocation6], %s62
      %s64 = sshll.u32 [#allocation7], 4
      %s65 = int_to_ptr.vmem [resolvable:$true] %s64
      %70 = dma.hbm_to_vmem [thread:$0]  %s3, 256, %s65, [#allocation6], 128, 128, 8
    $region17: #{tpu_custom_call.1} parent=1 // pred_fallthru
      _
    // Predicated region
    $region18: #{tpu_custom_call.1} parent=1 // pred_check
      _
    $region19: #{tpu_custom_call.1} parent=1 // pred_check_branch
      %72 = sbr.rel (0) target = $region21
    $region20: #{tpu_custom_call.1} parent=1 // pred_region
      %s74 = ssub.s32 32, 32
      %75 = vsyncadd [#allocation9], %s74
      %s77 = sshll.u32 [#allocation8], 4
      %s78 = int_to_ptr.vmem [resolvable:$true] %s77
      %80 = dma.hbm_to_vmem [thread:$0]  %s4, 32, %s78, [#allocation9]
    $region21: #{tpu_custom_call.1} parent=1 // pred_fallthru
      _
    // Predicated region
    $region22: #{tpu_custom_call.1} parent=1 // pred_check
      _
    $region23: #{tpu_custom_call.1} parent=1 // pred_check_branch
      %82 = sbr.rel (0) target = $region25
    $region24: #{tpu_custom_call.1} parent=1 // pred_region
      %s84 = ssub.s32 32, 32
      %85 = vsyncadd [#allocation9], %s84
      %s87 = sshll.u32 [#allocation10], 4
      %s88 = int_to_ptr.vmem [resolvable:$true] %s87
      %90 = dma.hbm_to_vmem [thread:$0]  %s5, 32, %s88, [#allocation9]
    $region25: #{tpu_custom_call.1} parent=1 // pred_fallthru
      _
    // Predicated region
    $region26: #{tpu_custom_call.1} parent=1 // pred_check
      _
    $region27: #{tpu_custom_call.1} parent=1 // pred_check_branch
      %92 = sbr.rel (0) target = $region29
    $region28: #{tpu_custom_call.1} parent=1 // pred_region
      _
    $region29: #{tpu_custom_call.1} parent=1 // pred_fallthru
      _
    // Predicated region
    $region30: #{tpu_custom_call.1} parent=1 // pred_check
      _
    $region31: #{tpu_custom_call.1} parent=1 // pred_check_branch
      %94 = sbr.rel (0) target = $region33
    $region32: #{tpu_custom_call.1} parent=1 // pred_region
      %s96 = ssub.s32 256, 256
      %97 = vsyncadd [#allocation12], %s96
      %s98 = sshll.u32 [#allocation11], 4
      %s99 = int_to_ptr.vmem [resolvable:$true] %s98
      %104 = dma.hbm_to_vmem [thread:$0]  %s7, 256, %s99, [#allocation12], 128, 128, 8
    $region33: #{tpu_custom_call.1} parent=1 // pred_fallthru
      _
    // Predicated region
    $region34: #{tpu_custom_call.1} parent=1 // pred_check
      _
    $region35: #{tpu_custom_call.1} parent=1 // pred_check_branch
      %106 = sbr.rel (0) target = $region37
    $region36: #{tpu_custom_call.1} parent=1 // pred_region
      %s108 = ssub.s32 32, 32
      %109 = vsyncadd [#allocation12], %s108
      %s111 = sshll.u32 [#allocation13], 4
      %s112 = int_to_ptr.vmem [resolvable:$true] %s111
      %114 = dma.hbm_to_vmem [thread:$0]  %s8, 32, %s112, [#allocation12]
    $region37: #{tpu_custom_call.1} parent=1 // pred_fallthru
      _
    // Predicated region
    $region38: #{tpu_custom_call.1} parent=1 // pred_check
      _
    $region39: #{tpu_custom_call.1} parent=1 // pred_check_branch
      %116 = sbr.rel (0) target = $region41
    $region40: #{tpu_custom_call.1} parent=1 // pred_region
      %s118 = ssub.s32 32, 32
      %119 = vsyncadd [#allocation15], %s118
      %s121 = sshll.u32 [#allocation14], 4
      %s122 = int_to_ptr.vmem [resolvable:$true] %s121
      %124 = dma.hbm_to_vmem [thread:$0]  %s9, 32, %s122, [#allocation15]
    $region41: #{tpu_custom_call.1} parent=1 // pred_fallthru
      _
    // Predicated region
    $region42: #{tpu_custom_call.1} parent=1 // pred_check
      _
    $region43: #{tpu_custom_call.1} parent=1 // pred_check_branch
      %126 = sbr.rel (0) target = $region45
    $region44: #{tpu_custom_call.1} parent=1 // pred_region
      %s128 = ssub.s32 16, 16
      %129 = vsyncadd [#allocation15], %s128
      %s131 = sshll.u32 [#allocation16], 4
      %s132 = int_to_ptr.vmem [resolvable:$true] %s131
      %134 = dma.hbm_to_vmem [thread:$0]  %s10, 16, %s132, [#allocation15]
    $region45: #{tpu_custom_call.1} parent=1 // pred_fallthru
      _
    // Predicated region
    $region46: #{tpu_custom_call.1} parent=1 // pred_check
      _
    $region47: #{tpu_custom_call.1} parent=1 // pred_check_branch
      %136 = sbr.rel (0) target = $region49
    $region48: #{tpu_custom_call.1} parent=1 // pred_region
      %s138 = ssub.s32 256, 256
      %139 = vsyncadd [#allocation18], %s138
      %s140 = sshll.u32 [#allocation17], 4
      %s141 = int_to_ptr.vmem [resolvable:$true] %s140
      %146 = dma.hbm_to_vmem [thread:$0]  %s11, 256, %s141, [#allocation18], 128, 128, 8
    $region49: #{tpu_custom_call.1} parent=1 // pred_fallthru
      _
    // Predicated region
    $region50: #{tpu_custom_call.1} parent=1 // pred_check
      _
    $region51: #{tpu_custom_call.1} parent=1 // pred_check_branch
      %148 = sbr.rel (0) target = $region53
    $region52: #{tpu_custom_call.1} parent=1 // pred_region
      %s150 = ssub.s32 256, 256
      %151 = vsyncadd [#allocation18], %s150
      %s152 = sshll.u32 [#allocation19], 4
      %s153 = int_to_ptr.vmem [resolvable:$true] %s152
      %158 = dma.hbm_to_vmem [thread:$0]  %s12, 256, %s153, [#allocation18], 128, 128, 8
    $region53: #{tpu_custom_call.1} parent=1 // pred_fallthru
      _
    // Predicated region
    $region54: #{tpu_custom_call.1} parent=1 // pred_check
      _
    $region55: #{tpu_custom_call.1} parent=1 // pred_check_branch
      %160 = sbr.rel (0) target = $region57
    $region56: #{tpu_custom_call.1} parent=1 // pred_region
      _
    $region57: #{tpu_custom_call.1} parent=1 // pred_fallthru
      _
    // Predicated region
    $region58: #{tpu_custom_call.1} parent=1 // pred_check
      _
    $region59: #{tpu_custom_call.1} parent=1 // pred_check_branch
      %162 = sbr.rel (0) target = $region61
    $region60: #{tpu_custom_call.1} parent=1 // pred_region
      _
    $region61: #{tpu_custom_call.1} parent=1 // pred_fallthru
      _
    // Predicated region
    $region62: #{tpu_custom_call.1} parent=1 // pred_check
      _
    $region63: #{tpu_custom_call.1} parent=1 // pred_check_branch
      %164 = sbr.rel (0) target = $region65
    $region64: #{tpu_custom_call.1} parent=1 // pred_region
      _
    $region65: #{tpu_custom_call.1} parent=1 // pred_fallthru
      _
    // Predicated region
    $region66: #{tpu_custom_call.1} parent=1 // pred_check
      _
    $region67: #{tpu_custom_call.1} parent=1 // pred_check_branch
      %166 = sbr.rel (0) target = $region69
    $region68: #{tpu_custom_call.1} parent=1 // pred_region
      _
    $region69: #{tpu_custom_call.1} parent=1 // pred_fallthru
      _
    // Predicated region
    $region70: #{tpu_custom_call.1} parent=1 // pred_check
      _
    $region71: #{tpu_custom_call.1} parent=1 // pred_check_branch
      %168 = sbr.rel (0) target = $region73
    $region72: #{tpu_custom_call.1} parent=1 // pred_region
      _
    $region73: #{tpu_custom_call.1} parent=1 // pred_fallthru
      _
    // Predicated region
    $region74: #{tpu_custom_call.1} parent=1 // pred_check
      _
    $region75: #{tpu_custom_call.1} parent=1 // pred_check_branch
      %170 = sbr.rel (0) target = $region77
    $region76: #{tpu_custom_call.1} parent=1 // pred_region
      _
    $region77: #{tpu_custom_call.1} parent=1 // pred_fallthru
      _
    // Predicated region
    $region78: #{tpu_custom_call.1} parent=1 // pred_check
      _
    $region79: #{tpu_custom_call.1} parent=1 // pred_check_branch
      %172 = sbr.rel (0) target = $region81
    $region80: #{tpu_custom_call.1} parent=1 // pred_region
      _
    $region81: #{tpu_custom_call.1} parent=1 // pred_fallthru
      _
    // Predicated region
    $region82: #{tpu_custom_call.1} parent=1 // pred_check
      _
    $region83: #{tpu_custom_call.1} parent=1 // pred_check_branch
      %174 = sbr.rel (0) target = $region85
    $region84: #{tpu_custom_call.1} parent=1 // pred_region
      _
    $region85: #{tpu_custom_call.1} parent=1 // pred_fallthru
      _
    // Predicated region
    $region86: #{tpu_custom_call.1} parent=1 // pred_check
      _
    $region87: #{tpu_custom_call.1} parent=1 // pred_check_branch
      %176 = sbr.rel (0) target = $region89
    $region88: #{tpu_custom_call.1} parent=1 // pred_region
      %177 = dma.done [#allocation3], 256
    $region89: #{tpu_custom_call.1} parent=1 // pred_fallthru
      _
    // Predicated region
    $region90: #{tpu_custom_call.1} parent=1 // pred_check
      _
    $region91: #{tpu_custom_call.1} parent=1 // pred_check_branch
      %179 = sbr.rel (0) target = $region93
    $region92: #{tpu_custom_call.1} parent=1 // pred_region
      %180 = dma.done [#allocation6], 256
    $region93: #{tpu_custom_call.1} parent=1 // pred_fallthru
      _
    // Predicated region
    $region94: #{tpu_custom_call.1} parent=1 // pred_check
      _
    $region95: #{tpu_custom_call.1} parent=1 // pred_check_branch
      %182 = sbr.rel (0) target = $region97
    $region96: #{tpu_custom_call.1} parent=1 // pred_region
      %183 = dma.done [#allocation6], 256
    $region97: #{tpu_custom_call.1} parent=1 // pred_fallthru
      _
    // Predicated region
    $region98: #{tpu_custom_call.1} parent=1 // pred_check
      _
    $region99: #{tpu_custom_call.1} parent=1 // pred_check_branch
      %185 = sbr.rel (0) target = $region101
    $region100: #{tpu_custom_call.1} parent=1 // pred_region
      %186 = dma.done [#allocation9], 32
    $region101: #{tpu_custom_call.1} parent=1 // pred_fallthru
      _
    // Predicated region
    $region102: #{tpu_custom_call.1} parent=1 // pred_check
      _
    $region103: #{tpu_custom_call.1} parent=1 // pred_check_branch
      %188 = sbr.rel (0) target = $region105
    $region104: #{tpu_custom_call.1} parent=1 // pred_region
      %189 = dma.done [#allocation9], 32
    $region105: #{tpu_custom_call.1} parent=1 // pred_fallthru
      _
    // Predicated region
    $region106: #{tpu_custom_call.1} parent=1 // pred_check
      _
    $region107: #{tpu_custom_call.1} parent=1 // pred_check_branch
      %191 = sbr.rel (0) target = $region109
    $region108: #{tpu_custom_call.1} parent=1 // pred_region
      %192 = dma.done [#allocation12], 256
    $region109: #{tpu_custom_call.1} parent=1 // pred_fallthru
      _
    // Predicated region
    $region110: #{tpu_custom_call.1} parent=1 // pred_check
      _
    $region111: #{tpu_custom_call.1} parent=1 // pred_check_branch
      %194 = sbr.rel (0) target = $region113
    $region112: #{tpu_custom_call.1} parent=1 // pred_region
      %195 = dma.done [#allocation12], 32
    $region113: #{tpu_custom_call.1} parent=1 // pred_fallthru
      _
    // Predicated region
    $region114: #{tpu_custom_call.1} parent=1 // pred_check
      _
    $region115: #{tpu_custom_call.1} parent=1 // pred_check_branch
      %197 = sbr.rel (0) target = $region117
    $region116: #{tpu_custom_call.1} parent=1 // pred_region
      %198 = dma.done [#allocation15], 32
    $region117: #{tpu_custom_call.1} parent=1 // pred_fallthru
      _
    // Predicated region
    $region118: #{tpu_custom_call.1} parent=1 // pred_check
      _
    $region119: #{tpu_custom_call.1} parent=1 // pred_check_branch
      %200 = sbr.rel (0) target = $region121
    $region120: #{tpu_custom_call.1} parent=1 // pred_region
      %201 = dma.done [#allocation15], 16
    $region121: #{tpu_custom_call.1} parent=1 // pred_fallthru
      _
    // Predicated region
    $region122: #{tpu_custom_call.1} parent=1 // pred_check
      _
    $region123: #{tpu_custom_call.1} parent=1 // pred_check_branch
      %203 = sbr.rel (0) target = $region125
    $region124: #{tpu_custom_call.1} parent=1 // pred_region
      %204 = dma.done [#allocation18], 256
    $region125: #{tpu_custom_call.1} parent=1 // pred_fallthru
      _
    // Predicated region
    $region126: #{tpu_custom_call.1} parent=1 // pred_check
      _
    $region127: #{tpu_custom_call.1} parent=1 // pred_check_branch
      %206 = sbr.rel (0) target = $region129
    $region128: #{tpu_custom_call.1} parent=1 // pred_region
      %207 = dma.done [#allocation18], 256
    $region129: #{tpu_custom_call.1} parent=1 // pred_fallthru
      _
    %v208 = vld [vmem:[#allocation2] sm:$0xff]
    %v209 = vld [vmem:[#allocation2 + $0x8] sm:$0xff]
    %v210 = vld [vmem:[#allocation5] sm:$0xff]
    %v211 = vld [vmem:[#allocation5 + $0x8] sm:$0xff]
    %v212 = vld [vmem:[#allocation7] sm:$0xff]
    %v213 = vld [vmem:[#allocation7 + $0x8] sm:$0xff]
    %v214 = vld [vmem:[#allocation8] sm:$0x3]
    %v215 = vld [vmem:[#allocation10] sm:$0x3]
    %v216 = vld [vmem:[%s6] sm:$0x1]
    %vm217 = vcmask 130048
    %v219 = vsel %vm217, %v208, 0
    %v222 = vsel %vm217, %v209, 0
    %224 = vmatprep.subr.mxu0 0.0
    %225 = vmatpush1.msra.mxu0 %v212
    %226 = vmatprep.subr.mxu0 0.0
    %227 = vmatpush1.msra.mxu0 %v213
    %228 = vmatprep.subr.mxu0 0.0
    %229 = vmatpush1.msra.mxu0 0.0
    %230 = vmatprep.subr.mxu0 0.0
    %231 = vmatpush1.msra.mxu0 0.0
    %232 = vmatprep.subr.mxu0 0.0
    %233 = vmatpush1.msra.mxu0 0.0
    %234 = vmatprep.subr.mxu0 0.0
    %235 = vmatpush1.msra.mxu0 0.0
    %236 = vmatprep.subr.mxu0 0.0
    %237 = vmatpush1.msra.mxu0 0.0
    %238 = vmatprep.subr.mxu0 0.0
    %239 = vmatpush1.msra.mxu0 0.0
    %240 = vmatprep.subr.mxu0 0.0
    %241 = vmatpush1.msra.mxu0 0.0
    %242 = vmatprep.subr.mxu0 0.0
    %243 = vmatpush1.msra.mxu0 0.0
    %244 = vmatprep.subr.mxu0 0.0
    %245 = vmatpush1.msra.mxu0 0.0
    %246 = vmatprep.subr.mxu0 0.0
    %247 = vmatpush1.msra.mxu0 0.0
    %248 = vmatprep.subr.mxu0 0.0
    %249 = vmatpush1.msra.mxu0 0.0
    %250 = vmatprep.subr.mxu0 0.0
    %251 = vmatpush1.msra.mxu0 0.0
    %252 = vmatprep.subr.mxu0 0.0
    %253 = vmatpush1.msra.mxu0 0.0
    %254 = vmatprep.subr.mxu0 0.0
    %255 = vmatpush1.msra.mxu0 0.0
    %256 = vmatprep.subr.mxu0 0.0
    %257 = vmatpush1.msra.mxu0 0.0
    %258 = vmatprep.subr.mxu0 0.0
    %259 = vmatpush1.msra.mxu0 0.0
    %260 = vmatprep.subr.mxu0 0.0
    %261 = vmatpush1.msra.mxu0 0.0
    %262 = vmatprep.subr.mxu0 0.0
    %263 = vmatpush1.msra.mxu0 0.0
    %264 = vmatprep.subr.mxu0 0.0
    %265 = vmatpush1.msra.mxu0 0.0
    %266 = vmatprep.subr.mxu0 0.0
    %267 = vmatpush1.msra.mxu0 0.0
    %268 = vmatprep.subr.mxu0 0.0
    %269 = vmatpush1.msra.mxu0 0.0
    %270 = vmatprep.subr.mxu0 0.0
    %271 = vmatpush1.msra.mxu0 0.0
    %272 = vmatprep.subr.mxu0 0.0
    %273 = vmatpush1.msra.mxu0 0.0
    %274 = vmatprep.subr.mxu0 0.0
    %275 = vmatpush1.msra.mxu0 0.0
    %276 = vmatprep.subr.mxu0 0.0
    %277 = vmatpush1.msra.mxu0 0.0
    %278 = vmatprep.subr.mxu0 0.0
    %279 = vmatpush1.msra.mxu0 0.0
    %280 = vmatprep.subr.mxu0 0.0
    %281 = vmatpush1.msra.mxu0 0.0
    %282 = vmatprep.subr.mxu0 0.0
    %283 = vmatpush1.msra.mxu0 0.0
    %284 = vmatprep.subr.mxu0 0.0
    %285 = vmatpush1.msra.mxu0 0.0
    %286 = vmatprep.subr.mxu0 0.0
    %287 = vmatpush1.msra.mxu0 0.0
    %288 = vmatprep.mubr.f32.mxu0 0.0
    %289 = vmatmul.mubr.f32.gmra.mrb[0].mxu0 %v219
    %v290 = vpop.f32.mrb[0].mxu0
    %v291 = vadd.f32 0.0, %v290
    %v292 = vpop.f32.mrb[0].mxu0
    %293 = vmatprep.mubr.f32.mxu0 0.0
    %294 = vmatmul.mubr.f32.gmra.mrb[0].mxu0 %v222
    %v295 = vpop.f32.mrb[0].mxu0
    %v296 = vadd.f32 0.0, %v295
    %v297 = vpop.f32.mrb[0].mxu0
    %298 = vdwg.mxu0
    %vm299 = vcmask 261120
    %v301 = vsel %vm299, %v214, 0
    %v304 = vsel %vm299, %v291, 0
    %v307 = vsel %vm299, %v296, 0
    %309 = vmatprep.subr.mxu0 0.0
    %310 = vmatpush1.xpose.msra.mxu0 %v304
    %311 = vmatprep.subr.mxu0 0.0
    %312 = vmatpush1.xpose.msra.mxu0 %v307
    %313 = vmatprep.subr.mxu0 0.0
    %314 = vmatpush1.xpose.msra.mxu0 0.0
    %315 = vmatprep.subr.mxu0 0.0
    %316 = vmatpush1.xpose.msra.mxu0 0.0
    %317 = vmatprep.subr.mxu0 0.0
    %318 = vmatpush1.xpose.msra.mxu0 0.0
    %319 = vmatprep.subr.mxu0 0.0
    %320 = vmatpush1.xpose.msra.mxu0 0.0
    %321 = vmatprep.subr.mxu0 0.0
    %322 = vmatpush1.xpose.msra.mxu0 0.0
    %323 = vmatprep.subr.mxu0 0.0
    %324 = vmatpush1.xpose.msra.mxu0 0.0
    %325 = vmatprep.subr.mxu0 0.0
    %326 = vmatpush1.xpose.msra.mxu0 0.0
    %327 = vmatprep.subr.mxu0 0.0
    %328 = vmatpush1.xpose.msra.mxu0 0.0
    %329 = vmatprep.subr.mxu0 0.0
    %330 = vmatpush1.xpose.msra.mxu0 0.0
    %331 = vmatprep.subr.mxu0 0.0
    %332 = vmatpush1.xpose.msra.mxu0 0.0
    %333 = vmatprep.subr.mxu0 0.0
    %334 = vmatpush1.xpose.msra.mxu0 0.0
    %335 = vmatprep.subr.mxu0 0.0
    %336 = vmatpush1.xpose.msra.mxu0 0.0
    %337 = vmatprep.subr.mxu0 0.0
    %338 = vmatpush1.xpose.msra.mxu0 0.0
    %339 = vmatprep.subr.mxu0 0.0
    %340 = vmatpush1.xpose.msra.mxu0 0.0
    %341 = vmatprep.subr.mxu0 0.0
    %342 = vmatpush1.xpose.msra.mxu0 0.0
    %343 = vmatprep.subr.mxu0 0.0
    %344 = vmatpush1.xpose.msra.mxu0 0.0
    %345 = vmatprep.subr.mxu0 0.0
    %346 = vmatpush1.xpose.msra.mxu0 0.0
    %347 = vmatprep.subr.mxu0 0.0
    %348 = vmatpush1.xpose.msra.mxu0 0.0
    %349 = vmatprep.subr.mxu0 0.0
    %350 = vmatpush1.xpose.msra.mxu0 0.0
    %351 = vmatprep.subr.mxu0 0.0
    %352 = vmatpush1.xpose.msra.mxu0 0.0
    %353 = vmatprep.subr.mxu0 0.0
    %354 = vmatpush1.xpose.msra.mxu0 0.0
    %355 = vmatprep.subr.mxu0 0.0
    %356 = vmatpush1.xpose.msra.mxu0 0.0
    %357 = vmatprep.subr.mxu0 0.0
    %358 = vmatpush1.xpose.msra.mxu0 0.0
    %359 = vmatprep.subr.mxu0 0.0
    %360 = vmatpush1.xpose.msra.mxu0 0.0
    %361 = vmatprep.subr.mxu0 0.0
    %362 = vmatpush1.xpose.msra.mxu0 0.0
    %363 = vmatprep.subr.mxu0 0.0
    %364 = vmatpush1.xpose.msra.mxu0 0.0
    %365 = vmatprep.subr.mxu0 0.0
    %366 = vmatpush1.xpose.msra.mxu0 0.0
    %367 = vmatprep.subr.mxu0 0.0
    %368 = vmatpush1.xpose.msra.mxu0 0.0
    %369 = vmatprep.subr.mxu0 0.0
    %370 = vmatpush1.xpose.msra.mxu0 0.0
    %371 = vmatprep.subr.mxu0 0.0
    %372 = vmatpush1.xpose.msra.mxu0 0.0
    %373 = vmatprep.mubr.f32.mxu0 0.0
    %374 = vmatmul.mubr.f32.gmra.mrb[0].mxu0 %v301
    %v375 = vpop.f32.mrb[0].mxu0
    %v376 = vadd.f32 0.0, %v375
    %v377 = vpop.f32.mrb[0].mxu0
    %378 = vdwg.mxu0
    %v379 = vlaneseq
    %v380 = vshrl.u32 %v379, 7
    %v381 = vsub.s32 0, %v380
    %v382 = vrot.slane %v215, %v381
    %v383 = vmul.f32 %v291, %v382
    %v384 = vmul.f32 %v296, %v382
    %v385 = vsel %vm217, %v383, 0.0
    %386 = vadd.xlane.f32.xlu0 %v385
    %v387 = vpop.xlane.xlu0 %386
    %v388 = vsel %vm217, %v384, 0.0
    %389 = vadd.xlane.f32.xlu0 %v388
    %v390 = vpop.xlane.xlu0 %389
    %v391 = vlaneseq
    %v392 = vshrl.u32 %v391, 7
    %v393 = vsub.s32 0, %v392
    %v394 = vrot.slane %v376, %v393
    %v395 = vadd.f32 %v387, %v394
    %v396 = vadd.f32 %v390, %v394
    %vm397 = vcmp.gt.f32.partialorder %v395, 0.0
    %vm398 = vcmp.gt.f32.partialorder %v396, 0.0
    %v399 = vmul.f32 %v395, 0.2
    %v400 = vmul.f32 %v396, 0.2
    %v401 = vsel %vm397, %v395, %v399
    %v402 = vsel %vm398, %v396, %v400
    %v403 = vadd.f32 %v401, %v210
    %v404 = vadd.f32 %v402, %v211
    %v405 = vsel %vm217, %v403, -inf
    %406 = vmax.xlane.f32.xlu0 %v405
    %v407 = vpop.xlane.xlu0 %406
    %v408 = vsel %vm217, %v404, -inf
    %409 = vmax.xlane.f32.xlu0 %v408
    %v410 = vpop.xlane.xlu0 %409
    %v411 = vsub.f32 %v403, %v407
    %v412 = vsub.f32 %v404, %v410
    %v413 = vmul.f32 %v411, 1.442695
    %v414 = vpow.pop %v413
    %v415 = vmul.f32 %v412, 1.442695
    %v416 = vpow.pop %v415
    %v417 = vsel %vm217, %v414, 0.0
    %418 = vadd.xlane.f32.xlu0 %v417
    %v419 = vpop.xlane.xlu0 %418
    %v420 = vsel %vm217, %v416, 0.0
    %421 = vadd.xlane.f32.xlu0 %v420
    %v422 = vpop.xlane.xlu0 %421
    %v423 = vrcp.pop %v419
    %v424 = vrcp.pop %v422
    %v425 = vmul.f32 %v414, %v423
    %v426 = vmul.f32 %v416, %v424
    %v427 = vlaneseq
    %v428 = vshrl.u32 %v427, 7
    %v429 = vsub.s32 1, %v428
    %v430 = vrot.slane %v215, %v429
    %432 = vrot.lane.b32.xlu0 %v430, 16
    %v433 = vpop.permute.xlu0 %432
    %v435 = vmul.f32 %v291, %v433
    %v436 = vmul.f32 %v296, %v433
    %439 = vrot.lane.b32.xlu0 %v435, 112
    %v440 = vpop.permute.xlu0 %439
    %441 = vrot.lane.b32.xlu0 %v436, 112
    %v442 = vpop.permute.xlu0 %441
    %v445 = vsel %vm217, %v440, 0.0
    %446 = vadd.xlane.f32.xlu0 %v445
    %v447 = vpop.xlane.xlu0 %446
    %v448 = vsel %vm217, %v442, 0.0
    %449 = vadd.xlane.f32.xlu0 %v448
    %v450 = vpop.xlane.xlu0 %449
    %v451 = vlaneseq
    %v452 = vshrl.u32 %v451, 7
    %v453 = vsub.s32 1, %v452
    %v454 = vrot.slane %v376, %v453
    %v455 = vadd.f32 %v447, %v454
    %v456 = vadd.f32 %v450, %v454
    %vm457 = vcmp.gt.f32.partialorder %v455, 0.0
    %vm458 = vcmp.gt.f32.partialorder %v456, 0.0
    %v459 = vmul.f32 %v455, 0.2
    %v460 = vmul.f32 %v456, 0.2
    %v461 = vsel %vm457, %v455, %v459
    %v462 = vsel %vm458, %v456, %v460
    %v463 = vadd.f32 %v461, %v210
    %v464 = vadd.f32 %v462, %v211
    %v465 = vsel %vm217, %v463, -inf
    %466 = vmax.xlane.f32.xlu0 %v465
    %v467 = vpop.xlane.xlu0 %466
    %v468 = vsel %vm217, %v464, -inf
    %469 = vmax.xlane.f32.xlu0 %v468
    %v470 = vpop.xlane.xlu0 %469
    %v471 = vsub.f32 %v463, %v467
    %v472 = vsub.f32 %v464, %v470
    %v473 = vmul.f32 %v471, 1.442695
    %v474 = vpow.pop %v473
    %v475 = vmul.f32 %v472, 1.442695
    %v476 = vpow.pop %v475
    %v477 = vsel %vm217, %v474, 0.0
    %478 = vadd.xlane.f32.xlu0 %v477
    %v479 = vpop.xlane.xlu0 %478
    %v480 = vsel %vm217, %v476, 0.0
    %481 = vadd.xlane.f32.xlu0 %v480
    %v482 = vpop.xlane.xlu0 %481
    %v483 = vrcp.pop %v479
    %v484 = vrcp.pop %v482
    %v485 = vmul.f32 %v474, %v483
    %v486 = vmul.f32 %v476, %v484
    %487 = vrot.lane.b32.xlu0 %v291, 112
    %v488 = vpop.permute.xlu0 %487
    %489 = vrot.lane.b32.xlu0 %v296, 112
    %v490 = vpop.permute.xlu0 %489
    %v494 = vsel %vm217, %v485, 0
    %v497 = vsel %vm217, %v486, 0
    %499 = vmatprep.subr.mxu0 0.0
    %500 = vmatpush1.msra.mxu0 %v488
    %501 = vmatprep.subr.mxu0 0.0
    %502 = vmatpush1.msra.mxu0 %v490
    %503 = vmatprep.subr.mxu0 0.0
    %504 = vmatpush1.msra.mxu0 0.0
    %505 = vmatprep.subr.mxu0 0.0
    %506 = vmatpush1.msra.mxu0 0.0
    %507 = vmatprep.subr.mxu0 0.0
    %508 = vmatpush1.msra.mxu0 0.0
    %509 = vmatprep.subr.mxu0 0.0
    %510 = vmatpush1.msra.mxu0 0.0
    %511 = vmatprep.subr.mxu0 0.0
    %512 = vmatpush1.msra.mxu0 0.0
    %513 = vmatprep.subr.mxu0 0.0
    %514 = vmatpush1.msra.mxu0 0.0
    %515 = vmatprep.subr.mxu0 0.0
    %516 = vmatpush1.msra.mxu0 0.0
    %517 = vmatprep.subr.mxu0 0.0
    %518 = vmatpush1.msra.mxu0 0.0
    %519 = vmatprep.subr.mxu0 0.0
    %520 = vmatpush1.msra.mxu0 0.0
    %521 = vmatprep.subr.mxu0 0.0
    %522 = vmatpush1.msra.mxu0 0.0
    %523 = vmatprep.subr.mxu0 0.0
    %524 = vmatpush1.msra.mxu0 0.0
    %525 = vmatprep.subr.mxu0 0.0
    %526 = vmatpush1.msra.mxu0 0.0
    %527 = vmatprep.subr.mxu0 0.0
    %528 = vmatpush1.msra.mxu0 0.0
    %529 = vmatprep.subr.mxu0 0.0
    %530 = vmatpush1.msra.mxu0 0.0
    %531 = vmatprep.subr.mxu0 0.0
    %532 = vmatpush1.msra.mxu0 0.0
    %533 = vmatprep.subr.mxu0 0.0
    %534 = vmatpush1.msra.mxu0 0.0
    %535 = vmatprep.subr.mxu0 0.0
    %536 = vmatpush1.msra.mxu0 0.0
    %537 = vmatprep.subr.mxu0 0.0
    %538 = vmatpush1.msra.mxu0 0.0
    %539 = vmatprep.subr.mxu0 0.0
    %540 = vmatpush1.msra.mxu0 0.0
    %541 = vmatprep.subr.mxu0 0.0
    %542 = vmatpush1.msra.mxu0 0.0
    %543 = vmatprep.subr.mxu0 0.0
    %544 = vmatpush1.msra.mxu0 0.0
    %545 = vmatprep.subr.mxu0 0.0
    %546 = vmatpush1.msra.mxu0 0.0
    %547 = vmatprep.subr.mxu0 0.0
    %548 = vmatpush1.msra.mxu0 0.0
    %549 = vmatprep.subr.mxu0 0.0
    %550 = vmatpush1.msra.mxu0 0.0
    %551 = vmatprep.subr.mxu0 0.0
    %552 = vmatpush1.msra.mxu0 0.0
    %553 = vmatprep.subr.mxu0 0.0
    %554 = vmatpush1.msra.mxu0 0.0
    %555 = vmatprep.subr.mxu0 0.0
    %556 = vmatpush1.msra.mxu0 0.0
    %557 = vmatprep.subr.mxu0 0.0
    %558 = vmatpush1.msra.mxu0 0.0
    %559 = vmatprep.subr.mxu0 0.0
    %560 = vmatpush1.msra.mxu0 0.0
    %561 = vmatprep.subr.mxu0 0.0
    %562 = vmatpush1.msra.mxu0 0.0
    %563 = vmatprep.mubr.f32.mxu0 0.0
    %564 = vmatmul.mubr.f32.gmra.mrb[0].mxu0 %v494
    %v565 = vpop.f32.mrb[0].mxu0
    %v566 = vadd.f32 0.0, %v565
    %v567 = vpop.f32.mrb[0].mxu0
    %568 = vmatprep.mubr.f32.mxu0 0.0
    %569 = vmatmul.mubr.f32.gmra.mrb[0].mxu0 %v497
    %v570 = vpop.f32.mrb[0].mxu0
    %v571 = vadd.f32 0.0, %v570
    %v572 = vpop.f32.mrb[0].mxu0
    %573 = vdwg.mxu0
    %v575 = vsel %vm217, %v425, 0
    %v578 = vsel %vm217, %v426, 0
    %580 = vmatprep.subr.mxu0 0.0
    %581 = vmatpush1.msra.mxu0 %v291
    %582 = vmatprep.subr.mxu0 0.0
    %583 = vmatpush1.msra.mxu0 %v296
    %584 = vmatprep.subr.mxu0 0.0
    %585 = vmatpush1.msra.mxu0 0.0
    %586 = vmatprep.subr.mxu0 0.0
    %587 = vmatpush1.msra.mxu0 0.0
    %588 = vmatprep.subr.mxu0 0.0
    %589 = vmatpush1.msra.mxu0 0.0
    %590 = vmatprep.subr.mxu0 0.0
    %591 = vmatpush1.msra.mxu0 0.0
    %592 = vmatprep.subr.mxu0 0.0
    %593 = vmatpush1.msra.mxu0 0.0
    %594 = vmatprep.subr.mxu0 0.0
    %595 = vmatpush1.msra.mxu0 0.0
    %596 = vmatprep.subr.mxu0 0.0
    %597 = vmatpush1.msra.mxu0 0.0
    %598 = vmatprep.subr.mxu0 0.0
    %599 = vmatpush1.msra.mxu0 0.0
    %600 = vmatprep.subr.mxu0 0.0
    %601 = vmatpush1.msra.mxu0 0.0
    %602 = vmatprep.subr.mxu0 0.0
    %603 = vmatpush1.msra.mxu0 0.0
    %604 = vmatprep.subr.mxu0 0.0
    %605 = vmatpush1.msra.mxu0 0.0
    %606 = vmatprep.subr.mxu0 0.0
    %607 = vmatpush1.msra.mxu0 0.0
    %608 = vmatprep.subr.mxu0 0.0
    %609 = vmatpush1.msra.mxu0 0.0
    %610 = vmatprep.subr.mxu0 0.0
    %611 = vmatpush1.msra.mxu0 0.0
    %612 = vmatprep.subr.mxu0 0.0
    %613 = vmatpush1.msra.mxu0 0.0
    %614 = vmatprep.subr.mxu0 0.0
    %615 = vmatpush1.msra.mxu0 0.0
    %616 = vmatprep.subr.mxu0 0.0
    %617 = vmatpush1.msra.mxu0 0.0
    %618 = vmatprep.subr.mxu0 0.0
    %619 = vmatpush1.msra.mxu0 0.0
    %620 = vmatprep.subr.mxu0 0.0
    %621 = vmatpush1.msra.mxu0 0.0
    %622 = vmatprep.subr.mxu0 0.0
    %623 = vmatpush1.msra.mxu0 0.0
    %624 = vmatprep.subr.mxu0 0.0
    %625 = vmatpush1.msra.mxu0 0.0
    %626 = vmatprep.subr.mxu0 0.0
    %627 = vmatpush1.msra.mxu0 0.0
    %628 = vmatprep.subr.mxu0 0.0
    %629 = vmatpush1.msra.mxu0 0.0
    %630 = vmatprep.subr.mxu0 0.0
    %631 = vmatpush1.msra.mxu0 0.0
    %632 = vmatprep.subr.mxu0 0.0
    %633 = vmatpush1.msra.mxu0 0.0
    %634 = vmatprep.subr.mxu0 0.0
    %635 = vmatpush1.msra.mxu0 0.0
    %636 = vmatprep.subr.mxu0 0.0
    %637 = vmatpush1.msra.mxu0 0.0
    %638 = vmatprep.subr.mxu0 0.0
    %639 = vmatpush1.msra.mxu0 0.0
    %640 = vmatprep.subr.mxu0 0.0
    %641 = vmatpush1.msra.mxu0 0.0
    %642 = vmatprep.subr.mxu0 0.0
    %643 = vmatpush1.msra.mxu0 0.0
    %644 = vmatprep.mubr.f32.mxu0 0.0
    %645 = vmatmul.mubr.f32.gmra.mrb[0].mxu0 %v575
    %v646 = vpop.f32.mrb[0].mxu0
    %v647 = vadd.f32 %v566, %v646
    %v648 = vpop.f32.mrb[0].mxu0
    %649 = vmatprep.mubr.f32.mxu0 0.0
    %650 = vmatmul.mubr.f32.gmra.mrb[0].mxu0 %v578
    %v651 = vpop.f32.mrb[0].mxu0
    %v652 = vadd.f32 %v571, %v651
    %v653 = vpop.f32.mrb[0].mxu0
    %654 = vdwg.mxu0
    %v655 = vmul.f32 %v647, 0.5
    %v656 = vmul.f32 %v652, 0.5
    %v658 = vlaneseq
    %v659 = vshrl.u32 %v658, 7
    %v660 = vsub.s32 0, %v659
    %v661 = vrot.slane %v216, %v660
    %v663 = vadd.f32 %v655, %v661
    %v664 = vadd.f32 %v656, %v661
    %v665 = vld [vmem:[#allocation11] sm:$0xff]
    %v666 = vld [vmem:[#allocation11 + $0x8] sm:$0xff]
    %v667 = vld [vmem:[#allocation13] sm:$0x3]
    %v668 = vld [vmem:[#allocation14] sm:$0x3]
    %v669 = vld [vmem:[#allocation16] sm:$0x1]
    %v671 = vsel %vm217, %v663, 0
    %v674 = vsel %vm217, %v664, 0
    %676 = vmatprep.subr.mxu0 0.0
    %677 = vmatpush1.msra.mxu0 %v665
    %678 = vmatprep.subr.mxu0 0.0
    %679 = vmatpush1.msra.mxu0 %v666
    %680 = vmatprep.subr.mxu0 0.0
    %681 = vmatpush1.msra.mxu0 0.0
    %682 = vmatprep.subr.mxu0 0.0
    %683 = vmatpush1.msra.mxu0 0.0
    %684 = vmatprep.subr.mxu0 0.0
    %685 = vmatpush1.msra.mxu0 0.0
    %686 = vmatprep.subr.mxu0 0.0
    %687 = vmatpush1.msra.mxu0 0.0
    %688 = vmatprep.subr.mxu0 0.0
    %689 = vmatpush1.msra.mxu0 0.0
    %690 = vmatprep.subr.mxu0 0.0
    %691 = vmatpush1.msra.mxu0 0.0
    %692 = vmatprep.subr.mxu0 0.0
    %693 = vmatpush1.msra.mxu0 0.0
    %694 = vmatprep.subr.mxu0 0.0
    %695 = vmatpush1.msra.mxu0 0.0
    %696 = vmatprep.subr.mxu0 0.0
    %697 = vmatpush1.msra.mxu0 0.0
    %698 = vmatprep.subr.mxu0 0.0
    %699 = vmatpush1.msra.mxu0 0.0
    %700 = vmatprep.subr.mxu0 0.0
    %701 = vmatpush1.msra.mxu0 0.0
    %702 = vmatprep.subr.mxu0 0.0
    %703 = vmatpush1.msra.mxu0 0.0
    %704 = vmatprep.subr.mxu0 0.0
    %705 = vmatpush1.msra.mxu0 0.0
    %706 = vmatprep.subr.mxu0 0.0
    %707 = vmatpush1.msra.mxu0 0.0
    %708 = vmatprep.subr.mxu0 0.0
    %709 = vmatpush1.msra.mxu0 0.0
    %710 = vmatprep.subr.mxu0 0.0
    %711 = vmatpush1.msra.mxu0 0.0
    %712 = vmatprep.subr.mxu0 0.0
    %713 = vmatpush1.msra.mxu0 0.0
    %714 = vmatprep.subr.mxu0 0.0
    %715 = vmatpush1.msra.mxu0 0.0
    %716 = vmatprep.subr.mxu0 0.0
    %717 = vmatpush1.msra.mxu0 0.0
    %718 = vmatprep.subr.mxu0 0.0
    %719 = vmatpush1.msra.mxu0 0.0
    %720 = vmatprep.subr.mxu0 0.0
    %721 = vmatpush1.msra.mxu0 0.0
    %722 = vmatprep.subr.mxu0 0.0
    %723 = vmatpush1.msra.mxu0 0.0
    %724 = vmatprep.subr.mxu0 0.0
    %725 = vmatpush1.msra.mxu0 0.0
    %726 = vmatprep.subr.mxu0 0.0
    %727 = vmatpush1.msra.mxu0 0.0
    %728 = vmatprep.subr.mxu0 0.0
    %729 = vmatpush1.msra.mxu0 0.0
    %730 = vmatprep.subr.mxu0 0.0
    %731 = vmatpush1.msra.mxu0 0.0
    %732 = vmatprep.subr.mxu0 0.0
    %733 = vmatpush1.msra.mxu0 0.0
    %734 = vmatprep.subr.mxu0 0.0
    %735 = vmatpush1.msra.mxu0 0.0
    %736 = vmatprep.subr.mxu0 0.0
    %737 = vmatpush1.msra.mxu0 0.0
    %738 = vmatprep.subr.mxu0 0.0
    %739 = vmatpush1.msra.mxu0 0.0
    %740 = vmatprep.mubr.f32.mxu0 0.0
    %741 = vmatmul.mubr.f32.gmra.mrb[0].mxu0 %v671
    %v742 = vpop.f32.mrb[0].mxu0
    %v743 = vadd.f32 0.0, %v742
    %v744 = vpop.f32.mrb[0].mxu0
    %745 = vmatprep.mubr.f32.mxu0 0.0
    %746 = vmatmul.mubr.f32.gmra.mrb[0].mxu0 %v674
    %v747 = vpop.f32.mrb[0].mxu0
    %v748 = vadd.f32 0.0, %v747
    %v749 = vpop.f32.mrb[0].mxu0
    %750 = vdwg.mxu0
    %v752 = vsel %vm299, %v667, 0
    %v755 = vsel %vm299, %v743, 0
    %v758 = vsel %vm299, %v748, 0
    %760 = vmatprep.subr.mxu0 0.0
    %761 = vmatpush1.xpose.msra.mxu0 %v755
    %762 = vmatprep.subr.mxu0 0.0
    %763 = vmatpush1.xpose.msra.mxu0 %v758
    %764 = vmatprep.subr.mxu0 0.0
    %765 = vmatpush1.xpose.msra.mxu0 0.0
    %766 = vmatprep.subr.mxu0 0.0
    %767 = vmatpush1.xpose.msra.mxu0 0.0
    %768 = vmatprep.subr.mxu0 0.0
    %769 = vmatpush1.xpose.msra.mxu0 0.0
    %770 = vmatprep.subr.mxu0 0.0
    %771 = vmatpush1.xpose.msra.mxu0 0.0
    %772 = vmatprep.subr.mxu0 0.0
    %773 = vmatpush1.xpose.msra.mxu0 0.0
    %774 = vmatprep.subr.mxu0 0.0
    %775 = vmatpush1.xpose.msra.mxu0 0.0
    %776 = vmatprep.subr.mxu0 0.0
    %777 = vmatpush1.xpose.msra.mxu0 0.0
    %778 = vmatprep.subr.mxu0 0.0
    %779 = vmatpush1.xpose.msra.mxu0 0.0
    %780 = vmatprep.subr.mxu0 0.0
    %781 = vmatpush1.xpose.msra.mxu0 0.0
    %782 = vmatprep.subr.mxu0 0.0
    %783 = vmatpush1.xpose.msra.mxu0 0.0
    %784 = vmatprep.subr.mxu0 0.0
    %785 = vmatpush1.xpose.msra.mxu0 0.0
    %786 = vmatprep.subr.mxu0 0.0
    %787 = vmatpush1.xpose.msra.mxu0 0.0
    %788 = vmatprep.subr.mxu0 0.0
    %789 = vmatpush1.xpose.msra.mxu0 0.0
    %790 = vmatprep.subr.mxu0 0.0
    %791 = vmatpush1.xpose.msra.mxu0 0.0
    %792 = vmatprep.subr.mxu0 0.0
    %793 = vmatpush1.xpose.msra.mxu0 0.0
    %794 = vmatprep.subr.mxu0 0.0
    %795 = vmatpush1.xpose.msra.mxu0 0.0
    %796 = vmatprep.subr.mxu0 0.0
    %797 = vmatpush1.xpose.msra.mxu0 0.0
    %798 = vmatprep.subr.mxu0 0.0
    %799 = vmatpush1.xpose.msra.mxu0 0.0
    %800 = vmatprep.subr.mxu0 0.0
    %801 = vmatpush1.xpose.msra.mxu0 0.0
    %802 = vmatprep.subr.mxu0 0.0
    %803 = vmatpush1.xpose.msra.mxu0 0.0
    %804 = vmatprep.subr.mxu0 0.0
    %805 = vmatpush1.xpose.msra.mxu0 0.0
    %806 = vmatprep.subr.mxu0 0.0
    %807 = vmatpush1.xpose.msra.mxu0 0.0
    %808 = vmatprep.subr.mxu0 0.0
    %809 = vmatpush1.xpose.msra.mxu0 0.0
    %810 = vmatprep.subr.mxu0 0.0
    %811 = vmatpush1.xpose.msra.mxu0 0.0
    %812 = vmatprep.subr.mxu0 0.0
    %813 = vmatpush1.xpose.msra.mxu0 0.0
    %814 = vmatprep.subr.mxu0 0.0
    %815 = vmatpush1.xpose.msra.mxu0 0.0
    %816 = vmatprep.subr.mxu0 0.0
    %817 = vmatpush1.xpose.msra.mxu0 0.0
    %818 = vmatprep.subr.mxu0 0.0
    %819 = vmatpush1.xpose.msra.mxu0 0.0
    %820 = vmatprep.subr.mxu0 0.0
    %821 = vmatpush1.xpose.msra.mxu0 0.0
    %822 = vmatprep.subr.mxu0 0.0
    %823 = vmatpush1.xpose.msra.mxu0 0.0
    %824 = vmatprep.mubr.f32.mxu0 0.0
    %825 = vmatmul.mubr.f32.gmra.mrb[0].mxu0 %v752
    %v826 = vpop.f32.mrb[0].mxu0
    %v827 = vadd.f32 0.0, %v826
    %v828 = vpop.f32.mrb[0].mxu0
    %829 = vdwg.mxu0
    %v830 = vlaneseq
    %v831 = vshrl.u32 %v830, 7
    %v832 = vsub.s32 0, %v831
    %v833 = vrot.slane %v668, %v832
    %v834 = vmul.f32 %v743, %v833
    %v835 = vmul.f32 %v748, %v833
    %v836 = vsel %vm217, %v834, 0.0
    %837 = vadd.xlane.f32.xlu0 %v836
    %v838 = vpop.xlane.xlu0 %837
    %v839 = vsel %vm217, %v835, 0.0
    %840 = vadd.xlane.f32.xlu0 %v839
    %v841 = vpop.xlane.xlu0 %840
    %v842 = vlaneseq
    %v843 = vshrl.u32 %v842, 7
    %v844 = vsub.s32 0, %v843
    %v845 = vrot.slane %v827, %v844
    %v846 = vadd.f32 %v838, %v845
    %v847 = vadd.f32 %v841, %v845
    %vm848 = vcmp.gt.f32.partialorder %v846, 0.0
    %vm849 = vcmp.gt.f32.partialorder %v847, 0.0
    %v850 = vmul.f32 %v846, 0.2
    %v851 = vmul.f32 %v847, 0.2
    %v852 = vsel %vm848, %v846, %v850
    %v853 = vsel %vm849, %v847, %v851
    %v854 = vadd.f32 %v852, %v210
    %v855 = vadd.f32 %v853, %v211
    %v856 = vsel %vm217, %v854, -inf
    %857 = vmax.xlane.f32.xlu0 %v856
    %v858 = vpop.xlane.xlu0 %857
    %v859 = vsel %vm217, %v855, -inf
    %860 = vmax.xlane.f32.xlu0 %v859
    %v861 = vpop.xlane.xlu0 %860
    %v862 = vsub.f32 %v854, %v858
    %v863 = vsub.f32 %v855, %v861
    %v864 = vmul.f32 %v862, 1.442695
    %v865 = vpow.pop %v864
    %v866 = vmul.f32 %v863, 1.442695
    %v867 = vpow.pop %v866
    %v868 = vsel %vm217, %v865, 0.0
    %869 = vadd.xlane.f32.xlu0 %v868
    %v870 = vpop.xlane.xlu0 %869
    %v871 = vsel %vm217, %v867, 0.0
    %872 = vadd.xlane.f32.xlu0 %v871
    %v873 = vpop.xlane.xlu0 %872
    %v874 = vrcp.pop %v870
    %v875 = vrcp.pop %v873
    %v876 = vmul.f32 %v865, %v874
    %v877 = vmul.f32 %v867, %v875
    %v878 = vlaneseq
    %v879 = vshrl.u32 %v878, 7
    %v880 = vsub.s32 1, %v879
    %v881 = vrot.slane %v668, %v880
    %883 = vrot.lane.b32.xlu0 %v881, 16
    %v884 = vpop.permute.xlu0 %883
    %v886 = vmul.f32 %v743, %v884
    %v887 = vmul.f32 %v748, %v884
    %890 = vrot.lane.b32.xlu0 %v886, 112
    %v891 = vpop.permute.xlu0 %890
    %892 = vrot.lane.b32.xlu0 %v887, 112
    %v893 = vpop.permute.xlu0 %892
    %v896 = vsel %vm217, %v891, 0.0
    %897 = vadd.xlane.f32.xlu0 %v896
    %v898 = vpop.xlane.xlu0 %897
    %v899 = vsel %vm217, %v893, 0.0
    %900 = vadd.xlane.f32.xlu0 %v899
    %v901 = vpop.xlane.xlu0 %900
    %v902 = vlaneseq
    %v903 = vshrl.u32 %v902, 7
    %v904 = vsub.s32 1, %v903
    %v905 = vrot.slane %v827, %v904
    %v906 = vadd.f32 %v898, %v905
    %v907 = vadd.f32 %v901, %v905
    %vm908 = vcmp.gt.f32.partialorder %v906, 0.0
    %vm909 = vcmp.gt.f32.partialorder %v907, 0.0
    %v910 = vmul.f32 %v906, 0.2
    %v911 = vmul.f32 %v907, 0.2
    %v912 = vsel %vm908, %v906, %v910
    %v913 = vsel %vm909, %v907, %v911
    %v914 = vadd.f32 %v912, %v210
    %v915 = vadd.f32 %v913, %v211
    %v916 = vsel %vm217, %v914, -inf
    %917 = vmax.xlane.f32.xlu0 %v916
    %v918 = vpop.xlane.xlu0 %917
    %v919 = vsel %vm217, %v915, -inf
    %920 = vmax.xlane.f32.xlu0 %v919
    %v921 = vpop.xlane.xlu0 %920
    %v922 = vsub.f32 %v914, %v918
    %v923 = vsub.f32 %v915, %v921
    %v924 = vmul.f32 %v922, 1.442695
    %v925 = vpow.pop %v924
    %v926 = vmul.f32 %v923, 1.442695
    %v927 = vpow.pop %v926
    %v928 = vsel %vm217, %v925, 0.0
    %929 = vadd.xlane.f32.xlu0 %v928
    %v930 = vpop.xlane.xlu0 %929
    %v931 = vsel %vm217, %v927, 0.0
    %932 = vadd.xlane.f32.xlu0 %v931
    %v933 = vpop.xlane.xlu0 %932
    %v934 = vrcp.pop %v930
    %v935 = vrcp.pop %v933
    %v936 = vmul.f32 %v925, %v934
    %v937 = vmul.f32 %v927, %v935
    %938 = vrot.lane.b32.xlu0 %v743, 112
    %v939 = vpop.permute.xlu0 %938
    %940 = vrot.lane.b32.xlu0 %v748, 112
    %v941 = vpop.permute.xlu0 %940
    %v945 = vsel %vm217, %v936, 0
    %v948 = vsel %vm217, %v937, 0
    %950 = vmatprep.subr.mxu0 0.0
    %951 = vmatpush1.msra.mxu0 %v939
    %952 = vmatprep.subr.mxu0 0.0
    %953 = vmatpush1.msra.mxu0 %v941
    %954 = vmatprep.subr.mxu0 0.0
    %955 = vmatpush1.msra.mxu0 0.0
    %956 = vmatprep.subr.mxu0 0.0
    %957 = vmatpush1.msra.mxu0 0.0
    %958 = vmatprep.subr.mxu0 0.0
    %959 = vmatpush1.msra.mxu0 0.0
    %960 = vmatprep.subr.mxu0 0.0
    %961 = vmatpush1.msra.mxu0 0.0
    %962 = vmatprep.subr.mxu0 0.0
    %963 = vmatpush1.msra.mxu0 0.0
    %964 = vmatprep.subr.mxu0 0.0
    %965 = vmatpush1.msra.mxu0 0.0
    %966 = vmatprep.subr.mxu0 0.0
    %967 = vmatpush1.msra.mxu0 0.0
    %968 = vmatprep.subr.mxu0 0.0
    %969 = vmatpush1.msra.mxu0 0.0
    %970 = vmatprep.subr.mxu0 0.0
    %971 = vmatpush1.msra.mxu0 0.0
    %972 = vmatprep.subr.mxu0 0.0
    %973 = vmatpush1.msra.mxu0 0.0
    %974 = vmatprep.subr.mxu0 0.0
    %975 = vmatpush1.msra.mxu0 0.0
    %976 = vmatprep.subr.mxu0 0.0
    %977 = vmatpush1.msra.mxu0 0.0
    %978 = vmatprep.subr.mxu0 0.0
    %979 = vmatpush1.msra.mxu0 0.0
    %980 = vmatprep.subr.mxu0 0.0
    %981 = vmatpush1.msra.mxu0 0.0
    %982 = vmatprep.subr.mxu0 0.0
    %983 = vmatpush1.msra.mxu0 0.0
    %984 = vmatprep.subr.mxu0 0.0
    %985 = vmatpush1.msra.mxu0 0.0
    %986 = vmatprep.subr.mxu0 0.0
    %987 = vmatpush1.msra.mxu0 0.0
    %988 = vmatprep.subr.mxu0 0.0
    %989 = vmatpush1.msra.mxu0 0.0
    %990 = vmatprep.subr.mxu0 0.0
    %991 = vmatpush1.msra.mxu0 0.0
    %992 = vmatprep.subr.mxu0 0.0
    %993 = vmatpush1.msra.mxu0 0.0
    %994 = vmatprep.subr.mxu0 0.0
    %995 = vmatpush1.msra.mxu0 0.0
    %996 = vmatprep.subr.mxu0 0.0
    %997 = vmatpush1.msra.mxu0 0.0
    %998 = vmatprep.subr.mxu0 0.0
    %999 = vmatpush1.msra.mxu0 0.0
    %1000 = vmatprep.subr.mxu0 0.0
    %1001 = vmatpush1.msra.mxu0 0.0
    %1002 = vmatprep.subr.mxu0 0.0
    %1003 = vmatpush1.msra.mxu0 0.0
    %1004 = vmatprep.subr.mxu0 0.0
    %1005 = vmatpush1.msra.mxu0 0.0
    %1006 = vmatprep.subr.mxu0 0.0
    %1007 = vmatpush1.msra.mxu0 0.0
    %1008 = vmatprep.subr.mxu0 0.0
    %1009 = vmatpush1.msra.mxu0 0.0
    %1010 = vmatprep.subr.mxu0 0.0
    %1011 = vmatpush1.msra.mxu0 0.0
    %1012 = vmatprep.subr.mxu0 0.0
    %1013 = vmatpush1.msra.mxu0 0.0
    %1014 = vmatprep.mubr.f32.mxu0 0.0
    %1015 = vmatmul.mubr.f32.gmra.mrb[0].mxu0 %v945
    %v1016 = vpop.f32.mrb[0].mxu0
    %v1017 = vadd.f32 0.0, %v1016
    %v1018 = vpop.f32.mrb[0].mxu0
    %1019 = vmatprep.mubr.f32.mxu0 0.0
    %1020 = vmatmul.mubr.f32.gmra.mrb[0].mxu0 %v948
    %v1021 = vpop.f32.mrb[0].mxu0
    %v1022 = vadd.f32 0.0, %v1021
    %v1023 = vpop.f32.mrb[0].mxu0
    %1024 = vdwg.mxu0
    %v1026 = vsel %vm217, %v876, 0
    %v1029 = vsel %vm217, %v877, 0
    %1031 = vmatprep.subr.mxu0 0.0
    %1032 = vmatpush1.msra.mxu0 %v743
    %1033 = vmatprep.subr.mxu0 0.0
    %1034 = vmatpush1.msra.mxu0 %v748
    %1035 = vmatprep.subr.mxu0 0.0
    %1036 = vmatpush1.msra.mxu0 0.0
    %1037 = vmatprep.subr.mxu0 0.0
    %1038 = vmatpush1.msra.mxu0 0.0
    %1039 = vmatprep.subr.mxu0 0.0
    %1040 = vmatpush1.msra.mxu0 0.0
    %1041 = vmatprep.subr.mxu0 0.0
    %1042 = vmatpush1.msra.mxu0 0.0
    %1043 = vmatprep.subr.mxu0 0.0
    %1044 = vmatpush1.msra.mxu0 0.0
    %1045 = vmatprep.subr.mxu0 0.0
    %1046 = vmatpush1.msra.mxu0 0.0
    %1047 = vmatprep.subr.mxu0 0.0
    %1048 = vmatpush1.msra.mxu0 0.0
    %1049 = vmatprep.subr.mxu0 0.0
    %1050 = vmatpush1.msra.mxu0 0.0
    %1051 = vmatprep.subr.mxu0 0.0
    %1052 = vmatpush1.msra.mxu0 0.0
    %1053 = vmatprep.subr.mxu0 0.0
    %1054 = vmatpush1.msra.mxu0 0.0
    %1055 = vmatprep.subr.mxu0 0.0
    %1056 = vmatpush1.msra.mxu0 0.0
    %1057 = vmatprep.subr.mxu0 0.0
    %1058 = vmatpush1.msra.mxu0 0.0
    %1059 = vmatprep.subr.mxu0 0.0
    %1060 = vmatpush1.msra.mxu0 0.0
    %1061 = vmatprep.subr.mxu0 0.0
    %1062 = vmatpush1.msra.mxu0 0.0
    %1063 = vmatprep.subr.mxu0 0.0
    %1064 = vmatpush1.msra.mxu0 0.0
    %1065 = vmatprep.subr.mxu0 0.0
    %1066 = vmatpush1.msra.mxu0 0.0
    %1067 = vmatprep.subr.mxu0 0.0
    %1068 = vmatpush1.msra.mxu0 0.0
    %1069 = vmatprep.subr.mxu0 0.0
    %1070 = vmatpush1.msra.mxu0 0.0
    %1071 = vmatprep.subr.mxu0 0.0
    %1072 = vmatpush1.msra.mxu0 0.0
    %1073 = vmatprep.subr.mxu0 0.0
    %1074 = vmatpush1.msra.mxu0 0.0
    %1075 = vmatprep.subr.mxu0 0.0
    %1076 = vmatpush1.msra.mxu0 0.0
    %1077 = vmatprep.subr.mxu0 0.0
    %1078 = vmatpush1.msra.mxu0 0.0
    %1079 = vmatprep.subr.mxu0 0.0
    %1080 = vmatpush1.msra.mxu0 0.0
    %1081 = vmatprep.subr.mxu0 0.0
    %1082 = vmatpush1.msra.mxu0 0.0
    %1083 = vmatprep.subr.mxu0 0.0
    %1084 = vmatpush1.msra.mxu0 0.0
    %1085 = vmatprep.subr.mxu0 0.0
    %1086 = vmatpush1.msra.mxu0 0.0
    %1087 = vmatprep.subr.mxu0 0.0
    %1088 = vmatpush1.msra.mxu0 0.0
    %1089 = vmatprep.subr.mxu0 0.0
    %1090 = vmatpush1.msra.mxu0 0.0
    %1091 = vmatprep.subr.mxu0 0.0
    %1092 = vmatpush1.msra.mxu0 0.0
    %1093 = vmatprep.subr.mxu0 0.0
    %1094 = vmatpush1.msra.mxu0 0.0
    %1095 = vmatprep.mubr.f32.mxu0 0.0
    %1096 = vmatmul.mubr.f32.gmra.mrb[0].mxu0 %v1026
    %v1097 = vpop.f32.mrb[0].mxu0
    %v1098 = vadd.f32 %v1017, %v1097
    %v1099 = vpop.f32.mrb[0].mxu0
    %1100 = vmatprep.mubr.f32.mxu0 0.0
    %1101 = vmatmul.mubr.f32.gmra.mrb[0].mxu0 %v1029
    %v1102 = vpop.f32.mrb[0].mxu0
    %v1103 = vadd.f32 %v1022, %v1102
    %v1104 = vpop.f32.mrb[0].mxu0
    %1105 = vdwg.mxu0
    %v1106 = vmul.f32 %v1098, 0.5
    %v1107 = vmul.f32 %v1103, 0.5
    %v1109 = vlaneseq
    %v1110 = vshrl.u32 %v1109, 7
    %v1111 = vsub.s32 0, %v1110
    %v1112 = vrot.slane %v669, %v1111
    %v1114 = vadd.f32 %v1106, %v1112
    %v1115 = vadd.f32 %v1107, %v1112
    %v1116 = vld [vmem:[#allocation17] sm:$0xff]
    %v1117 = vld [vmem:[#allocation17 + $0x8] sm:$0xff]
    %v1118 = vld [vmem:[#allocation19] sm:$0xff]
    %v1119 = vld [vmem:[#allocation19 + $0x8] sm:$0xff]
    %v1120 = vld [vmem:[%s13] sm:$0xf]
    %v1121 = vld [vmem:[%s2] sm:$0xff]
    %v1123 = vsel %vm217, %v1116, 0
    %v1126 = vsel %vm217, %v1114, 0
    %1128 = vmatprep.subr.mxu0 0.0
    %1129 = vmatpush1.xpose.msra.mxu0 %v1126
    %1130 = vmatprep.subr.mxu0 0.0
    %1131 = vmatpush1.xpose.msra.mxu0 0.0
    %1132 = vmatprep.subr.mxu0 0.0
    %1133 = vmatpush1.xpose.msra.mxu0 0.0
    %1134 = vmatprep.subr.mxu0 0.0
    %1135 = vmatpush1.xpose.msra.mxu0 0.0
    %1136 = vmatprep.subr.mxu0 0.0
    %1137 = vmatpush1.xpose.msra.mxu0 0.0
    %1138 = vmatprep.subr.mxu0 0.0
    %1139 = vmatpush1.xpose.msra.mxu0 0.0
    %1140 = vmatprep.subr.mxu0 0.0
    %1141 = vmatpush1.xpose.msra.mxu0 0.0
    %1142 = vmatprep.subr.mxu0 0.0
    %1143 = vmatpush1.xpose.msra.mxu0 0.0
    %1144 = vmatprep.subr.mxu0 0.0
    %1145 = vmatpush1.xpose.msra.mxu0 0.0
    %1146 = vmatprep.subr.mxu0 0.0
    %1147 = vmatpush1.xpose.msra.mxu0 0.0
    %1148 = vmatprep.subr.mxu0 0.0
    %1149 = vmatpush1.xpose.msra.mxu0 0.0
    %1150 = vmatprep.subr.mxu0 0.0
    %1151 = vmatpush1.xpose.msra.mxu0 0.0
    %1152 = vmatprep.subr.mxu0 0.0
    %1153 = vmatpush1.xpose.msra.mxu0 0.0
    %1154 = vmatprep.subr.mxu0 0.0
    %1155 = vmatpush1.xpose.msra.mxu0 0.0
    %1156 = vmatprep.subr.mxu0 0.0
    %1157 = vmatpush1.xpose.msra.mxu0 0.0
    %1158 = vmatprep.subr.mxu0 0.0
    %1159 = vmatpush1.xpose.msra.mxu0 0.0
    %1160 = vmatprep.subr.mxu0 0.0
    %1161 = vmatpush1.xpose.msra.mxu0 0.0
    %1162 = vmatprep.subr.mxu0 0.0
    %1163 = vmatpush1.xpose.msra.mxu0 0.0
    %1164 = vmatprep.subr.mxu0 0.0
    %1165 = vmatpush1.xpose.msra.mxu0 0.0
    %1166 = vmatprep.subr.mxu0 0.0
    %1167 = vmatpush1.xpose.msra.mxu0 0.0
    %1168 = vmatprep.subr.mxu0 0.0
    %1169 = vmatpush1.xpose.msra.mxu0 0.0
    %1170 = vmatprep.subr.mxu0 0.0
    %1171 = vmatpush1.xpose.msra.mxu0 0.0
    %1172 = vmatprep.subr.mxu0 0.0
    %1173 = vmatpush1.xpose.msra.mxu0 0.0
    %1174 = vmatprep.subr.mxu0 0.0
    %1175 = vmatpush1.xpose.msra.mxu0 0.0
    %1176 = vmatprep.subr.mxu0 0.0
    %1177 = vmatpush1.xpose.msra.mxu0 0.0
    %1178 = vmatprep.subr.mxu0 0.0
    %1179 = vmatpush1.xpose.msra.mxu0 0.0
    %1180 = vmatprep.subr.mxu0 0.0
    %1181 = vmatpush1.xpose.msra.mxu0 0.0
    %1182 = vmatprep.subr.mxu0 0.0
    %1183 = vmatpush1.xpose.msra.mxu0 0.0
    %1184 = vmatprep.subr.mxu0 0.0
    %1185 = vmatpush1.xpose.msra.mxu0 0.0
    %1186 = vmatprep.subr.mxu0 0.0
    %1187 = vmatpush1.xpose.msra.mxu0 0.0
    %1188 = vmatprep.subr.mxu0 0.0
    %1189 = vmatpush1.xpose.msra.mxu0 0.0
    %1190 = vmatprep.subr.mxu0 0.0
    %1191 = vmatpush1.xpose.msra.mxu0 0.0
    %1192 = vmatprep.mubr.f32.mxu0 0.0
    %1193 = vmatmul.mubr.f32.gmra.mrb[0].mxu0 %v1123
    %v1194 = vpop.f32.mrb[0].mxu0
    %v1195 = vadd.f32 0.0, %v1194
    %v1196 = vpop.f32.mrb[0].mxu0
    %1197 = vdwg.mxu0
    %vm1198 = vcmask 64512
    %v1200 = vsel %vm1198, %v1195, 0
    %1202 = vmatprep.subr.mxu0 0.0
    %1203 = vmatpush1.msra.mxu0 %v1118
    %1204 = vmatprep.subr.mxu0 0.0
    %1205 = vmatpush1.msra.mxu0 0.0
    %1206 = vmatprep.subr.mxu0 0.0
    %1207 = vmatpush1.msra.mxu0 0.0
    %1208 = vmatprep.subr.mxu0 0.0
    %1209 = vmatpush1.msra.mxu0 0.0
    %1210 = vmatprep.subr.mxu0 0.0
    %1211 = vmatpush1.msra.mxu0 0.0
    %1212 = vmatprep.subr.mxu0 0.0
    %1213 = vmatpush1.msra.mxu0 0.0
    %1214 = vmatprep.subr.mxu0 0.0
    %1215 = vmatpush1.msra.mxu0 0.0
    %1216 = vmatprep.subr.mxu0 0.0
    %1217 = vmatpush1.msra.mxu0 0.0
    %1218 = vmatprep.subr.mxu0 0.0
    %1219 = vmatpush1.msra.mxu0 0.0
    %1220 = vmatprep.subr.mxu0 0.0
    %1221 = vmatpush1.msra.mxu0 0.0
    %1222 = vmatprep.subr.mxu0 0.0
    %1223 = vmatpush1.msra.mxu0 0.0
    %1224 = vmatprep.subr.mxu0 0.0
    %1225 = vmatpush1.msra.mxu0 0.0
    %1226 = vmatprep.subr.mxu0 0.0
    %1227 = vmatpush1.msra.mxu0 0.0
    %1228 = vmatprep.subr.mxu0 0.0
    %1229 = vmatpush1.msra.mxu0 0.0
    %1230 = vmatprep.subr.mxu0 0.0
    %1231 = vmatpush1.msra.mxu0 0.0
    %1232 = vmatprep.subr.mxu0 0.0
    %1233 = vmatpush1.msra.mxu0 0.0
    %1234 = vmatprep.subr.mxu0 0.0
    %1235 = vmatpush1.msra.mxu0 0.0
    %1236 = vmatprep.subr.mxu0 0.0
    %1237 = vmatpush1.msra.mxu0 0.0
    %1238 = vmatprep.subr.mxu0 0.0
    %1239 = vmatpush1.msra.mxu0 0.0
    %1240 = vmatprep.subr.mxu0 0.0
    %1241 = vmatpush1.msra.mxu0 0.0
    %1242 = vmatprep.subr.mxu0 0.0
    %1243 = vmatpush1.msra.mxu0 0.0
    %1244 = vmatprep.subr.mxu0 0.0
    %1245 = vmatpush1.msra.mxu0 0.0
    %1246 = vmatprep.subr.mxu0 0.0
    %1247 = vmatpush1.msra.mxu0 0.0
    %1248 = vmatprep.subr.mxu0 0.0
    %1249 = vmatpush1.msra.mxu0 0.0
    %1250 = vmatprep.subr.mxu0 0.0
    %1251 = vmatpush1.msra.mxu0 0.0
    %1252 = vmatprep.subr.mxu0 0.0
    %1253 = vmatpush1.msra.mxu0 0.0
    %1254 = vmatprep.subr.mxu0 0.0
    %1255 = vmatpush1.msra.mxu0 0.0
    %1256 = vmatprep.subr.mxu0 0.0
    %1257 = vmatpush1.msra.mxu0 0.0
    %1258 = vmatprep.subr.mxu0 0.0
    %1259 = vmatpush1.msra.mxu0 0.0
    %1260 = vmatprep.subr.mxu0 0.0
    %1261 = vmatpush1.msra.mxu0 0.0
    %1262 = vmatprep.subr.mxu0 0.0
    %1263 = vmatpush1.msra.mxu0 0.0
    %1264 = vmatprep.subr.mxu0 0.0
    %1265 = vmatpush1.msra.mxu0 0.0
    %1266 = vmatprep.mubr.f32.mxu0 0.0
    %1267 = vmatmul.mubr.f32.gmra.mrb[0].mxu0 %v1200
    %v1268 = vpop.f32.mrb[0].mxu0
    %v1269 = vadd.f32 0.0, %v1268
    %v1270 = vpop.f32.mrb[0].mxu0
    %1271 = vdwg.mxu0
    %vm1272 = vcmask 31744
    %v1274 = vsel %vm1272, %v1121, 0
    %vm1276 = vcmask 1043456
    %v1278 = vsel %vm1276, %v1120, 0
    %1280 = vmatprep.subr.mxu0 0.0
    %1281 = vmatpush1.msra.mxu0 %v1278
    %1282 = vmatprep.subr.mxu0 0.0
    %1283 = vmatpush1.msra.mxu0 0.0
    %1284 = vmatprep.subr.mxu0 0.0
    %1285 = vmatpush1.msra.mxu0 0.0
    %1286 = vmatprep.subr.mxu0 0.0
    %1287 = vmatpush1.msra.mxu0 0.0
    %1288 = vmatprep.subr.mxu0 0.0
    %1289 = vmatpush1.msra.mxu0 0.0
    %1290 = vmatprep.subr.mxu0 0.0
    %1291 = vmatpush1.msra.mxu0 0.0
    %1292 = vmatprep.subr.mxu0 0.0
    %1293 = vmatpush1.msra.mxu0 0.0
    %1294 = vmatprep.subr.mxu0 0.0
    %1295 = vmatpush1.msra.mxu0 0.0
    %1296 = vmatprep.subr.mxu0 0.0
    %1297 = vmatpush1.msra.mxu0 0.0
    %1298 = vmatprep.subr.mxu0 0.0
    %1299 = vmatpush1.msra.mxu0 0.0
    %1300 = vmatprep.subr.mxu0 0.0
    %1301 = vmatpush1.msra.mxu0 0.0
    %1302 = vmatprep.subr.mxu0 0.0
    %1303 = vmatpush1.msra.mxu0 0.0
    %1304 = vmatprep.subr.mxu0 0.0
    %1305 = vmatpush1.msra.mxu0 0.0
    %1306 = vmatprep.subr.mxu0 0.0
    %1307 = vmatpush1.msra.mxu0 0.0
    %1308 = vmatprep.subr.mxu0 0.0
    %1309 = vmatpush1.msra.mxu0 0.0
    %1310 = vmatprep.subr.mxu0 0.0
    %1311 = vmatpush1.msra.mxu0 0.0
    %1312 = vmatprep.subr.mxu0 0.0
    %1313 = vmatpush1.msra.mxu0 0.0
    %1314 = vmatprep.subr.mxu0 0.0
    %1315 = vmatpush1.msra.mxu0 0.0
    %1316 = vmatprep.subr.mxu0 0.0
    %1317 = vmatpush1.msra.mxu0 0.0
    %1318 = vmatprep.subr.mxu0 0.0
    %1319 = vmatpush1.msra.mxu0 0.0
    %1320 = vmatprep.subr.mxu0 0.0
    %1321 = vmatpush1.msra.mxu0 0.0
    %1322 = vmatprep.subr.mxu0 0.0
    %1323 = vmatpush1.msra.mxu0 0.0
    %1324 = vmatprep.subr.mxu0 0.0
    %1325 = vmatpush1.msra.mxu0 0.0
    %1326 = vmatprep.subr.mxu0 0.0
    %1327 = vmatpush1.msra.mxu0 0.0
    %1328 = vmatprep.subr.mxu0 0.0
    %1329 = vmatpush1.msra.mxu0 0.0
    %1330 = vmatprep.subr.mxu0 0.0
    %1331 = vmatpush1.msra.mxu0 0.0
    %1332 = vmatprep.subr.mxu0 0.0
    %1333 = vmatpush1.msra.mxu0 0.0
    %1334 = vmatprep.subr.mxu0 0.0
    %1335 = vmatpush1.msra.mxu0 0.0
    %1336 = vmatprep.subr.mxu0 0.0
    %1337 = vmatpush1.msra.mxu0 0.0
    %1338 = vmatprep.subr.mxu0 0.0
    %1339 = vmatpush1.msra.mxu0 0.0
    %1340 = vmatprep.subr.mxu0 0.0
    %1341 = vmatpush1.msra.mxu0 0.0
    %1342 = vmatprep.subr.mxu0 0.0
    %1343 = vmatpush1.msra.mxu0 0.0
    %1344 = vmatprep.mubr.f32.mxu0 0.0
    %1345 = vmatmul.mubr.f32.gmra.mrb[0].mxu0 %v1274
    %v1346 = vpop.f32.mrb[0].mxu0
    %v1347 = vadd.f32 %v1269, %v1346
    %v1348 = vpop.f32.mrb[0].mxu0
    %1349 = vdwg.mxu0
    %v1351 = vsel %vm217, %v1117, 0
    %1353 = vmatprep.subr.mxu0 0.0
    %1354 = vmatpush1.xpose.msra.mxu0 %v1126
    %1355 = vmatprep.subr.mxu0 0.0
    %1356 = vmatpush1.xpose.msra.mxu0 0.0
    %1357 = vmatprep.subr.mxu0 0.0
    %1358 = vmatpush1.xpose.msra.mxu0 0.0
    %1359 = vmatprep.subr.mxu0 0.0
    %1360 = vmatpush1.xpose.msra.mxu0 0.0
    %1361 = vmatprep.subr.mxu0 0.0
    %1362 = vmatpush1.xpose.msra.mxu0 0.0
    %1363 = vmatprep.subr.mxu0 0.0
    %1364 = vmatpush1.xpose.msra.mxu0 0.0
    %1365 = vmatprep.subr.mxu0 0.0
    %1366 = vmatpush1.xpose.msra.mxu0 0.0
    %1367 = vmatprep.subr.mxu0 0.0
    %1368 = vmatpush1.xpose.msra.mxu0 0.0
    %1369 = vmatprep.subr.mxu0 0.0
    %1370 = vmatpush1.xpose.msra.mxu0 0.0
    %1371 = vmatprep.subr.mxu0 0.0
    %1372 = vmatpush1.xpose.msra.mxu0 0.0
    %1373 = vmatprep.subr.mxu0 0.0
    %1374 = vmatpush1.xpose.msra.mxu0 0.0
    %1375 = vmatprep.subr.mxu0 0.0
    %1376 = vmatpush1.xpose.msra.mxu0 0.0
    %1377 = vmatprep.subr.mxu0 0.0
    %1378 = vmatpush1.xpose.msra.mxu0 0.0
    %1379 = vmatprep.subr.mxu0 0.0
    %1380 = vmatpush1.xpose.msra.mxu0 0.0
    %1381 = vmatprep.subr.mxu0 0.0
    %1382 = vmatpush1.xpose.msra.mxu0 0.0
    %1383 = vmatprep.subr.mxu0 0.0
    %1384 = vmatpush1.xpose.msra.mxu0 0.0
    %1385 = vmatprep.subr.mxu0 0.0
    %1386 = vmatpush1.xpose.msra.mxu0 0.0
    %1387 = vmatprep.subr.mxu0 0.0
    %1388 = vmatpush1.xpose.msra.mxu0 0.0
    %1389 = vmatprep.subr.mxu0 0.0
    %1390 = vmatpush1.xpose.msra.mxu0 0.0
    %1391 = vmatprep.subr.mxu0 0.0
    %1392 = vmatpush1.xpose.msra.mxu0 0.0
    %1393 = vmatprep.subr.mxu0 0.0
    %1394 = vmatpush1.xpose.msra.mxu0 0.0
    %1395 = vmatprep.subr.mxu0 0.0
    %1396 = vmatpush1.xpose.msra.mxu0 0.0
    %1397 = vmatprep.subr.mxu0 0.0
    %1398 = vmatpush1.xpose.msra.mxu0 0.0
    %1399 = vmatprep.subr.mxu0 0.0
    %1400 = vmatpush1.xpose.msra.mxu0 0.0
    %1401 = vmatprep.subr.mxu0 0.0
    %1402 = vmatpush1.xpose.msra.mxu0 0.0
    %1403 = vmatprep.subr.mxu0 0.0
    %1404 = vmatpush1.xpose.msra.mxu0 0.0
    %1405 = vmatprep.subr.mxu0 0.0
    %1406 = vmatpush1.xpose.msra.mxu0 0.0
    %1407 = vmatprep.subr.mxu0 0.0
    %1408 = vmatpush1.xpose.msra.mxu0 0.0
    %1409 = vmatprep.subr.mxu0 0.0
    %1410 = vmatpush1.xpose.msra.mxu0 0.0
    %1411 = vmatprep.subr.mxu0 0.0
    %1412 = vmatpush1.xpose.msra.mxu0 0.0
    %1413 = vmatprep.subr.mxu0 0.0
    %1414 = vmatpush1.xpose.msra.mxu0 0.0
    %1415 = vmatprep.subr.mxu0 0.0
    %1416 = vmatpush1.xpose.msra.mxu0 0.0
    %1417 = vmatprep.mubr.f32.mxu0 0.0
    %1418 = vmatmul.mubr.f32.gmra.mrb[0].mxu0 %v1351
    %v1419 = vpop.f32.mrb[0].mxu0
    %v1420 = vadd.f32 0.0, %v1419
    %v1421 = vpop.f32.mrb[0].mxu0
    %1422 = vdwg.mxu0
    %v1424 = vsel %vm1198, %v1420, 0
    %1426 = vmatprep.subr.mxu0 0.0
    %1427 = vmatpush1.msra.mxu0 %v1119
    %1428 = vmatprep.subr.mxu0 0.0
    %1429 = vmatpush1.msra.mxu0 0.0
    %1430 = vmatprep.subr.mxu0 0.0
    %1431 = vmatpush1.msra.mxu0 0.0
    %1432 = vmatprep.subr.mxu0 0.0
    %1433 = vmatpush1.msra.mxu0 0.0
    %1434 = vmatprep.subr.mxu0 0.0
    %1435 = vmatpush1.msra.mxu0 0.0
    %1436 = vmatprep.subr.mxu0 0.0
    %1437 = vmatpush1.msra.mxu0 0.0
    %1438 = vmatprep.subr.mxu0 0.0
    %1439 = vmatpush1.msra.mxu0 0.0
    %1440 = vmatprep.subr.mxu0 0.0
    %1441 = vmatpush1.msra.mxu0 0.0
    %1442 = vmatprep.subr.mxu0 0.0
    %1443 = vmatpush1.msra.mxu0 0.0
    %1444 = vmatprep.subr.mxu0 0.0
    %1445 = vmatpush1.msra.mxu0 0.0
    %1446 = vmatprep.subr.mxu0 0.0
    %1447 = vmatpush1.msra.mxu0 0.0
    %1448 = vmatprep.subr.mxu0 0.0
    %1449 = vmatpush1.msra.mxu0 0.0
    %1450 = vmatprep.subr.mxu0 0.0
    %1451 = vmatpush1.msra.mxu0 0.0
    %1452 = vmatprep.subr.mxu0 0.0
    %1453 = vmatpush1.msra.mxu0 0.0
    %1454 = vmatprep.subr.mxu0 0.0
    %1455 = vmatpush1.msra.mxu0 0.0
    %1456 = vmatprep.subr.mxu0 0.0
    %1457 = vmatpush1.msra.mxu0 0.0
    %1458 = vmatprep.subr.mxu0 0.0
    %1459 = vmatpush1.msra.mxu0 0.0
    %1460 = vmatprep.subr.mxu0 0.0
    %1461 = vmatpush1.msra.mxu0 0.0
    %1462 = vmatprep.subr.mxu0 0.0
    %1463 = vmatpush1.msra.mxu0 0.0
    %1464 = vmatprep.subr.mxu0 0.0
    %1465 = vmatpush1.msra.mxu0 0.0
    %1466 = vmatprep.subr.mxu0 0.0
    %1467 = vmatpush1.msra.mxu0 0.0
    %1468 = vmatprep.subr.mxu0 0.0
    %1469 = vmatpush1.msra.mxu0 0.0
    %1470 = vmatprep.subr.mxu0 0.0
    %1471 = vmatpush1.msra.mxu0 0.0
    %1472 = vmatprep.subr.mxu0 0.0
    %1473 = vmatpush1.msra.mxu0 0.0
    %1474 = vmatprep.subr.mxu0 0.0
    %1475 = vmatpush1.msra.mxu0 0.0
    %1476 = vmatprep.subr.mxu0 0.0
    %1477 = vmatpush1.msra.mxu0 0.0
    %1478 = vmatprep.subr.mxu0 0.0
    %1479 = vmatpush1.msra.mxu0 0.0
    %1480 = vmatprep.subr.mxu0 0.0
    %1481 = vmatpush1.msra.mxu0 0.0
    %1482 = vmatprep.subr.mxu0 0.0
    %1483 = vmatpush1.msra.mxu0 0.0
    %1484 = vmatprep.subr.mxu0 0.0
    %1485 = vmatpush1.msra.mxu0 0.0
    %1486 = vmatprep.subr.mxu0 0.0
    %1487 = vmatpush1.msra.mxu0 0.0
    %1488 = vmatprep.subr.mxu0 0.0
    %1489 = vmatpush1.msra.mxu0 0.0
    %1490 = vmatprep.mubr.f32.mxu0 0.0
    %1491 = vmatmul.mubr.f32.gmra.mrb[0].mxu0 %v1424
    %v1492 = vpop.f32.mrb[0].mxu0
    %v1493 = vadd.f32 0.0, %v1492
    %v1494 = vpop.f32.mrb[0].mxu0
    %1495 = vdwg.mxu0
    %v1496 = vadd.f32 %v1347, %v1493
    %s1497 = scalar_lea.vmem %s2, 8
    %v1498 = vld [vmem:[%s1497] sm:$0xff]
    %v1500 = vsel %vm217, %v1115, 0
    %1502 = vmatprep.subr.mxu0 0.0
    %1503 = vmatpush1.xpose.msra.mxu0 %v1500
    %1504 = vmatprep.subr.mxu0 0.0
    %1505 = vmatpush1.xpose.msra.mxu0 0.0
    %1506 = vmatprep.subr.mxu0 0.0
    %1507 = vmatpush1.xpose.msra.mxu0 0.0
    %1508 = vmatprep.subr.mxu0 0.0
    %1509 = vmatpush1.xpose.msra.mxu0 0.0
    %1510 = vmatprep.subr.mxu0 0.0
    %1511 = vmatpush1.xpose.msra.mxu0 0.0
    %1512 = vmatprep.subr.mxu0 0.0
    %1513 = vmatpush1.xpose.msra.mxu0 0.0
    %1514 = vmatprep.subr.mxu0 0.0
    %1515 = vmatpush1.xpose.msra.mxu0 0.0
    %1516 = vmatprep.subr.mxu0 0.0
    %1517 = vmatpush1.xpose.msra.mxu0 0.0
    %1518 = vmatprep.subr.mxu0 0.0
    %1519 = vmatpush1.xpose.msra.mxu0 0.0
    %1520 = vmatprep.subr.mxu0 0.0
    %1521 = vmatpush1.xpose.msra.mxu0 0.0
    %1522 = vmatprep.subr.mxu0 0.0
    %1523 = vmatpush1.xpose.msra.mxu0 0.0
    %1524 = vmatprep.subr.mxu0 0.0
    %1525 = vmatpush1.xpose.msra.mxu0 0.0
    %1526 = vmatprep.subr.mxu0 0.0
    %1527 = vmatpush1.xpose.msra.mxu0 0.0
    %1528 = vmatprep.subr.mxu0 0.0
    %1529 = vmatpush1.xpose.msra.mxu0 0.0
    %1530 = vmatprep.subr.mxu0 0.0
    %1531 = vmatpush1.xpose.msra.mxu0 0.0
    %1532 = vmatprep.subr.mxu0 0.0
    %1533 = vmatpush1.xpose.msra.mxu0 0.0
    %1534 = vmatprep.subr.mxu0 0.0
    %1535 = vmatpush1.xpose.msra.mxu0 0.0
    %1536 = vmatprep.subr.mxu0 0.0
    %1537 = vmatpush1.xpose.msra.mxu0 0.0
    %1538 = vmatprep.subr.mxu0 0.0
    %1539 = vmatpush1.xpose.msra.mxu0 0.0
    %1540 = vmatprep.subr.mxu0 0.0
    %1541 = vmatpush1.xpose.msra.mxu0 0.0
    %1542 = vmatprep.subr.mxu0 0.0
    %1543 = vmatpush1.xpose.msra.mxu0 0.0
    %1544 = vmatprep.subr.mxu0 0.0
    %1545 = vmatpush1.xpose.msra.mxu0 0.0
    %1546 = vmatprep.subr.mxu0 0.0
    %1547 = vmatpush1.xpose.msra.mxu0 0.0
    %1548 = vmatprep.subr.mxu0 0.0
    %1549 = vmatpush1.xpose.msra.mxu0 0.0
    %1550 = vmatprep.subr.mxu0 0.0
    %1551 = vmatpush1.xpose.msra.mxu0 0.0
    %1552 = vmatprep.subr.mxu0 0.0
    %1553 = vmatpush1.xpose.msra.mxu0 0.0
    %1554 = vmatprep.subr.mxu0 0.0
    %1555 = vmatpush1.xpose.msra.mxu0 0.0
    %1556 = vmatprep.subr.mxu0 0.0
    %1557 = vmatpush1.xpose.msra.mxu0 0.0
    %1558 = vmatprep.subr.mxu0 0.0
    %1559 = vmatpush1.xpose.msra.mxu0 0.0
    %1560 = vmatprep.subr.mxu0 0.0
    %1561 = vmatpush1.xpose.msra.mxu0 0.0
    %1562 = vmatprep.subr.mxu0 0.0
    %1563 = vmatpush1.xpose.msra.mxu0 0.0
    %1564 = vmatprep.subr.mxu0 0.0
    %1565 = vmatpush1.xpose.msra.mxu0 0.0
    %1566 = vmatprep.mubr.f32.mxu0 0.0
    %1567 = vmatmul.mubr.f32.gmra.mrb[0].mxu0 %v1123
    %v1568 = vpop.f32.mrb[0].mxu0
    %v1569 = vadd.f32 0.0, %v1568
    %v1570 = vpop.f32.mrb[0].mxu0
    %1571 = vdwg.mxu0
    %v1573 = vsel %vm1198, %v1569, 0
    %1575 = vmatprep.subr.mxu0 0.0
    %1576 = vmatpush1.msra.mxu0 %v1118
    %1577 = vmatprep.subr.mxu0 0.0
    %1578 = vmatpush1.msra.mxu0 0.0
    %1579 = vmatprep.subr.mxu0 0.0
    %1580 = vmatpush1.msra.mxu0 0.0
    %1581 = vmatprep.subr.mxu0 0.0
    %1582 = vmatpush1.msra.mxu0 0.0
    %1583 = vmatprep.subr.mxu0 0.0
    %1584 = vmatpush1.msra.mxu0 0.0
    %1585 = vmatprep.subr.mxu0 0.0
    %1586 = vmatpush1.msra.mxu0 0.0
    %1587 = vmatprep.subr.mxu0 0.0
    %1588 = vmatpush1.msra.mxu0 0.0
    %1589 = vmatprep.subr.mxu0 0.0
    %1590 = vmatpush1.msra.mxu0 0.0
    %1591 = vmatprep.subr.mxu0 0.0
    %1592 = vmatpush1.msra.mxu0 0.0
    %1593 = vmatprep.subr.mxu0 0.0
    %1594 = vmatpush1.msra.mxu0 0.0
    %1595 = vmatprep.subr.mxu0 0.0
    %1596 = vmatpush1.msra.mxu0 0.0
    %1597 = vmatprep.subr.mxu0 0.0
    %1598 = vmatpush1.msra.mxu0 0.0
    %1599 = vmatprep.subr.mxu0 0.0
    %1600 = vmatpush1.msra.mxu0 0.0
    %1601 = vmatprep.subr.mxu0 0.0
    %1602 = vmatpush1.msra.mxu0 0.0
    %1603 = vmatprep.subr.mxu0 0.0
    %1604 = vmatpush1.msra.mxu0 0.0
    %1605 = vmatprep.subr.mxu0 0.0
    %1606 = vmatpush1.msra.mxu0 0.0
    %1607 = vmatprep.subr.mxu0 0.0
    %1608 = vmatpush1.msra.mxu0 0.0
    %1609 = vmatprep.subr.mxu0 0.0
    %1610 = vmatpush1.msra.mxu0 0.0
    %1611 = vmatprep.subr.mxu0 0.0
    %1612 = vmatpush1.msra.mxu0 0.0
    %1613 = vmatprep.subr.mxu0 0.0
    %1614 = vmatpush1.msra.mxu0 0.0
    %1615 = vmatprep.subr.mxu0 0.0
    %1616 = vmatpush1.msra.mxu0 0.0
    %1617 = vmatprep.subr.mxu0 0.0
    %1618 = vmatpush1.msra.mxu0 0.0
    %1619 = vmatprep.subr.mxu0 0.0
    %1620 = vmatpush1.msra.mxu0 0.0
    %1621 = vmatprep.subr.mxu0 0.0
    %1622 = vmatpush1.msra.mxu0 0.0
    %1623 = vmatprep.subr.mxu0 0.0
    %1624 = vmatpush1.msra.mxu0 0.0
    %1625 = vmatprep.subr.mxu0 0.0
    %1626 = vmatpush1.msra.mxu0 0.0
    %1627 = vmatprep.subr.mxu0 0.0
    %1628 = vmatpush1.msra.mxu0 0.0
    %1629 = vmatprep.subr.mxu0 0.0
    %1630 = vmatpush1.msra.mxu0 0.0
    %1631 = vmatprep.subr.mxu0 0.0
    %1632 = vmatpush1.msra.mxu0 0.0
    %1633 = vmatprep.subr.mxu0 0.0
    %1634 = vmatpush1.msra.mxu0 0.0
    %1635 = vmatprep.subr.mxu0 0.0
    %1636 = vmatpush1.msra.mxu0 0.0
    %1637 = vmatprep.subr.mxu0 0.0
    %1638 = vmatpush1.msra.mxu0 0.0
    %1639 = vmatprep.mubr.f32.mxu0 0.0
    %1640 = vmatmul.mubr.f32.gmra.mrb[0].mxu0 %v1573
    %v1641 = vpop.f32.mrb[0].mxu0
    %v1642 = vadd.f32 0.0, %v1641
    %v1643 = vpop.f32.mrb[0].mxu0
    %1644 = vdwg.mxu0
    %v1646 = vsel %vm1272, %v1498, 0
    %1648 = vmatprep.subr.mxu0 0.0
    %1649 = vmatpush1.msra.mxu0 %v1278
    %1650 = vmatprep.subr.mxu0 0.0
    %1651 = vmatpush1.msra.mxu0 0.0
    %1652 = vmatprep.subr.mxu0 0.0
    %1653 = vmatpush1.msra.mxu0 0.0
    %1654 = vmatprep.subr.mxu0 0.0
    %1655 = vmatpush1.msra.mxu0 0.0
    %1656 = vmatprep.subr.mxu0 0.0
    %1657 = vmatpush1.msra.mxu0 0.0
    %1658 = vmatprep.subr.mxu0 0.0
    %1659 = vmatpush1.msra.mxu0 0.0
    %1660 = vmatprep.subr.mxu0 0.0
    %1661 = vmatpush1.msra.mxu0 0.0
    %1662 = vmatprep.subr.mxu0 0.0
    %1663 = vmatpush1.msra.mxu0 0.0
    %1664 = vmatprep.subr.mxu0 0.0
    %1665 = vmatpush1.msra.mxu0 0.0
    %1666 = vmatprep.subr.mxu0 0.0
    %1667 = vmatpush1.msra.mxu0 0.0
    %1668 = vmatprep.subr.mxu0 0.0
    %1669 = vmatpush1.msra.mxu0 0.0
    %1670 = vmatprep.subr.mxu0 0.0
    %1671 = vmatpush1.msra.mxu0 0.0
    %1672 = vmatprep.subr.mxu0 0.0
    %1673 = vmatpush1.msra.mxu0 0.0
    %1674 = vmatprep.subr.mxu0 0.0
    %1675 = vmatpush1.msra.mxu0 0.0
    %1676 = vmatprep.subr.mxu0 0.0
    %1677 = vmatpush1.msra.mxu0 0.0
    %1678 = vmatprep.subr.mxu0 0.0
    %1679 = vmatpush1.msra.mxu0 0.0
    %1680 = vmatprep.subr.mxu0 0.0
    %1681 = vmatpush1.msra.mxu0 0.0
    %1682 = vmatprep.subr.mxu0 0.0
    %1683 = vmatpush1.msra.mxu0 0.0
    %1684 = vmatprep.subr.mxu0 0.0
    %1685 = vmatpush1.msra.mxu0 0.0
    %1686 = vmatprep.subr.mxu0 0.0
    %1687 = vmatpush1.msra.mxu0 0.0
    %1688 = vmatprep.subr.mxu0 0.0
    %1689 = vmatpush1.msra.mxu0 0.0
    %1690 = vmatprep.subr.mxu0 0.0
    %1691 = vmatpush1.msra.mxu0 0.0
    %1692 = vmatprep.subr.mxu0 0.0
    %1693 = vmatpush1.msra.mxu0 0.0
    %1694 = vmatprep.subr.mxu0 0.0
    %1695 = vmatpush1.msra.mxu0 0.0
    %1696 = vmatprep.subr.mxu0 0.0
    %1697 = vmatpush1.msra.mxu0 0.0
    %1698 = vmatprep.subr.mxu0 0.0
    %1699 = vmatpush1.msra.mxu0 0.0
    %1700 = vmatprep.subr.mxu0 0.0
    %1701 = vmatpush1.msra.mxu0 0.0
    %1702 = vmatprep.subr.mxu0 0.0
    %1703 = vmatpush1.msra.mxu0 0.0
    %1704 = vmatprep.subr.mxu0 0.0
    %1705 = vmatpush1.msra.mxu0 0.0
    %1706 = vmatprep.subr.mxu0 0.0
    %1707 = vmatpush1.msra.mxu0 0.0
    %1708 = vmatprep.subr.mxu0 0.0
    %1709 = vmatpush1.msra.mxu0 0.0
    %1710 = vmatprep.subr.mxu0 0.0
    %1711 = vmatpush1.msra.mxu0 0.0
    %1712 = vmatprep.mubr.f32.mxu0 0.0
    %1713 = vmatmul.mubr.f32.gmra.mrb[0].mxu0 %v1646
    %v1714 = vpop.f32.mrb[0].mxu0
    %v1715 = vadd.f32 %v1642, %v1714
    %v1716 = vpop.f32.mrb[0].mxu0
    %1717 = vdwg.mxu0
    %1718 = vmatprep.subr.mxu0 0.0
    %1719 = vmatpush1.xpose.msra.mxu0 %v1500
    %1720 = vmatprep.subr.mxu0 0.0
    %1721 = vmatpush1.xpose.msra.mxu0 0.0
    %1722 = vmatprep.subr.mxu0 0.0
    %1723 = vmatpush1.xpose.msra.mxu0 0.0
    %1724 = vmatprep.subr.mxu0 0.0
    %1725 = vmatpush1.xpose.msra.mxu0 0.0
    %1726 = vmatprep.subr.mxu0 0.0
    %1727 = vmatpush1.xpose.msra.mxu0 0.0
    %1728 = vmatprep.subr.mxu0 0.0
    %1729 = vmatpush1.xpose.msra.mxu0 0.0
    %1730 = vmatprep.subr.mxu0 0.0
    %1731 = vmatpush1.xpose.msra.mxu0 0.0
    %1732 = vmatprep.subr.mxu0 0.0
    %1733 = vmatpush1.xpose.msra.mxu0 0.0
    %1734 = vmatprep.subr.mxu0 0.0
    %1735 = vmatpush1.xpose.msra.mxu0 0.0
    %1736 = vmatprep.subr.mxu0 0.0
    %1737 = vmatpush1.xpose.msra.mxu0 0.0
    %1738 = vmatprep.subr.mxu0 0.0
    %1739 = vmatpush1.xpose.msra.mxu0 0.0
    %1740 = vmatprep.subr.mxu0 0.0
    %1741 = vmatpush1.xpose.msra.mxu0 0.0
    %1742 = vmatprep.subr.mxu0 0.0
    %1743 = vmatpush1.xpose.msra.mxu0 0.0
    %1744 = vmatprep.subr.mxu0 0.0
    %1745 = vmatpush1.xpose.msra.mxu0 0.0
    %1746 = vmatprep.subr.mxu0 0.0
    %1747 = vmatpush1.xpose.msra.mxu0 0.0
    %1748 = vmatprep.subr.mxu0 0.0
    %1749 = vmatpush1.xpose.msra.mxu0 0.0
    %1750 = vmatprep.subr.mxu0 0.0
    %1751 = vmatpush1.xpose.msra.mxu0 0.0
    %1752 = vmatprep.subr.mxu0 0.0
    %1753 = vmatpush1.xpose.msra.mxu0 0.0
    %1754 = vmatprep.subr.mxu0 0.0
    %1755 = vmatpush1.xpose.msra.mxu0 0.0
    %1756 = vmatprep.subr.mxu0 0.0
    %1757 = vmatpush1.xpose.msra.mxu0 0.0
    %1758 = vmatprep.subr.mxu0 0.0
    %1759 = vmatpush1.xpose.msra.mxu0 0.0
    %1760 = vmatprep.subr.mxu0 0.0
    %1761 = vmatpush1.xpose.msra.mxu0 0.0
    %1762 = vmatprep.subr.mxu0 0.0
    %1763 = vmatpush1.xpose.msra.mxu0 0.0
    %1764 = vmatprep.subr.mxu0 0.0
    %1765 = vmatpush1.xpose.msra.mxu0 0.0
    %1766 = vmatprep.subr.mxu0 0.0
    %1767 = vmatpush1.xpose.msra.mxu0 0.0
    %1768 = vmatprep.subr.mxu0 0.0
    %1769 = vmatpush1.xpose.msra.mxu0 0.0
    %1770 = vmatprep.subr.mxu0 0.0
    %1771 = vmatpush1.xpose.msra.mxu0 0.0
    %1772 = vmatprep.subr.mxu0 0.0
    %1773 = vmatpush1.xpose.msra.mxu0 0.0
    %1774 = vmatprep.subr.mxu0 0.0
    %1775 = vmatpush1.xpose.msra.mxu0 0.0
    %1776 = vmatprep.subr.mxu0 0.0
    %1777 = vmatpush1.xpose.msra.mxu0 0.0
    %1778 = vmatprep.subr.mxu0 0.0
    %1779 = vmatpush1.xpose.msra.mxu0 0.0
    %1780 = vmatprep.subr.mxu0 0.0
    %1781 = vmatpush1.xpose.msra.mxu0 0.0
    %1782 = vmatprep.mubr.f32.mxu0 0.0
    %1783 = vmatmul.mubr.f32.gmra.mrb[0].mxu0 %v1351
    %v1784 = vpop.f32.mrb[0].mxu0
    %v1785 = vadd.f32 0.0, %v1784
    %v1786 = vpop.f32.mrb[0].mxu0
    %1787 = vdwg.mxu0
    %v1789 = vsel %vm1198, %v1785, 0
    %1791 = vmatprep.subr.mxu0 0.0
    %1792 = vmatpush1.msra.mxu0 %v1119
    %1793 = vmatprep.subr.mxu0 0.0
    %1794 = vmatpush1.msra.mxu0 0.0
    %1795 = vmatprep.subr.mxu0 0.0
    %1796 = vmatpush1.msra.mxu0 0.0
    %1797 = vmatprep.subr.mxu0 0.0
    %1798 = vmatpush1.msra.mxu0 0.0
    %1799 = vmatprep.subr.mxu0 0.0
    %1800 = vmatpush1.msra.mxu0 0.0
    %1801 = vmatprep.subr.mxu0 0.0
    %1802 = vmatpush1.msra.mxu0 0.0
    %1803 = vmatprep.subr.mxu0 0.0
    %1804 = vmatpush1.msra.mxu0 0.0
    %1805 = vmatprep.subr.mxu0 0.0
    %1806 = vmatpush1.msra.mxu0 0.0
    %1807 = vmatprep.subr.mxu0 0.0
    %1808 = vmatpush1.msra.mxu0 0.0
    %1809 = vmatprep.subr.mxu0 0.0
    %1810 = vmatpush1.msra.mxu0 0.0
    %1811 = vmatprep.subr.mxu0 0.0
    %1812 = vmatpush1.msra.mxu0 0.0
    %1813 = vmatprep.subr.mxu0 0.0
    %1814 = vmatpush1.msra.mxu0 0.0
    %1815 = vmatprep.subr.mxu0 0.0
    %1816 = vmatpush1.msra.mxu0 0.0
    %1817 = vmatprep.subr.mxu0 0.0
    %1818 = vmatpush1.msra.mxu0 0.0
    %1819 = vmatprep.subr.mxu0 0.0
    %1820 = vmatpush1.msra.mxu0 0.0
    %1821 = vmatprep.subr.mxu0 0.0
    %1822 = vmatpush1.msra.mxu0 0.0
    %1823 = vmatprep.subr.mxu0 0.0
    %1824 = vmatpush1.msra.mxu0 0.0
    %1825 = vmatprep.subr.mxu0 0.0
    %1826 = vmatpush1.msra.mxu0 0.0
    %1827 = vmatprep.subr.mxu0 0.0
    %1828 = vmatpush1.msra.mxu0 0.0
    %1829 = vmatprep.subr.mxu0 0.0
    %1830 = vmatpush1.msra.mxu0 0.0
    %1831 = vmatprep.subr.mxu0 0.0
    %1832 = vmatpush1.msra.mxu0 0.0
    %1833 = vmatprep.subr.mxu0 0.0
    %1834 = vmatpush1.msra.mxu0 0.0
    %1835 = vmatprep.subr.mxu0 0.0
    %1836 = vmatpush1.msra.mxu0 0.0
    %1837 = vmatprep.subr.mxu0 0.0
    %1838 = vmatpush1.msra.mxu0 0.0
    %1839 = vmatprep.subr.mxu0 0.0
    %1840 = vmatpush1.msra.mxu0 0.0
    %1841 = vmatprep.subr.mxu0 0.0
    %1842 = vmatpush1.msra.mxu0 0.0
    %1843 = vmatprep.subr.mxu0 0.0
    %1844 = vmatpush1.msra.mxu0 0.0
    %1845 = vmatprep.subr.mxu0 0.0
    %1846 = vmatpush1.msra.mxu0 0.0
    %1847 = vmatprep.subr.mxu0 0.0
    %1848 = vmatpush1.msra.mxu0 0.0
    %1849 = vmatprep.subr.mxu0 0.0
    %1850 = vmatpush1.msra.mxu0 0.0
    %1851 = vmatprep.subr.mxu0 0.0
    %1852 = vmatpush1.msra.mxu0 0.0
    %1853 = vmatprep.subr.mxu0 0.0
    %1854 = vmatpush1.msra.mxu0 0.0
    %1855 = vmatprep.mubr.f32.mxu0 0.0
    %1856 = vmatmul.mubr.f32.gmra.mrb[0].mxu0 %v1789
    %v1857 = vpop.f32.mrb[0].mxu0
    %v1858 = vadd.f32 0.0, %v1857
    %v1859 = vpop.f32.mrb[0].mxu0
    %1860 = vdwg.mxu0
    %v1861 = vadd.f32 %v1715, %v1858
    %v1862 = vld [vmem:[%s15] sm:$0xff]
    %v1863 = vld [vmem:[%s15 + $0x8] sm:$0xff]
    %v1864 = vld [vmem:[%s15 + $0x10] sm:$0xff]
    %v1865 = vld [vmem:[%s15 + $0x18] sm:$0xff]
    %v1866 = vld [vmem:[%s14] sm:$0x1]
    %v1867 = vld [vmem:[%s16] sm:$0xff]
    %v1868 = vld [vmem:[%s16 + $0x8] sm:$0xff]
    %v1869 = vld [vmem:[%s16 + $0x10] sm:$0xff]
    %v1870 = vld [vmem:[%s16 + $0x18] sm:$0xff]
    %v1871 = vld [vmem:[%s17] sm:$0xff]
    %v1872 = vld [vmem:[%s17 + $0x8] sm:$0xff]
    %v1873 = vld [vmem:[%s17 + $0x10] sm:$0xff]
    %v1874 = vld [vmem:[%s17 + $0x18] sm:$0xff]
    %v1875 = vld [vmem:[%s18] sm:$0x1]
    %v1877 = vrot.slane %v1861, 7
    %vm1879 = vcmask 1040384
    %v1880 = vsel %vm1879, %v1496, %v1877
    %v1882 = vsel %vm299, 0.0, 0
    %1884 = vmatprep.subr.mxu0 0.0
    %1885 = vmatpush1.msra.mxu0 %v1862
    %1886 = vmatprep.subr.mxu0 0.0
    %1887 = vmatpush1.msra.mxu0 %v1863
    %1888 = vmatprep.subr.mxu0 0.0
    %1889 = vmatpush1.msra.mxu0 %v1864
    %1890 = vmatprep.subr.mxu0 0.0
    %1891 = vmatpush1.msra.mxu0 %v1865
    %1892 = vmatprep.subr.mxu0 0.0
    %1893 = vmatpush1.msra.mxu0 0.0
    %1894 = vmatprep.subr.mxu0 0.0
    %1895 = vmatpush1.msra.mxu0 0.0
    %1896 = vmatprep.subr.mxu0 0.0
    %1897 = vmatpush1.msra.mxu0 0.0
    %1898 = vmatprep.subr.mxu0 0.0
    %1899 = vmatpush1.msra.mxu0 0.0
    %1900 = vmatprep.subr.mxu0 0.0
    %1901 = vmatpush1.msra.mxu0 0.0
    %1902 = vmatprep.subr.mxu0 0.0
    %1903 = vmatpush1.msra.mxu0 0.0
    %1904 = vmatprep.subr.mxu0 0.0
    %1905 = vmatpush1.msra.mxu0 0.0
    %1906 = vmatprep.subr.mxu0 0.0
    %1907 = vmatpush1.msra.mxu0 0.0
    %1908 = vmatprep.subr.mxu0 0.0
    %1909 = vmatpush1.msra.mxu0 0.0
    %1910 = vmatprep.subr.mxu0 0.0
    %1911 = vmatpush1.msra.mxu0 0.0
    %1912 = vmatprep.subr.mxu0 0.0
    %1913 = vmatpush1.msra.mxu0 0.0
    %1914 = vmatprep.subr.mxu0 0.0
    %1915 = vmatpush1.msra.mxu0 0.0
    %1916 = vmatprep.subr.mxu0 0.0
    %1917 = vmatpush1.msra.mxu0 0.0
    %1918 = vmatprep.subr.mxu0 0.0
    %1919 = vmatpush1.msra.mxu0 0.0
    %1920 = vmatprep.subr.mxu0 0.0
    %1921 = vmatpush1.msra.mxu0 0.0
    %1922 = vmatprep.subr.mxu0 0.0
    %1923 = vmatpush1.msra.mxu0 0.0
    %1924 = vmatprep.subr.mxu0 0.0
    %1925 = vmatpush1.msra.mxu0 0.0
    %1926 = vmatprep.subr.mxu0 0.0
    %1927 = vmatpush1.msra.mxu0 0.0
    %1928 = vmatprep.subr.mxu0 0.0
    %1929 = vmatpush1.msra.mxu0 0.0
    %1930 = vmatprep.subr.mxu0 0.0
    %1931 = vmatpush1.msra.mxu0 0.0
    %1932 = vmatprep.subr.mxu0 0.0
    %1933 = vmatpush1.msra.mxu0 0.0
    %1934 = vmatprep.subr.mxu0 0.0
    %1935 = vmatpush1.msra.mxu0 0.0
    %1936 = vmatprep.subr.mxu0 0.0
    %1937 = vmatpush1.msra.mxu0 0.0
    %1938 = vmatprep.subr.mxu0 0.0
    %1939 = vmatpush1.msra.mxu0 0.0
    %1940 = vmatprep.subr.mxu0 0.0
    %1941 = vmatpush1.msra.mxu0 0.0
    %1942 = vmatprep.subr.mxu0 0.0
    %1943 = vmatpush1.msra.mxu0 0.0
    %1944 = vmatprep.subr.mxu0 0.0
    %1945 = vmatpush1.msra.mxu0 0.0
    %1946 = vmatprep.subr.mxu0 0.0
    %1947 = vmatpush1.msra.mxu0 0.0
    %1948 = vmatprep.mubr.f32.mxu0 0.0
    %1949 = vmatmul.mubr.f32.gmra.mrb[0].mxu0 %v1882
    %v1950 = vpop.f32.mrb[0].mxu0
    %v1951 = vadd.f32 0.0, %v1950
    %v1952 = vpop.f32.mrb[0].mxu0
    %1953 = vdwg.mxu0
    %v1954 = vadd.f32 %v1880, %v1951
    %v1956 = vlaneseq
    %v1957 = vshrl.u32 %v1956, 7
    %v1958 = vsub.s32 0, %v1957
    %v1959 = vrot.slane %v1866, %v1958
    %v1961 = vadd.f32 %v1954, %v1959
    %v1962 = vxor.u32 %v1961, 2147483648
    %v1963 = vmul.f32 %v1962, 1.442695
    %v1964 = vpow.pop %v1963
    %v1965 = vadd.f32 %v1964, 1.0
    %v1966 = vrcp.pop %v1965
    %v1967 = vmul.f32 1.0, %v1966
    %v1968 = vtanh.pop %v1961
    %v1969 = vmul.f32 %v1967, 0.0
    %1971 = vrot.lane.b32.xlu0 %v1968, 64
    %v1972 = vpop.permute.xlu0 %1971
    %v1974 = vmul.f32 %v1967, %v1972
    %1976 = vrot.lane.b32.xlu0 %v1974, 32
    %v1977 = vpop.permute.xlu0 %1976
    %v1979 = vadd.f32 %v1969, %v1977
    %v1980 = vtanh.pop %v1979
    %1982 = vrot.lane.b32.xlu0 %v1980, 64
    %v1983 = vpop.permute.xlu0 %1982
    %v1985 = vmul.f32 %v1967, %v1983
    %1986 = vmatprep.subr.mxu0 0.0
    %1987 = vmatpush1.msra.mxu0 %v1871
    %1988 = vmatprep.subr.mxu0 0.0
    %1989 = vmatpush1.msra.mxu0 %v1872
    %1990 = vmatprep.subr.mxu0 0.0
    %1991 = vmatpush1.msra.mxu0 %v1873
    %1992 = vmatprep.subr.mxu0 0.0
    %1993 = vmatpush1.msra.mxu0 %v1874
    %1994 = vmatprep.subr.mxu0 0.0
    %1995 = vmatpush1.msra.mxu0 0.0
    %1996 = vmatprep.subr.mxu0 0.0
    %1997 = vmatpush1.msra.mxu0 0.0
    %1998 = vmatprep.subr.mxu0 0.0
    %1999 = vmatpush1.msra.mxu0 0.0
    %2000 = vmatprep.subr.mxu0 0.0
    %2001 = vmatpush1.msra.mxu0 0.0
    %2002 = vmatprep.subr.mxu0 0.0
    %2003 = vmatpush1.msra.mxu0 0.0
    %2004 = vmatprep.subr.mxu0 0.0
    %2005 = vmatpush1.msra.mxu0 0.0
    %2006 = vmatprep.subr.mxu0 0.0
    %2007 = vmatpush1.msra.mxu0 0.0
    %2008 = vmatprep.subr.mxu0 0.0
    %2009 = vmatpush1.msra.mxu0 0.0
    %2010 = vmatprep.subr.mxu0 0.0
    %2011 = vmatpush1.msra.mxu0 0.0
    %2012 = vmatprep.subr.mxu0 0.0
    %2013 = vmatpush1.msra.mxu0 0.0
    %2014 = vmatprep.subr.mxu0 0.0
    %2015 = vmatpush1.msra.mxu0 0.0
    %2016 = vmatprep.subr.mxu0 0.0
    %2017 = vmatpush1.msra.mxu0 0.0
    %2018 = vmatprep.subr.mxu0 0.0
    %2019 = vmatpush1.msra.mxu0 0.0
    %2020 = vmatprep.subr.mxu0 0.0
    %2021 = vmatpush1.msra.mxu0 0.0
    %2022 = vmatprep.subr.mxu0 0.0
    %2023 = vmatpush1.msra.mxu0 0.0
    %2024 = vmatprep.subr.mxu0 0.0
    %2025 = vmatpush1.msra.mxu0 0.0
    %2026 = vmatprep.subr.mxu0 0.0
    %2027 = vmatpush1.msra.mxu0 0.0
    %2028 = vmatprep.subr.mxu0 0.0
    %2029 = vmatpush1.msra.mxu0 0.0
    %2030 = vmatprep.subr.mxu0 0.0
    %2031 = vmatpush1.msra.mxu0 0.0
    %2032 = vmatprep.subr.mxu0 0.0
    %2033 = vmatpush1.msra.mxu0 0.0
    %2034 = vmatprep.subr.mxu0 0.0
    %2035 = vmatpush1.msra.mxu0 0.0
    %2036 = vmatprep.subr.mxu0 0.0
    %2037 = vmatpush1.msra.mxu0 0.0
    %2038 = vmatprep.subr.mxu0 0.0
    %2039 = vmatpush1.msra.mxu0 0.0
    %2040 = vmatprep.subr.mxu0 0.0
    %2041 = vmatpush1.msra.mxu0 0.0
    %2042 = vmatprep.subr.mxu0 0.0
    %2043 = vmatpush1.msra.mxu0 0.0
    %2044 = vmatprep.subr.mxu0 0.0
    %2045 = vmatpush1.msra.mxu0 0.0
    %2046 = vmatprep.subr.mxu0 0.0
    %2047 = vmatpush1.msra.mxu0 0.0
    %2048 = vmatprep.subr.mxu0 0.0
    %2049 = vmatpush1.msra.mxu0 0.0
    %2050 = vmatprep.mubr.f32.mxu0 0.0
    %2051 = vmatmul.mubr.f32.gmra.mrb[0].mxu0 %v1882
    %v2052 = vpop.f32.mrb[0].mxu0
    %v2053 = vadd.f32 0.0, %v2052
    %v2054 = vpop.f32.mrb[0].mxu0
    %2055 = vdwg.mxu0
    %2057 = vrot.lane.b32.xlu0 %v1985, 32
    %v2058 = vpop.permute.xlu0 %2057
    %v2059 = vsel %vm299, %v2058, 0
    %2061 = vmatprep.subr.mxu0 0.0
    %2062 = vmatpush1.msra.mxu0 %v1867
    %2063 = vmatprep.subr.mxu0 0.0
    %2064 = vmatpush1.msra.mxu0 %v1868
    %2065 = vmatprep.subr.mxu0 0.0
    %2066 = vmatpush1.msra.mxu0 %v1869
    %2067 = vmatprep.subr.mxu0 0.0
    %2068 = vmatpush1.msra.mxu0 %v1870
    %2069 = vmatprep.subr.mxu0 0.0
    %2070 = vmatpush1.msra.mxu0 0.0
    %2071 = vmatprep.subr.mxu0 0.0
    %2072 = vmatpush1.msra.mxu0 0.0
    %2073 = vmatprep.subr.mxu0 0.0
    %2074 = vmatpush1.msra.mxu0 0.0
    %2075 = vmatprep.subr.mxu0 0.0
    %2076 = vmatpush1.msra.mxu0 0.0
    %2077 = vmatprep.subr.mxu0 0.0
    %2078 = vmatpush1.msra.mxu0 0.0
    %2079 = vmatprep.subr.mxu0 0.0
    %2080 = vmatpush1.msra.mxu0 0.0
    %2081 = vmatprep.subr.mxu0 0.0
    %2082 = vmatpush1.msra.mxu0 0.0
    %2083 = vmatprep.subr.mxu0 0.0
    %2084 = vmatpush1.msra.mxu0 0.0
    %2085 = vmatprep.subr.mxu0 0.0
    %2086 = vmatpush1.msra.mxu0 0.0
    %2087 = vmatprep.subr.mxu0 0.0
    %2088 = vmatpush1.msra.mxu0 0.0
    %2089 = vmatprep.subr.mxu0 0.0
    %2090 = vmatpush1.msra.mxu0 0.0
    %2091 = vmatprep.subr.mxu0 0.0
    %2092 = vmatpush1.msra.mxu0 0.0
    %2093 = vmatprep.subr.mxu0 0.0
    %2094 = vmatpush1.msra.mxu0 0.0
    %2095 = vmatprep.subr.mxu0 0.0
    %2096 = vmatpush1.msra.mxu0 0.0
    %2097 = vmatprep.subr.mxu0 0.0
    %2098 = vmatpush1.msra.mxu0 0.0
    %2099 = vmatprep.subr.mxu0 0.0
    %2100 = vmatpush1.msra.mxu0 0.0
    %2101 = vmatprep.subr.mxu0 0.0
    %2102 = vmatpush1.msra.mxu0 0.0
    %2103 = vmatprep.subr.mxu0 0.0
    %2104 = vmatpush1.msra.mxu0 0.0
    %2105 = vmatprep.subr.mxu0 0.0
    %2106 = vmatpush1.msra.mxu0 0.0
    %2107 = vmatprep.subr.mxu0 0.0
    %2108 = vmatpush1.msra.mxu0 0.0
    %2109 = vmatprep.subr.mxu0 0.0
    %2110 = vmatpush1.msra.mxu0 0.0
    %2111 = vmatprep.subr.mxu0 0.0
    %2112 = vmatpush1.msra.mxu0 0.0
    %2113 = vmatprep.subr.mxu0 0.0
    %2114 = vmatpush1.msra.mxu0 0.0
    %2115 = vmatprep.subr.mxu0 0.0
    %2116 = vmatpush1.msra.mxu0 0.0
    %2117 = vmatprep.subr.mxu0 0.0
    %2118 = vmatpush1.msra.mxu0 0.0
    %2119 = vmatprep.subr.mxu0 0.0
    %2120 = vmatpush1.msra.mxu0 0.0
    %2121 = vmatprep.subr.mxu0 0.0
    %2122 = vmatpush1.msra.mxu0 0.0
    %2123 = vmatprep.subr.mxu0 0.0
    %2124 = vmatpush1.msra.mxu0 0.0
    %2125 = vmatprep.mubr.f32.mxu0 0.0
    %2126 = vmatmul.mubr.f32.gmra.mrb[0].mxu0 %v2059
    %v2127 = vpop.f32.mrb[0].mxu0
    %v2128 = vadd.f32 %v2053, %v2127
    %v2129 = vpop.f32.mrb[0].mxu0
    %2130 = vdwg.mxu0
    %v2132 = vlaneseq
    %v2133 = vshrl.u32 %v2132, 7
    %v2134 = vsub.s32 0, %v2133
    %v2135 = vrot.slane %v1875, %v2134
    %v2137 = vadd.f32 %v2128, %v2135
    %v2138 = vxor.u32 %v2137, 2147483648
    %v2139 = vmul.f32 %v2138, 1.442695
    %v2140 = vpow.pop %v2139
    %v2141 = vadd.f32 %v2140, 1.0
    %v2142 = vrcp.pop %v2141
    %v2143 = vmul.f32 1.0, %v2142
    %v2144 = vtanh.pop %v2137
    %v2145 = vmul.f32 %v2143, 0.0
    %2147 = vrot.lane.b32.xlu0 %v2144, 64
    %v2148 = vpop.permute.xlu0 %2147
    %v2150 = vmul.f32 %v2143, %v2148
    %2152 = vrot.lane.b32.xlu0 %v2150, 32
    %v2153 = vpop.permute.xlu0 %2152
    %v2155 = vadd.f32 %v2145, %v2153
    %v2156 = vtanh.pop %v2155
    %2158 = vrot.lane.b32.xlu0 %v2156, 64
    %v2159 = vpop.permute.xlu0 %2158
    %v2161 = vmul.f32 %v2143, %v2159
    %v2163 = vrot.slane %v1496, 1
    %v2165 = vsel %vm1879, %v2163, %v1861
    %2166 = vmatprep.subr.mxu0 0.0
    %2167 = vmatpush1.msra.mxu0 %v1862
    %2168 = vmatprep.subr.mxu0 0.0
    %2169 = vmatpush1.msra.mxu0 %v1863
    %2170 = vmatprep.subr.mxu0 0.0
    %2171 = vmatpush1.msra.mxu0 %v1864
    %2172 = vmatprep.subr.mxu0 0.0
    %2173 = vmatpush1.msra.mxu0 %v1865
    %2174 = vmatprep.subr.mxu0 0.0
    %2175 = vmatpush1.msra.mxu0 0.0
    %2176 = vmatprep.subr.mxu0 0.0
    %2177 = vmatpush1.msra.mxu0 0.0
    %2178 = vmatprep.subr.mxu0 0.0
    %2179 = vmatpush1.msra.mxu0 0.0
    %2180 = vmatprep.subr.mxu0 0.0
    %2181 = vmatpush1.msra.mxu0 0.0
    %2182 = vmatprep.subr.mxu0 0.0
    %2183 = vmatpush1.msra.mxu0 0.0
    %2184 = vmatprep.subr.mxu0 0.0
    %2185 = vmatpush1.msra.mxu0 0.0
    %2186 = vmatprep.subr.mxu0 0.0
    %2187 = vmatpush1.msra.mxu0 0.0
    %2188 = vmatprep.subr.mxu0 0.0
    %2189 = vmatpush1.msra.mxu0 0.0
    %2190 = vmatprep.subr.mxu0 0.0
    %2191 = vmatpush1.msra.mxu0 0.0
    %2192 = vmatprep.subr.mxu0 0.0
    %2193 = vmatpush1.msra.mxu0 0.0
    %2194 = vmatprep.subr.mxu0 0.0
    %2195 = vmatpush1.msra.mxu0 0.0
    %2196 = vmatprep.subr.mxu0 0.0
    %2197 = vmatpush1.msra.mxu0 0.0
    %2198 = vmatprep.subr.mxu0 0.0
    %2199 = vmatpush1.msra.mxu0 0.0
    %2200 = vmatprep.subr.mxu0 0.0
    %2201 = vmatpush1.msra.mxu0 0.0
    %2202 = vmatprep.subr.mxu0 0.0
    %2203 = vmatpush1.msra.mxu0 0.0
    %2204 = vmatprep.subr.mxu0 0.0
    %2205 = vmatpush1.msra.mxu0 0.0
    %2206 = vmatprep.subr.mxu0 0.0
    %2207 = vmatpush1.msra.mxu0 0.0
    %2208 = vmatprep.subr.mxu0 0.0
    %2209 = vmatpush1.msra.mxu0 0.0
    %2210 = vmatprep.subr.mxu0 0.0
    %2211 = vmatpush1.msra.mxu0 0.0
    %2212 = vmatprep.subr.mxu0 0.0
    %2213 = vmatpush1.msra.mxu0 0.0
    %2214 = vmatprep.subr.mxu0 0.0
    %2215 = vmatpush1.msra.mxu0 0.0
    %2216 = vmatprep.subr.mxu0 0.0
    %2217 = vmatpush1.msra.mxu0 0.0
    %2218 = vmatprep.subr.mxu0 0.0
    %2219 = vmatpush1.msra.mxu0 0.0
    %2220 = vmatprep.subr.mxu0 0.0
    %2221 = vmatpush1.msra.mxu0 0.0
    %2222 = vmatprep.subr.mxu0 0.0
    %2223 = vmatpush1.msra.mxu0 0.0
    %2224 = vmatprep.subr.mxu0 0.0
    %2225 = vmatpush1.msra.mxu0 0.0
    %2226 = vmatprep.subr.mxu0 0.0
    %2227 = vmatpush1.msra.mxu0 0.0
    %2228 = vmatprep.subr.mxu0 0.0
    %2229 = vmatpush1.msra.mxu0 0.0
    %2230 = vmatprep.mubr.f32.mxu0 0.0
    %2231 = vmatmul.mubr.f32.gmra.mrb[0].mxu0 %v2059
    %v2232 = vpop.f32.mrb[0].mxu0
    %v2233 = vadd.f32 0.0, %v2232
    %v2234 = vpop.f32.mrb[0].mxu0
    %2235 = vdwg.mxu0
    %v2236 = vadd.f32 %v2165, %v2233
    %v2237 = vadd.f32 %v2236, %v1959
    %v2238 = vxor.u32 %v2237, 2147483648
    %v2239 = vmul.f32 %v2238, 1.442695
    %v2240 = vpow.pop %v2239
    %v2241 = vadd.f32 %v2240, 1.0
    %v2242 = vrcp.pop %v2241
    %v2243 = vmul.f32 1.0, %v2242
    %v2244 = vtanh.pop %v2237
    %v2245 = vmul.f32 %v2243, %v1979
    %2247 = vrot.lane.b32.xlu0 %v2244, 64
    %v2248 = vpop.permute.xlu0 %2247
    %v2250 = vmul.f32 %v2243, %v2248
    %2252 = vrot.lane.b32.xlu0 %v2250, 32
    %v2253 = vpop.permute.xlu0 %2252
    %v2255 = vadd.f32 %v2245, %v2253
    %v2256 = vtanh.pop %v2255
    %2258 = vrot.lane.b32.xlu0 %v2256, 64
    %v2259 = vpop.permute.xlu0 %2258
    %v2261 = vmul.f32 %v2243, %v2259
    %2263 = vrot.lane.b32.xlu0 %v2161, 32
    %v2264 = vpop.permute.xlu0 %2263
    %v2265 = vsel %vm299, %v2264, 0
    %2267 = vmatprep.subr.mxu0 0.0
    %2268 = vmatpush1.msra.mxu0 %v1871
    %2269 = vmatprep.subr.mxu0 0.0
    %2270 = vmatpush1.msra.mxu0 %v1872
    %2271 = vmatprep.subr.mxu0 0.0
    %2272 = vmatpush1.msra.mxu0 %v1873
    %2273 = vmatprep.subr.mxu0 0.0
    %2274 = vmatpush1.msra.mxu0 %v1874
    %2275 = vmatprep.subr.mxu0 0.0
    %2276 = vmatpush1.msra.mxu0 0.0
    %2277 = vmatprep.subr.mxu0 0.0
    %2278 = vmatpush1.msra.mxu0 0.0
    %2279 = vmatprep.subr.mxu0 0.0
    %2280 = vmatpush1.msra.mxu0 0.0
    %2281 = vmatprep.subr.mxu0 0.0
    %2282 = vmatpush1.msra.mxu0 0.0
    %2283 = vmatprep.subr.mxu0 0.0
    %2284 = vmatpush1.msra.mxu0 0.0
    %2285 = vmatprep.subr.mxu0 0.0
    %2286 = vmatpush1.msra.mxu0 0.0
    %2287 = vmatprep.subr.mxu0 0.0
    %2288 = vmatpush1.msra.mxu0 0.0
    %2289 = vmatprep.subr.mxu0 0.0
    %2290 = vmatpush1.msra.mxu0 0.0
    %2291 = vmatprep.subr.mxu0 0.0
    %2292 = vmatpush1.msra.mxu0 0.0
    %2293 = vmatprep.subr.mxu0 0.0
    %2294 = vmatpush1.msra.mxu0 0.0
    %2295 = vmatprep.subr.mxu0 0.0
    %2296 = vmatpush1.msra.mxu0 0.0
    %2297 = vmatprep.subr.mxu0 0.0
    %2298 = vmatpush1.msra.mxu0 0.0
    %2299 = vmatprep.subr.mxu0 0.0
    %2300 = vmatpush1.msra.mxu0 0.0
    %2301 = vmatprep.subr.mxu0 0.0
    %2302 = vmatpush1.msra.mxu0 0.0
    %2303 = vmatprep.subr.mxu0 0.0
    %2304 = vmatpush1.msra.mxu0 0.0
    %2305 = vmatprep.subr.mxu0 0.0
    %2306 = vmatpush1.msra.mxu0 0.0
    %2307 = vmatprep.subr.mxu0 0.0
    %2308 = vmatpush1.msra.mxu0 0.0
    %2309 = vmatprep.subr.mxu0 0.0
    %2310 = vmatpush1.msra.mxu0 0.0
    %2311 = vmatprep.subr.mxu0 0.0
    %2312 = vmatpush1.msra.mxu0 0.0
    %2313 = vmatprep.subr.mxu0 0.0
    %2314 = vmatpush1.msra.mxu0 0.0
    %2315 = vmatprep.subr.mxu0 0.0
    %2316 = vmatpush1.msra.mxu0 0.0
    %2317 = vmatprep.subr.mxu0 0.0
    %2318 = vmatpush1.msra.mxu0 0.0
    %2319 = vmatprep.subr.mxu0 0.0
    %2320 = vmatpush1.msra.mxu0 0.0
    %2321 = vmatprep.subr.mxu0 0.0
    %2322 = vmatpush1.msra.mxu0 0.0
    %2323 = vmatprep.subr.mxu0 0.0
    %2324 = vmatpush1.msra.mxu0 0.0
    %2325 = vmatprep.subr.mxu0 0.0
    %2326 = vmatpush1.msra.mxu0 0.0
    %2327 = vmatprep.subr.mxu0 0.0
    %2328 = vmatpush1.msra.mxu0 0.0
    %2329 = vmatprep.subr.mxu0 0.0
    %2330 = vmatpush1.msra.mxu0 0.0
    %2331 = vmatprep.mubr.f32.mxu0 0.0
    %2332 = vmatmul.mubr.f32.gmra.mrb[0].mxu0 %v2265
    %v2333 = vpop.f32.mrb[0].mxu0
    %v2334 = vadd.f32 0.0, %v2333
    %v2335 = vpop.f32.mrb[0].mxu0
    %2336 = vdwg.mxu0
    %2338 = vrot.lane.b32.xlu0 %v2261, 32
    %v2339 = vpop.permute.xlu0 %2338
    %v2340 = vsel %vm299, %v2339, 0
    %2342 = vmatprep.subr.mxu0 0.0
    %2343 = vmatpush1.msra.mxu0 %v1867
    %2344 = vmatprep.subr.mxu0 0.0
    %2345 = vmatpush1.msra.mxu0 %v1868
    %2346 = vmatprep.subr.mxu0 0.0
    %2347 = vmatpush1.msra.mxu0 %v1869
    %2348 = vmatprep.subr.mxu0 0.0
    %2349 = vmatpush1.msra.mxu0 %v1870
    %2350 = vmatprep.subr.mxu0 0.0
    %2351 = vmatpush1.msra.mxu0 0.0
    %2352 = vmatprep.subr.mxu0 0.0
    %2353 = vmatpush1.msra.mxu0 0.0
    %2354 = vmatprep.subr.mxu0 0.0
    %2355 = vmatpush1.msra.mxu0 0.0
    %2356 = vmatprep.subr.mxu0 0.0
    %2357 = vmatpush1.msra.mxu0 0.0
    %2358 = vmatprep.subr.mxu0 0.0
    %2359 = vmatpush1.msra.mxu0 0.0
    %2360 = vmatprep.subr.mxu0 0.0
    %2361 = vmatpush1.msra.mxu0 0.0
    %2362 = vmatprep.subr.mxu0 0.0
    %2363 = vmatpush1.msra.mxu0 0.0
    %2364 = vmatprep.subr.mxu0 0.0
    %2365 = vmatpush1.msra.mxu0 0.0
    %2366 = vmatprep.subr.mxu0 0.0
    %2367 = vmatpush1.msra.mxu0 0.0
    %2368 = vmatprep.subr.mxu0 0.0
    %2369 = vmatpush1.msra.mxu0 0.0
    %2370 = vmatprep.subr.mxu0 0.0
    %2371 = vmatpush1.msra.mxu0 0.0
    %2372 = vmatprep.subr.mxu0 0.0
    %2373 = vmatpush1.msra.mxu0 0.0
    %2374 = vmatprep.subr.mxu0 0.0
    %2375 = vmatpush1.msra.mxu0 0.0
    %2376 = vmatprep.subr.mxu0 0.0
    %2377 = vmatpush1.msra.mxu0 0.0
    %2378 = vmatprep.subr.mxu0 0.0
    %2379 = vmatpush1.msra.mxu0 0.0
    %2380 = vmatprep.subr.mxu0 0.0
    %2381 = vmatpush1.msra.mxu0 0.0
    %2382 = vmatprep.subr.mxu0 0.0
    %2383 = vmatpush1.msra.mxu0 0.0
    %2384 = vmatprep.subr.mxu0 0.0
    %2385 = vmatpush1.msra.mxu0 0.0
    %2386 = vmatprep.subr.mxu0 0.0
    %2387 = vmatpush1.msra.mxu0 0.0
    %2388 = vmatprep.subr.mxu0 0.0
    %2389 = vmatpush1.msra.mxu0 0.0
    %2390 = vmatprep.subr.mxu0 0.0
    %2391 = vmatpush1.msra.mxu0 0.0
    %2392 = vmatprep.subr.mxu0 0.0
    %2393 = vmatpush1.msra.mxu0 0.0
    %2394 = vmatprep.subr.mxu0 0.0
    %2395 = vmatpush1.msra.mxu0 0.0
    %2396 = vmatprep.subr.mxu0 0.0
    %2397 = vmatpush1.msra.mxu0 0.0
    %2398 = vmatprep.subr.mxu0 0.0
    %2399 = vmatpush1.msra.mxu0 0.0
    %2400 = vmatprep.subr.mxu0 0.0
    %2401 = vmatpush1.msra.mxu0 0.0
    %2402 = vmatprep.subr.mxu0 0.0
    %2403 = vmatpush1.msra.mxu0 0.0
    %2404 = vmatprep.subr.mxu0 0.0
    %2405 = vmatpush1.msra.mxu0 0.0
    %2406 = vmatprep.mubr.f32.mxu0 0.0
    %2407 = vmatmul.mubr.f32.gmra.mrb[0].mxu0 %v2340
    %v2408 = vpop.f32.mrb[0].mxu0
    %v2409 = vadd.f32 %v2334, %v2408
    %v2410 = vpop.f32.mrb[0].mxu0
    %2411 = vdwg.mxu0
    %v2412 = vadd.f32 %v2409, %v2135
    %v2413 = vxor.u32 %v2412, 2147483648
    %v2414 = vmul.f32 %v2413, 1.442695
    %v2415 = vpow.pop %v2414
    %v2416 = vadd.f32 %v2415, 1.0
    %v2417 = vrcp.pop %v2416
    %v2418 = vmul.f32 1.0, %v2417
    %v2419 = vtanh.pop %v2412
    %v2420 = vmul.f32 %v2418, %v2155
    %2422 = vrot.lane.b32.xlu0 %v2419, 64
    %v2423 = vpop.permute.xlu0 %2422
    %v2425 = vmul.f32 %v2418, %v2423
    %2427 = vrot.lane.b32.xlu0 %v2425, 32
    %v2428 = vpop.permute.xlu0 %2427
    %v2430 = vadd.f32 %v2420, %v2428
    %v2431 = vtanh.pop %v2430
    %2433 = vrot.lane.b32.xlu0 %v2431, 64
    %v2434 = vpop.permute.xlu0 %2433
    %v2436 = vmul.f32 %v2418, %v2434
    %v2437 = vrot.slane %v1496, 2
    %v2439 = vrot.slane %v1861, 1
    %v2441 = vsel %vm1879, %v2437, %v2439
    %2442 = vmatprep.subr.mxu0 0.0
    %2443 = vmatpush1.msra.mxu0 %v1862
    %2444 = vmatprep.subr.mxu0 0.0
    %2445 = vmatpush1.msra.mxu0 %v1863
    %2446 = vmatprep.subr.mxu0 0.0
    %2447 = vmatpush1.msra.mxu0 %v1864
    %2448 = vmatprep.subr.mxu0 0.0
    %2449 = vmatpush1.msra.mxu0 %v1865
    %2450 = vmatprep.subr.mxu0 0.0
    %2451 = vmatpush1.msra.mxu0 0.0
    %2452 = vmatprep.subr.mxu0 0.0
    %2453 = vmatpush1.msra.mxu0 0.0
    %2454 = vmatprep.subr.mxu0 0.0
    %2455 = vmatpush1.msra.mxu0 0.0
    %2456 = vmatprep.subr.mxu0 0.0
    %2457 = vmatpush1.msra.mxu0 0.0
    %2458 = vmatprep.subr.mxu0 0.0
    %2459 = vmatpush1.msra.mxu0 0.0
    %2460 = vmatprep.subr.mxu0 0.0
    %2461 = vmatpush1.msra.mxu0 0.0
    %2462 = vmatprep.subr.mxu0 0.0
    %2463 = vmatpush1.msra.mxu0 0.0
    %2464 = vmatprep.subr.mxu0 0.0
    %2465 = vmatpush1.msra.mxu0 0.0
    %2466 = vmatprep.subr.mxu0 0.0
    %2467 = vmatpush1.msra.mxu0 0.0
    %2468 = vmatprep.subr.mxu0 0.0
    %2469 = vmatpush1.msra.mxu0 0.0
    %2470 = vmatprep.subr.mxu0 0.0
    %2471 = vmatpush1.msra.mxu0 0.0
    %2472 = vmatprep.subr.mxu0 0.0
    %2473 = vmatpush1.msra.mxu0 0.0
    %2474 = vmatprep.subr.mxu0 0.0
    %2475 = vmatpush1.msra.mxu0 0.0
    %2476 = vmatprep.subr.mxu0 0.0
    %2477 = vmatpush1.msra.mxu0 0.0
    %2478 = vmatprep.subr.mxu0 0.0
    %2479 = vmatpush1.msra.mxu0 0.0
    %2480 = vmatprep.subr.mxu0 0.0
    %2481 = vmatpush1.msra.mxu0 0.0
    %2482 = vmatprep.subr.mxu0 0.0
    %2483 = vmatpush1.msra.mxu0 0.0
    %2484 = vmatprep.subr.mxu0 0.0
    %2485 = vmatpush1.msra.mxu0 0.0
    %2486 = vmatprep.subr.mxu0 0.0
    %2487 = vmatpush1.msra.mxu0 0.0
    %2488 = vmatprep.subr.mxu0 0.0
    %2489 = vmatpush1.msra.mxu0 0.0
    %2490 = vmatprep.subr.mxu0 0.0
    %2491 = vmatpush1.msra.mxu0 0.0
    %2492 = vmatprep.subr.mxu0 0.0
    %2493 = vmatpush1.msra.mxu0 0.0
    %2494 = vmatprep.subr.mxu0 0.0
    %2495 = vmatpush1.msra.mxu0 0.0
    %2496 = vmatprep.subr.mxu0 0.0
    %2497 = vmatpush1.msra.mxu0 0.0
    %2498 = vmatprep.subr.mxu0 0.0
    %2499 = vmatpush1.msra.mxu0 0.0
    %2500 = vmatprep.subr.mxu0 0.0
    %2501 = vmatpush1.msra.mxu0 0.0
    %2502 = vmatprep.subr.mxu0 0.0
    %2503 = vmatpush1.msra.mxu0 0.0
    %2504 = vmatprep.subr.mxu0 0.0
    %2505 = vmatpush1.msra.mxu0 0.0
    %2506 = vmatprep.mubr.f32.mxu0 0.0
    %2507 = vmatmul.mubr.f32.gmra.mrb[0].mxu0 %v2340
    %v2508 = vpop.f32.mrb[0].mxu0
    %v2509 = vadd.f32 0.0, %v2508
    %v2510 = vpop.f32.mrb[0].mxu0
    %2511 = vdwg.mxu0
    %v2512 = vadd.f32 %v2441, %v2509
    %v2513 = vadd.f32 %v2512, %v1959
    %v2514 = vxor.u32 %v2513, 2147483648
    %v2515 = vmul.f32 %v2514, 1.442695
    %v2516 = vpow.pop %v2515
    %v2517 = vadd.f32 %v2516, 1.0
    %v2518 = vrcp.pop %v2517
    %v2519 = vmul.f32 1.0, %v2518
    %v2520 = vtanh.pop %v2513
    %v2521 = vmul.f32 %v2519, %v2255
    %2523 = vrot.lane.b32.xlu0 %v2520, 64
    %v2524 = vpop.permute.xlu0 %2523
    %v2526 = vmul.f32 %v2519, %v2524
    %2528 = vrot.lane.b32.xlu0 %v2526, 32
    %v2529 = vpop.permute.xlu0 %2528
    %v2531 = vadd.f32 %v2521, %v2529
    %v2532 = vtanh.pop %v2531
    %2534 = vrot.lane.b32.xlu0 %v2532, 64
    %v2535 = vpop.permute.xlu0 %2534
    %v2537 = vmul.f32 %v2519, %v2535
    %2539 = vrot.lane.b32.xlu0 %v2436, 32
    %v2540 = vpop.permute.xlu0 %2539
    %v2541 = vsel %vm299, %v2540, 0
    %2543 = vmatprep.subr.mxu0 0.0
    %2544 = vmatpush1.msra.mxu0 %v1871
    %2545 = vmatprep.subr.mxu0 0.0
    %2546 = vmatpush1.msra.mxu0 %v1872
    %2547 = vmatprep.subr.mxu0 0.0
    %2548 = vmatpush1.msra.mxu0 %v1873
    %2549 = vmatprep.subr.mxu0 0.0
    %2550 = vmatpush1.msra.mxu0 %v1874
    %2551 = vmatprep.subr.mxu0 0.0
    %2552 = vmatpush1.msra.mxu0 0.0
    %2553 = vmatprep.subr.mxu0 0.0
    %2554 = vmatpush1.msra.mxu0 0.0
    %2555 = vmatprep.subr.mxu0 0.0
    %2556 = vmatpush1.msra.mxu0 0.0
    %2557 = vmatprep.subr.mxu0 0.0
    %2558 = vmatpush1.msra.mxu0 0.0
    %2559 = vmatprep.subr.mxu0 0.0
    %2560 = vmatpush1.msra.mxu0 0.0
    %2561 = vmatprep.subr.mxu0 0.0
    %2562 = vmatpush1.msra.mxu0 0.0
    %2563 = vmatprep.subr.mxu0 0.0
    %2564 = vmatpush1.msra.mxu0 0.0
    %2565 = vmatprep.subr.mxu0 0.0
    %2566 = vmatpush1.msra.mxu0 0.0
    %2567 = vmatprep.subr.mxu0 0.0
    %2568 = vmatpush1.msra.mxu0 0.0
    %2569 = vmatprep.subr.mxu0 0.0
    %2570 = vmatpush1.msra.mxu0 0.0
    %2571 = vmatprep.subr.mxu0 0.0
    %2572 = vmatpush1.msra.mxu0 0.0
    %2573 = vmatprep.subr.mxu0 0.0
    %2574 = vmatpush1.msra.mxu0 0.0
    %2575 = vmatprep.subr.mxu0 0.0
    %2576 = vmatpush1.msra.mxu0 0.0
    %2577 = vmatprep.subr.mxu0 0.0
    %2578 = vmatpush1.msra.mxu0 0.0
    %2579 = vmatprep.subr.mxu0 0.0
    %2580 = vmatpush1.msra.mxu0 0.0
    %2581 = vmatprep.subr.mxu0 0.0
    %2582 = vmatpush1.msra.mxu0 0.0
    %2583 = vmatprep.subr.mxu0 0.0
    %2584 = vmatpush1.msra.mxu0 0.0
    %2585 = vmatprep.subr.mxu0 0.0
    %2586 = vmatpush1.msra.mxu0 0.0
    %2587 = vmatprep.subr.mxu0 0.0
    %2588 = vmatpush1.msra.mxu0 0.0
    %2589 = vmatprep.subr.mxu0 0.0
    %2590 = vmatpush1.msra.mxu0 0.0
    %2591 = vmatprep.subr.mxu0 0.0
    %2592 = vmatpush1.msra.mxu0 0.0
    %2593 = vmatprep.subr.mxu0 0.0
    %2594 = vmatpush1.msra.mxu0 0.0
    %2595 = vmatprep.subr.mxu0 0.0
    %2596 = vmatpush1.msra.mxu0 0.0
    %2597 = vmatprep.subr.mxu0 0.0
    %2598 = vmatpush1.msra.mxu0 0.0
    %2599 = vmatprep.subr.mxu0 0.0
    %2600 = vmatpush1.msra.mxu0 0.0
    %2601 = vmatprep.subr.mxu0 0.0
    %2602 = vmatpush1.msra.mxu0 0.0
    %2603 = vmatprep.subr.mxu0 0.0
    %2604 = vmatpush1.msra.mxu0 0.0
    %2605 = vmatprep.subr.mxu0 0.0
    %2606 = vmatpush1.msra.mxu0 0.0
    %2607 = vmatprep.mubr.f32.mxu0 0.0
    %2608 = vmatmul.mubr.f32.gmra.mrb[0].mxu0 %v2541
    %v2609 = vpop.f32.mrb[0].mxu0
    %v2610 = vadd.f32 0.0, %v2609
    %v2611 = vpop.f32.mrb[0].mxu0
    %2612 = vdwg.mxu0
    %2614 = vrot.lane.b32.xlu0 %v2537, 32
    %v2615 = vpop.permute.xlu0 %2614
    %v2616 = vsel %vm299, %v2615, 0
    %2618 = vmatprep.subr.mxu0 0.0
    %2619 = vmatpush1.msra.mxu0 %v1867
    %2620 = vmatprep.subr.mxu0 0.0
    %2621 = vmatpush1.msra.mxu0 %v1868
    %2622 = vmatprep.subr.mxu0 0.0
    %2623 = vmatpush1.msra.mxu0 %v1869
    %2624 = vmatprep.subr.mxu0 0.0
    %2625 = vmatpush1.msra.mxu0 %v1870
    %2626 = vmatprep.subr.mxu0 0.0
    %2627 = vmatpush1.msra.mxu0 0.0
    %2628 = vmatprep.subr.mxu0 0.0
    %2629 = vmatpush1.msra.mxu0 0.0
    %2630 = vmatprep.subr.mxu0 0.0
    %2631 = vmatpush1.msra.mxu0 0.0
    %2632 = vmatprep.subr.mxu0 0.0
    %2633 = vmatpush1.msra.mxu0 0.0
    %2634 = vmatprep.subr.mxu0 0.0
    %2635 = vmatpush1.msra.mxu0 0.0
    %2636 = vmatprep.subr.mxu0 0.0
    %2637 = vmatpush1.msra.mxu0 0.0
    %2638 = vmatprep.subr.mxu0 0.0
    %2639 = vmatpush1.msra.mxu0 0.0
    %2640 = vmatprep.subr.mxu0 0.0
    %2641 = vmatpush1.msra.mxu0 0.0
    %2642 = vmatprep.subr.mxu0 0.0
    %2643 = vmatpush1.msra.mxu0 0.0
    %2644 = vmatprep.subr.mxu0 0.0
    %2645 = vmatpush1.msra.mxu0 0.0
    %2646 = vmatprep.subr.mxu0 0.0
    %2647 = vmatpush1.msra.mxu0 0.0
    %2648 = vmatprep.subr.mxu0 0.0
    %2649 = vmatpush1.msra.mxu0 0.0
    %2650 = vmatprep.subr.mxu0 0.0
    %2651 = vmatpush1.msra.mxu0 0.0
    %2652 = vmatprep.subr.mxu0 0.0
    %2653 = vmatpush1.msra.mxu0 0.0
    %2654 = vmatprep.subr.mxu0 0.0
    %2655 = vmatpush1.msra.mxu0 0.0
    %2656 = vmatprep.subr.mxu0 0.0
    %2657 = vmatpush1.msra.mxu0 0.0
    %2658 = vmatprep.subr.mxu0 0.0
    %2659 = vmatpush1.msra.mxu0 0.0
    %2660 = vmatprep.subr.mxu0 0.0
    %2661 = vmatpush1.msra.mxu0 0.0
    %2662 = vmatprep.subr.mxu0 0.0
    %2663 = vmatpush1.msra.mxu0 0.0
    %2664 = vmatprep.subr.mxu0 0.0
    %2665 = vmatpush1.msra.mxu0 0.0
    %2666 = vmatprep.subr.mxu0 0.0
    %2667 = vmatpush1.msra.mxu0 0.0
    %2668 = vmatprep.subr.mxu0 0.0
    %2669 = vmatpush1.msra.mxu0 0.0
    %2670 = vmatprep.subr.mxu0 0.0
    %2671 = vmatpush1.msra.mxu0 0.0
    %2672 = vmatprep.subr.mxu0 0.0
    %2673 = vmatpush1.msra.mxu0 0.0
    %2674 = vmatprep.subr.mxu0 0.0
    %2675 = vmatpush1.msra.mxu0 0.0
    %2676 = vmatprep.subr.mxu0 0.0
    %2677 = vmatpush1.msra.mxu0 0.0
    %2678 = vmatprep.subr.mxu0 0.0
    %2679 = vmatpush1.msra.mxu0 0.0
    %2680 = vmatprep.subr.mxu0 0.0
    %2681 = vmatpush1.msra.mxu0 0.0
    %2682 = vmatprep.mubr.f32.mxu0 0.0
    %2683 = vmatmul.mubr.f32.gmra.mrb[0].mxu0 %v2616
    %v2684 = vpop.f32.mrb[0].mxu0
    %v2685 = vadd.f32 %v2610, %v2684
    %v2686 = vpop.f32.mrb[0].mxu0
    %2687 = vdwg.mxu0
    %v2688 = vadd.f32 %v2685, %v2135
    %v2689 = vxor.u32 %v2688, 2147483648
    %v2690 = vmul.f32 %v2689, 1.442695
    %v2691 = vpow.pop %v2690
    %v2692 = vadd.f32 %v2691, 1.0
    %v2693 = vrcp.pop %v2692
    %v2694 = vmul.f32 1.0, %v2693
    %v2695 = vtanh.pop %v2688
    %v2696 = vmul.f32 %v2694, %v2430
    %2698 = vrot.lane.b32.xlu0 %v2695, 64
    %v2699 = vpop.permute.xlu0 %2698
    %v2701 = vmul.f32 %v2694, %v2699
    %2703 = vrot.lane.b32.xlu0 %v2701, 32
    %v2704 = vpop.permute.xlu0 %2703
    %v2706 = vadd.f32 %v2696, %v2704
    %v2707 = vtanh.pop %v2706
    %2709 = vrot.lane.b32.xlu0 %v2707, 64
    %v2710 = vpop.permute.xlu0 %2709
    %v2712 = vmul.f32 %v2694, %v2710
    %v2713 = vrot.slane %v1496, 3
    %v2715 = vrot.slane %v1861, 2
    %v2717 = vsel %vm1879, %v2713, %v2715
    %2718 = vmatprep.subr.mxu0 0.0
    %2719 = vmatpush1.msra.mxu0 %v1862
    %2720 = vmatprep.subr.mxu0 0.0
    %2721 = vmatpush1.msra.mxu0 %v1863
    %2722 = vmatprep.subr.mxu0 0.0
    %2723 = vmatpush1.msra.mxu0 %v1864
    %2724 = vmatprep.subr.mxu0 0.0
    %2725 = vmatpush1.msra.mxu0 %v1865
    %2726 = vmatprep.subr.mxu0 0.0
    %2727 = vmatpush1.msra.mxu0 0.0
    %2728 = vmatprep.subr.mxu0 0.0
    %2729 = vmatpush1.msra.mxu0 0.0
    %2730 = vmatprep.subr.mxu0 0.0
    %2731 = vmatpush1.msra.mxu0 0.0
    %2732 = vmatprep.subr.mxu0 0.0
    %2733 = vmatpush1.msra.mxu0 0.0
    %2734 = vmatprep.subr.mxu0 0.0
    %2735 = vmatpush1.msra.mxu0 0.0
    %2736 = vmatprep.subr.mxu0 0.0
    %2737 = vmatpush1.msra.mxu0 0.0
    %2738 = vmatprep.subr.mxu0 0.0
    %2739 = vmatpush1.msra.mxu0 0.0
    %2740 = vmatprep.subr.mxu0 0.0
    %2741 = vmatpush1.msra.mxu0 0.0
    %2742 = vmatprep.subr.mxu0 0.0
    %2743 = vmatpush1.msra.mxu0 0.0
    %2744 = vmatprep.subr.mxu0 0.0
    %2745 = vmatpush1.msra.mxu0 0.0
    %2746 = vmatprep.subr.mxu0 0.0
    %2747 = vmatpush1.msra.mxu0 0.0
    %2748 = vmatprep.subr.mxu0 0.0
    %2749 = vmatpush1.msra.mxu0 0.0
    %2750 = vmatprep.subr.mxu0 0.0
    %2751 = vmatpush1.msra.mxu0 0.0
    %2752 = vmatprep.subr.mxu0 0.0
    %2753 = vmatpush1.msra.mxu0 0.0
    %2754 = vmatprep.subr.mxu0 0.0
    %2755 = vmatpush1.msra.mxu0 0.0
    %2756 = vmatprep.subr.mxu0 0.0
    %2757 = vmatpush1.msra.mxu0 0.0
    %2758 = vmatprep.subr.mxu0 0.0
    %2759 = vmatpush1.msra.mxu0 0.0
    %2760 = vmatprep.subr.mxu0 0.0
    %2761 = vmatpush1.msra.mxu0 0.0
    %2762 = vmatprep.subr.mxu0 0.0
    %2763 = vmatpush1.msra.mxu0 0.0
    %2764 = vmatprep.subr.mxu0 0.0
    %2765 = vmatpush1.msra.mxu0 0.0
    %2766 = vmatprep.subr.mxu0 0.0
    %2767 = vmatpush1.msra.mxu0 0.0
    %2768 = vmatprep.subr.mxu0 0.0
    %2769 = vmatpush1.msra.mxu0 0.0
    %2770 = vmatprep.subr.mxu0 0.0
    %2771 = vmatpush1.msra.mxu0 0.0
    %2772 = vmatprep.subr.mxu0 0.0
    %2773 = vmatpush1.msra.mxu0 0.0
    %2774 = vmatprep.subr.mxu0 0.0
    %2775 = vmatpush1.msra.mxu0 0.0
    %2776 = vmatprep.subr.mxu0 0.0
    %2777 = vmatpush1.msra.mxu0 0.0
    %2778 = vmatprep.subr.mxu0 0.0
    %2779 = vmatpush1.msra.mxu0 0.0
    %2780 = vmatprep.subr.mxu0 0.0
    %2781 = vmatpush1.msra.mxu0 0.0
    %2782 = vmatprep.mubr.f32.mxu0 0.0
    %2783 = vmatmul.mubr.f32.gmra.mrb[0].mxu0 %v2616
    %v2784 = vpop.f32.mrb[0].mxu0
    %v2785 = vadd.f32 0.0, %v2784
    %v2786 = vpop.f32.mrb[0].mxu0
    %2787 = vdwg.mxu0
    %v2788 = vadd.f32 %v2717, %v2785
    %v2789 = vadd.f32 %v2788, %v1959
    %v2790 = vxor.u32 %v2789, 2147483648
    %v2791 = vmul.f32 %v2790, 1.442695
    %v2792 = vpow.pop %v2791
    %v2793 = vadd.f32 %v2792, 1.0
    %v2794 = vrcp.pop %v2793
    %v2795 = vmul.f32 1.0, %v2794
    %v2796 = vtanh.pop %v2789
    %v2797 = vmul.f32 %v2795, %v2531
    %2799 = vrot.lane.b32.xlu0 %v2796, 64
    %v2800 = vpop.permute.xlu0 %2799
    %v2802 = vmul.f32 %v2795, %v2800
    %2804 = vrot.lane.b32.xlu0 %v2802, 32
    %v2805 = vpop.permute.xlu0 %2804
    %v2807 = vadd.f32 %v2797, %v2805
    %v2808 = vtanh.pop %v2807
    %2810 = vrot.lane.b32.xlu0 %v2808, 64
    %v2811 = vpop.permute.xlu0 %2810
    %v2813 = vmul.f32 %v2795, %v2811
    %2815 = vrot.lane.b32.xlu0 %v2712, 32
    %v2816 = vpop.permute.xlu0 %2815
    %v2817 = vsel %vm299, %v2816, 0
    %2819 = vmatprep.subr.mxu0 0.0
    %2820 = vmatpush1.msra.mxu0 %v1871
    %2821 = vmatprep.subr.mxu0 0.0
    %2822 = vmatpush1.msra.mxu0 %v1872
    %2823 = vmatprep.subr.mxu0 0.0
    %2824 = vmatpush1.msra.mxu0 %v1873
    %2825 = vmatprep.subr.mxu0 0.0
    %2826 = vmatpush1.msra.mxu0 %v1874
    %2827 = vmatprep.subr.mxu0 0.0
    %2828 = vmatpush1.msra.mxu0 0.0
    %2829 = vmatprep.subr.mxu0 0.0
    %2830 = vmatpush1.msra.mxu0 0.0
    %2831 = vmatprep.subr.mxu0 0.0
    %2832 = vmatpush1.msra.mxu0 0.0
    %2833 = vmatprep.subr.mxu0 0.0
    %2834 = vmatpush1.msra.mxu0 0.0
    %2835 = vmatprep.subr.mxu0 0.0
    %2836 = vmatpush1.msra.mxu0 0.0
    %2837 = vmatprep.subr.mxu0 0.0
    %2838 = vmatpush1.msra.mxu0 0.0
    %2839 = vmatprep.subr.mxu0 0.0
    %2840 = vmatpush1.msra.mxu0 0.0
    %2841 = vmatprep.subr.mxu0 0.0
    %2842 = vmatpush1.msra.mxu0 0.0
    %2843 = vmatprep.subr.mxu0 0.0
    %2844 = vmatpush1.msra.mxu0 0.0
    %2845 = vmatprep.subr.mxu0 0.0
    %2846 = vmatpush1.msra.mxu0 0.0
    %2847 = vmatprep.subr.mxu0 0.0
    %2848 = vmatpush1.msra.mxu0 0.0
    %2849 = vmatprep.subr.mxu0 0.0
    %2850 = vmatpush1.msra.mxu0 0.0
    %2851 = vmatprep.subr.mxu0 0.0
    %2852 = vmatpush1.msra.mxu0 0.0
    %2853 = vmatprep.subr.mxu0 0.0
    %2854 = vmatpush1.msra.mxu0 0.0
    %2855 = vmatprep.subr.mxu0 0.0
    %2856 = vmatpush1.msra.mxu0 0.0
    %2857 = vmatprep.subr.mxu0 0.0
    %2858 = vmatpush1.msra.mxu0 0.0
    %2859 = vmatprep.subr.mxu0 0.0
    %2860 = vmatpush1.msra.mxu0 0.0
    %2861 = vmatprep.subr.mxu0 0.0
    %2862 = vmatpush1.msra.mxu0 0.0
    %2863 = vmatprep.subr.mxu0 0.0
    %2864 = vmatpush1.msra.mxu0 0.0
    %2865 = vmatprep.subr.mxu0 0.0
    %2866 = vmatpush1.msra.mxu0 0.0
    %2867 = vmatprep.subr.mxu0 0.0
    %2868 = vmatpush1.msra.mxu0 0.0
    %2869 = vmatprep.subr.mxu0 0.0
    %2870 = vmatpush1.msra.mxu0 0.0
    %2871 = vmatprep.subr.mxu0 0.0
    %2872 = vmatpush1.msra.mxu0 0.0
    %2873 = vmatprep.subr.mxu0 0.0
    %2874 = vmatpush1.msra.mxu0 0.0
    %2875 = vmatprep.subr.mxu0 0.0
    %2876 = vmatpush1.msra.mxu0 0.0
    %2877 = vmatprep.subr.mxu0 0.0
    %2878 = vmatpush1.msra.mxu0 0.0
    %2879 = vmatprep.subr.mxu0 0.0
    %2880 = vmatpush1.msra.mxu0 0.0
    %2881 = vmatprep.subr.mxu0 0.0
    %2882 = vmatpush1.msra.mxu0 0.0
    %2883 = vmatprep.mubr.f32.mxu0 0.0
    %2884 = vmatmul.mubr.f32.gmra.mrb[0].mxu0 %v2817
    %v2885 = vpop.f32.mrb[0].mxu0
    %v2886 = vadd.f32 0.0, %v2885
    %v2887 = vpop.f32.mrb[0].mxu0
    %2888 = vdwg.mxu0
    %2890 = vrot.lane.b32.xlu0 %v2813, 32
    %v2891 = vpop.permute.xlu0 %2890
    %v2892 = vsel %vm299, %v2891, 0
    %2894 = vmatprep.subr.mxu0 0.0
    %2895 = vmatpush1.msra.mxu0 %v1867
    %2896 = vmatprep.subr.mxu0 0.0
    %2897 = vmatpush1.msra.mxu0 %v1868
    %2898 = vmatprep.subr.mxu0 0.0
    %2899 = vmatpush1.msra.mxu0 %v1869
    %2900 = vmatprep.subr.mxu0 0.0
    %2901 = vmatpush1.msra.mxu0 %v1870
    %2902 = vmatprep.subr.mxu0 0.0
    %2903 = vmatpush1.msra.mxu0 0.0
    %2904 = vmatprep.subr.mxu0 0.0
    %2905 = vmatpush1.msra.mxu0 0.0
    %2906 = vmatprep.subr.mxu0 0.0
    %2907 = vmatpush1.msra.mxu0 0.0
    %2908 = vmatprep.subr.mxu0 0.0
    %2909 = vmatpush1.msra.mxu0 0.0
    %2910 = vmatprep.subr.mxu0 0.0
    %2911 = vmatpush1.msra.mxu0 0.0
    %2912 = vmatprep.subr.mxu0 0.0
    %2913 = vmatpush1.msra.mxu0 0.0
    %2914 = vmatprep.subr.mxu0 0.0
    %2915 = vmatpush1.msra.mxu0 0.0
    %2916 = vmatprep.subr.mxu0 0.0
    %2917 = vmatpush1.msra.mxu0 0.0
    %2918 = vmatprep.subr.mxu0 0.0
    %2919 = vmatpush1.msra.mxu0 0.0
    %2920 = vmatprep.subr.mxu0 0.0
    %2921 = vmatpush1.msra.mxu0 0.0
    %2922 = vmatprep.subr.mxu0 0.0
    %2923 = vmatpush1.msra.mxu0 0.0
    %2924 = vmatprep.subr.mxu0 0.0
    %2925 = vmatpush1.msra.mxu0 0.0
    %2926 = vmatprep.subr.mxu0 0.0
    %2927 = vmatpush1.msra.mxu0 0.0
    %2928 = vmatprep.subr.mxu0 0.0
    %2929 = vmatpush1.msra.mxu0 0.0
    %2930 = vmatprep.subr.mxu0 0.0
    %2931 = vmatpush1.msra.mxu0 0.0
    %2932 = vmatprep.subr.mxu0 0.0
    %2933 = vmatpush1.msra.mxu0 0.0
    %2934 = vmatprep.subr.mxu0 0.0
    %2935 = vmatpush1.msra.mxu0 0.0
    %2936 = vmatprep.subr.mxu0 0.0
    %2937 = vmatpush1.msra.mxu0 0.0
    %2938 = vmatprep.subr.mxu0 0.0
    %2939 = vmatpush1.msra.mxu0 0.0
    %2940 = vmatprep.subr.mxu0 0.0
    %2941 = vmatpush1.msra.mxu0 0.0
    %2942 = vmatprep.subr.mxu0 0.0
    %2943 = vmatpush1.msra.mxu0 0.0
    %2944 = vmatprep.subr.mxu0 0.0
    %2945 = vmatpush1.msra.mxu0 0.0
    %2946 = vmatprep.subr.mxu0 0.0
    %2947 = vmatpush1.msra.mxu0 0.0
    %2948 = vmatprep.subr.mxu0 0.0
    %2949 = vmatpush1.msra.mxu0 0.0
    %2950 = vmatprep.subr.mxu0 0.0
    %2951 = vmatpush1.msra.mxu0 0.0
    %2952 = vmatprep.subr.mxu0 0.0
    %2953 = vmatpush1.msra.mxu0 0.0
    %2954 = vmatprep.subr.mxu0 0.0
    %2955 = vmatpush1.msra.mxu0 0.0
    %2956 = vmatprep.subr.mxu0 0.0
    %2957 = vmatpush1.msra.mxu0 0.0
    %2958 = vmatprep.mubr.f32.mxu0 0.0
    %2959 = vmatmul.mubr.f32.gmra.mrb[0].mxu0 %v2892
    %v2960 = vpop.f32.mrb[0].mxu0
    %v2961 = vadd.f32 %v2886, %v2960
    %v2962 = vpop.f32.mrb[0].mxu0
    %2963 = vdwg.mxu0
    %v2964 = vadd.f32 %v2961, %v2135
    %v2965 = vxor.u32 %v2964, 2147483648
    %v2966 = vmul.f32 %v2965, 1.442695
    %v2967 = vpow.pop %v2966
    %v2968 = vadd.f32 %v2967, 1.0
    %v2969 = vrcp.pop %v2968
    %v2970 = vmul.f32 1.0, %v2969
    %v2971 = vtanh.pop %v2964
    %v2972 = vmul.f32 %v2970, %v2706
    %2974 = vrot.lane.b32.xlu0 %v2971, 64
    %v2975 = vpop.permute.xlu0 %2974
    %v2977 = vmul.f32 %v2970, %v2975
    %2979 = vrot.lane.b32.xlu0 %v2977, 32
    %v2980 = vpop.permute.xlu0 %2979
    %v2982 = vadd.f32 %v2972, %v2980
    %v2983 = vtanh.pop %v2982
    %2985 = vrot.lane.b32.xlu0 %v2983, 64
    %v2986 = vpop.permute.xlu0 %2985
    %v2988 = vmul.f32 %v2970, %v2986
    %v2989 = vrot.slane %v1496, 4
    %v2991 = vrot.slane %v1861, 3
    %v2993 = vsel %vm1879, %v2989, %v2991
    %2994 = vmatprep.subr.mxu0 0.0
    %2995 = vmatpush1.msra.mxu0 %v1862
    %2996 = vmatprep.subr.mxu0 0.0
    %2997 = vmatpush1.msra.mxu0 %v1863
    %2998 = vmatprep.subr.mxu0 0.0
    %2999 = vmatpush1.msra.mxu0 %v1864
    %3000 = vmatprep.subr.mxu0 0.0
    %3001 = vmatpush1.msra.mxu0 %v1865
    %3002 = vmatprep.subr.mxu0 0.0
    %3003 = vmatpush1.msra.mxu0 0.0
    %3004 = vmatprep.subr.mxu0 0.0
    %3005 = vmatpush1.msra.mxu0 0.0
    %3006 = vmatprep.subr.mxu0 0.0
    %3007 = vmatpush1.msra.mxu0 0.0
    %3008 = vmatprep.subr.mxu0 0.0
    %3009 = vmatpush1.msra.mxu0 0.0
    %3010 = vmatprep.subr.mxu0 0.0
    %3011 = vmatpush1.msra.mxu0 0.0
    %3012 = vmatprep.subr.mxu0 0.0
    %3013 = vmatpush1.msra.mxu0 0.0
    %3014 = vmatprep.subr.mxu0 0.0
    %3015 = vmatpush1.msra.mxu0 0.0
    %3016 = vmatprep.subr.mxu0 0.0
    %3017 = vmatpush1.msra.mxu0 0.0
    %3018 = vmatprep.subr.mxu0 0.0
    %3019 = vmatpush1.msra.mxu0 0.0
    %3020 = vmatprep.subr.mxu0 0.0
    %3021 = vmatpush1.msra.mxu0 0.0
    %3022 = vmatprep.subr.mxu0 0.0
    %3023 = vmatpush1.msra.mxu0 0.0
    %3024 = vmatprep.subr.mxu0 0.0
    %3025 = vmatpush1.msra.mxu0 0.0
    %3026 = vmatprep.subr.mxu0 0.0
    %3027 = vmatpush1.msra.mxu0 0.0
    %3028 = vmatprep.subr.mxu0 0.0
    %3029 = vmatpush1.msra.mxu0 0.0
    %3030 = vmatprep.subr.mxu0 0.0
    %3031 = vmatpush1.msra.mxu0 0.0
    %3032 = vmatprep.subr.mxu0 0.0
    %3033 = vmatpush1.msra.mxu0 0.0
    %3034 = vmatprep.subr.mxu0 0.0
    %3035 = vmatpush1.msra.mxu0 0.0
    %3036 = vmatprep.subr.mxu0 0.0
    %3037 = vmatpush1.msra.mxu0 0.0
    %3038 = vmatprep.subr.mxu0 0.0
    %3039 = vmatpush1.msra.mxu0 0.0
    %3040 = vmatprep.subr.mxu0 0.0
    %3041 = vmatpush1.msra.mxu0 0.0
    %3042 = vmatprep.subr.mxu0 0.0
    %3043 = vmatpush1.msra.mxu0 0.0
    %3044 = vmatprep.subr.mxu0 0.0
    %3045 = vmatpush1.msra.mxu0 0.0
    %3046 = vmatprep.subr.mxu0 0.0
    %3047 = vmatpush1.msra.mxu0 0.0
    %3048 = vmatprep.subr.mxu0 0.0
    %3049 = vmatpush1.msra.mxu0 0.0
    %3050 = vmatprep.subr.mxu0 0.0
    %3051 = vmatpush1.msra.mxu0 0.0
    %3052 = vmatprep.subr.mxu0 0.0
    %3053 = vmatpush1.msra.mxu0 0.0
    %3054 = vmatprep.subr.mxu0 0.0
    %3055 = vmatpush1.msra.mxu0 0.0
    %3056 = vmatprep.subr.mxu0 0.0
    %3057 = vmatpush1.msra.mxu0 0.0
    %3058 = vmatprep.mubr.f32.mxu0 0.0
    %3059 = vmatmul.mubr.f32.gmra.mrb[0].mxu0 %v2892
    %v3060 = vpop.f32.mrb[0].mxu0
    %v3061 = vadd.f32 0.0, %v3060
    %v3062 = vpop.f32.mrb[0].mxu0
    %3063 = vdwg.mxu0
    %v3064 = vadd.f32 %v2993, %v3061
    %v3065 = vadd.f32 %v3064, %v1959
    %v3066 = vxor.u32 %v3065, 2147483648
    %v3067 = vmul.f32 %v3066, 1.442695
    %v3068 = vpow.pop %v3067
    %v3069 = vadd.f32 %v3068, 1.0
    %v3070 = vrcp.pop %v3069
    %v3071 = vmul.f32 1.0, %v3070
    %v3072 = vtanh.pop %v3065
    %v3073 = vmul.f32 %v3071, %v2807
    %3075 = vrot.lane.b32.xlu0 %v3072, 64
    %v3076 = vpop.permute.xlu0 %3075
    %v3078 = vmul.f32 %v3071, %v3076
    %3080 = vrot.lane.b32.xlu0 %v3078, 32
    %v3081 = vpop.permute.xlu0 %3080
    %v3083 = vadd.f32 %v3073, %v3081
    %v3084 = vtanh.pop %v3083
    %3086 = vrot.lane.b32.xlu0 %v3084, 64
    %v3087 = vpop.permute.xlu0 %3086
    %v3089 = vmul.f32 %v3071, %v3087
    %3091 = vrot.lane.b32.xlu0 %v2988, 32
    %v3092 = vpop.permute.xlu0 %3091
    %v3093 = vsel %vm299, %v3092, 0
    %3095 = vmatprep.subr.mxu0 0.0
    %3096 = vmatpush1.msra.mxu0 %v1871
    %3097 = vmatprep.subr.mxu0 0.0
    %3098 = vmatpush1.msra.mxu0 %v1872
    %3099 = vmatprep.subr.mxu0 0.0
    %3100 = vmatpush1.msra.mxu0 %v1873
    %3101 = vmatprep.subr.mxu0 0.0
    %3102 = vmatpush1.msra.mxu0 %v1874
    %3103 = vmatprep.subr.mxu0 0.0
    %3104 = vmatpush1.msra.mxu0 0.0
    %3105 = vmatprep.subr.mxu0 0.0
    %3106 = vmatpush1.msra.mxu0 0.0
    %3107 = vmatprep.subr.mxu0 0.0
    %3108 = vmatpush1.msra.mxu0 0.0
    %3109 = vmatprep.subr.mxu0 0.0
    %3110 = vmatpush1.msra.mxu0 0.0
    %3111 = vmatprep.subr.mxu0 0.0
    %3112 = vmatpush1.msra.mxu0 0.0
    %3113 = vmatprep.subr.mxu0 0.0
    %3114 = vmatpush1.msra.mxu0 0.0
    %3115 = vmatprep.subr.mxu0 0.0
    %3116 = vmatpush1.msra.mxu0 0.0
    %3117 = vmatprep.subr.mxu0 0.0
    %3118 = vmatpush1.msra.mxu0 0.0
    %3119 = vmatprep.subr.mxu0 0.0
    %3120 = vmatpush1.msra.mxu0 0.0
    %3121 = vmatprep.subr.mxu0 0.0
    %3122 = vmatpush1.msra.mxu0 0.0
    %3123 = vmatprep.subr.mxu0 0.0
    %3124 = vmatpush1.msra.mxu0 0.0
    %3125 = vmatprep.subr.mxu0 0.0
    %3126 = vmatpush1.msra.mxu0 0.0
    %3127 = vmatprep.subr.mxu0 0.0
    %3128 = vmatpush1.msra.mxu0 0.0
    %3129 = vmatprep.subr.mxu0 0.0
    %3130 = vmatpush1.msra.mxu0 0.0
    %3131 = vmatprep.subr.mxu0 0.0
    %3132 = vmatpush1.msra.mxu0 0.0
    %3133 = vmatprep.subr.mxu0 0.0
    %3134 = vmatpush1.msra.mxu0 0.0
    %3135 = vmatprep.subr.mxu0 0.0
    %3136 = vmatpush1.msra.mxu0 0.0
    %3137 = vmatprep.subr.mxu0 0.0
    %3138 = vmatpush1.msra.mxu0 0.0
    %3139 = vmatprep.subr.mxu0 0.0
    %3140 = vmatpush1.msra.mxu0 0.0
    %3141 = vmatprep.subr.mxu0 0.0
    %3142 = vmatpush1.msra.mxu0 0.0
    %3143 = vmatprep.subr.mxu0 0.0
    %3144 = vmatpush1.msra.mxu0 0.0
    %3145 = vmatprep.subr.mxu0 0.0
    %3146 = vmatpush1.msra.mxu0 0.0
    %3147 = vmatprep.subr.mxu0 0.0
    %3148 = vmatpush1.msra.mxu0 0.0
    %3149 = vmatprep.subr.mxu0 0.0
    %3150 = vmatpush1.msra.mxu0 0.0
    %3151 = vmatprep.subr.mxu0 0.0
    %3152 = vmatpush1.msra.mxu0 0.0
    %3153 = vmatprep.subr.mxu0 0.0
    %3154 = vmatpush1.msra.mxu0 0.0
    %3155 = vmatprep.subr.mxu0 0.0
    %3156 = vmatpush1.msra.mxu0 0.0
    %3157 = vmatprep.subr.mxu0 0.0
    %3158 = vmatpush1.msra.mxu0 0.0
    %3159 = vmatprep.mubr.f32.mxu0 0.0
    %3160 = vmatmul.mubr.f32.gmra.mrb[0].mxu0 %v3093
    %v3161 = vpop.f32.mrb[0].mxu0
    %v3162 = vadd.f32 0.0, %v3161
    %v3163 = vpop.f32.mrb[0].mxu0
    %3164 = vdwg.mxu0
    %3166 = vrot.lane.b32.xlu0 %v3089, 32
    %v3167 = vpop.permute.xlu0 %3166
    %v3168 = vsel %vm299, %v3167, 0
    %3170 = vmatprep.subr.mxu0 0.0
    %3171 = vmatpush1.msra.mxu0 %v1867
    %3172 = vmatprep.subr.mxu0 0.0
    %3173 = vmatpush1.msra.mxu0 %v1868
    %3174 = vmatprep.subr.mxu0 0.0
    %3175 = vmatpush1.msra.mxu0 %v1869
    %3176 = vmatprep.subr.mxu0 0.0
    %3177 = vmatpush1.msra.mxu0 %v1870
    %3178 = vmatprep.subr.mxu0 0.0
    %3179 = vmatpush1.msra.mxu0 0.0
    %3180 = vmatprep.subr.mxu0 0.0
    %3181 = vmatpush1.msra.mxu0 0.0
    %3182 = vmatprep.subr.mxu0 0.0
    %3183 = vmatpush1.msra.mxu0 0.0
    %3184 = vmatprep.subr.mxu0 0.0
    %3185 = vmatpush1.msra.mxu0 0.0
    %3186 = vmatprep.subr.mxu0 0.0
    %3187 = vmatpush1.msra.mxu0 0.0
    %3188 = vmatprep.subr.mxu0 0.0
    %3189 = vmatpush1.msra.mxu0 0.0
    %3190 = vmatprep.subr.mxu0 0.0
    %3191 = vmatpush1.msra.mxu0 0.0
    %3192 = vmatprep.subr.mxu0 0.0
    %3193 = vmatpush1.msra.mxu0 0.0
    %3194 = vmatprep.subr.mxu0 0.0
    %3195 = vmatpush1.msra.mxu0 0.0
    %3196 = vmatprep.subr.mxu0 0.0
    %3197 = vmatpush1.msra.mxu0 0.0
    %3198 = vmatprep.subr.mxu0 0.0
    %3199 = vmatpush1.msra.mxu0 0.0
    %3200 = vmatprep.subr.mxu0 0.0
    %3201 = vmatpush1.msra.mxu0 0.0
    %3202 = vmatprep.subr.mxu0 0.0
    %3203 = vmatpush1.msra.mxu0 0.0
    %3204 = vmatprep.subr.mxu0 0.0
    %3205 = vmatpush1.msra.mxu0 0.0
    %3206 = vmatprep.subr.mxu0 0.0
    %3207 = vmatpush1.msra.mxu0 0.0
    %3208 = vmatprep.subr.mxu0 0.0
    %3209 = vmatpush1.msra.mxu0 0.0
    %3210 = vmatprep.subr.mxu0 0.0
    %3211 = vmatpush1.msra.mxu0 0.0
    %3212 = vmatprep.subr.mxu0 0.0
    %3213 = vmatpush1.msra.mxu0 0.0
    %3214 = vmatprep.subr.mxu0 0.0
    %3215 = vmatpush1.msra.mxu0 0.0
    %3216 = vmatprep.subr.mxu0 0.0
    %3217 = vmatpush1.msra.mxu0 0.0
    %3218 = vmatprep.subr.mxu0 0.0
    %3219 = vmatpush1.msra.mxu0 0.0
    %3220 = vmatprep.subr.mxu0 0.0
    %3221 = vmatpush1.msra.mxu0 0.0
    %3222 = vmatprep.subr.mxu0 0.0
    %3223 = vmatpush1.msra.mxu0 0.0
    %3224 = vmatprep.subr.mxu0 0.0
    %3225 = vmatpush1.msra.mxu0 0.0
    %3226 = vmatprep.subr.mxu0 0.0
    %3227 = vmatpush1.msra.mxu0 0.0
    %3228 = vmatprep.subr.mxu0 0.0
    %3229 = vmatpush1.msra.mxu0 0.0
    %3230 = vmatprep.subr.mxu0 0.0
    %3231 = vmatpush1.msra.mxu0 0.0
    %3232 = vmatprep.subr.mxu0 0.0
    %3233 = vmatpush1.msra.mxu0 0.0
    %3234 = vmatprep.mubr.f32.mxu0 0.0
    %3235 = vmatmul.mubr.f32.gmra.mrb[0].mxu0 %v3168
    %v3236 = vpop.f32.mrb[0].mxu0
    %v3237 = vadd.f32 %v3162, %v3236
    %v3238 = vpop.f32.mrb[0].mxu0
    %3239 = vdwg.mxu0
    %v3240 = vadd.f32 %v3237, %v2135
    %v3241 = vxor.u32 %v3240, 2147483648
    %v3242 = vmul.f32 %v3241, 1.442695
    %v3243 = vpow.pop %v3242
    %v3244 = vadd.f32 %v3243, 1.0
    %v3245 = vrcp.pop %v3244
    %v3246 = vmul.f32 1.0, %v3245
    %v3247 = vtanh.pop %v3240
    %v3248 = vmul.f32 %v3246, %v2982
    %3250 = vrot.lane.b32.xlu0 %v3247, 64
    %v3251 = vpop.permute.xlu0 %3250
    %v3253 = vmul.f32 %v3246, %v3251
    %3255 = vrot.lane.b32.xlu0 %v3253, 32
    %v3256 = vpop.permute.xlu0 %3255
    %v3258 = vadd.f32 %v3248, %v3256
    %v3259 = vtanh.pop %v3258
    %3261 = vrot.lane.b32.xlu0 %v3259, 64
    %v3262 = vpop.permute.xlu0 %3261
    %v3264 = vmul.f32 %v3246, %v3262
    %v3265 = vrot.slane %v1496, 5
    %v3267 = vrot.slane %v1861, 4
    %v3269 = vsel %vm1879, %v3265, %v3267
    %3270 = vmatprep.subr.mxu0 0.0
    %3271 = vmatpush1.msra.mxu0 %v1862
    %3272 = vmatprep.subr.mxu0 0.0
    %3273 = vmatpush1.msra.mxu0 %v1863
    %3274 = vmatprep.subr.mxu0 0.0
    %3275 = vmatpush1.msra.mxu0 %v1864
    %3276 = vmatprep.subr.mxu0 0.0
    %3277 = vmatpush1.msra.mxu0 %v1865
    %3278 = vmatprep.subr.mxu0 0.0
    %3279 = vmatpush1.msra.mxu0 0.0
    %3280 = vmatprep.subr.mxu0 0.0
    %3281 = vmatpush1.msra.mxu0 0.0
    %3282 = vmatprep.subr.mxu0 0.0
    %3283 = vmatpush1.msra.mxu0 0.0
    %3284 = vmatprep.subr.mxu0 0.0
    %3285 = vmatpush1.msra.mxu0 0.0
    %3286 = vmatprep.subr.mxu0 0.0
    %3287 = vmatpush1.msra.mxu0 0.0
    %3288 = vmatprep.subr.mxu0 0.0
    %3289 = vmatpush1.msra.mxu0 0.0
    %3290 = vmatprep.subr.mxu0 0.0
    %3291 = vmatpush1.msra.mxu0 0.0
    %3292 = vmatprep.subr.mxu0 0.0
    %3293 = vmatpush1.msra.mxu0 0.0
    %3294 = vmatprep.subr.mxu0 0.0
    %3295 = vmatpush1.msra.mxu0 0.0
    %3296 = vmatprep.subr.mxu0 0.0
    %3297 = vmatpush1.msra.mxu0 0.0
    %3298 = vmatprep.subr.mxu0 0.0
    %3299 = vmatpush1.msra.mxu0 0.0
    %3300 = vmatprep.subr.mxu0 0.0
    %3301 = vmatpush1.msra.mxu0 0.0
    %3302 = vmatprep.subr.mxu0 0.0
    %3303 = vmatpush1.msra.mxu0 0.0
    %3304 = vmatprep.subr.mxu0 0.0
    %3305 = vmatpush1.msra.mxu0 0.0
    %3306 = vmatprep.subr.mxu0 0.0
    %3307 = vmatpush1.msra.mxu0 0.0
    %3308 = vmatprep.subr.mxu0 0.0
    %3309 = vmatpush1.msra.mxu0 0.0
    %3310 = vmatprep.subr.mxu0 0.0
    %3311 = vmatpush1.msra.mxu0 0.0
    %3312 = vmatprep.subr.mxu0 0.0
    %3313 = vmatpush1.msra.mxu0 0.0
    %3314 = vmatprep.subr.mxu0 0.0
    %3315 = vmatpush1.msra.mxu0 0.0
    %3316 = vmatprep.subr.mxu0 0.0
    %3317 = vmatpush1.msra.mxu0 0.0
    %3318 = vmatprep.subr.mxu0 0.0
    %3319 = vmatpush1.msra.mxu0 0.0
    %3320 = vmatprep.subr.mxu0 0.0
    %3321 = vmatpush1.msra.mxu0 0.0
    %3322 = vmatprep.subr.mxu0 0.0
    %3323 = vmatpush1.msra.mxu0 0.0
    %3324 = vmatprep.subr.mxu0 0.0
    %3325 = vmatpush1.msra.mxu0 0.0
    %3326 = vmatprep.subr.mxu0 0.0
    %3327 = vmatpush1.msra.mxu0 0.0
    %3328 = vmatprep.subr.mxu0 0.0
    %3329 = vmatpush1.msra.mxu0 0.0
    %3330 = vmatprep.subr.mxu0 0.0
    %3331 = vmatpush1.msra.mxu0 0.0
    %3332 = vmatprep.subr.mxu0 0.0
    %3333 = vmatpush1.msra.mxu0 0.0
    %3334 = vmatprep.mubr.f32.mxu0 0.0
    %3335 = vmatmul.mubr.f32.gmra.mrb[0].mxu0 %v3168
    %v3336 = vpop.f32.mrb[0].mxu0
    %v3337 = vadd.f32 0.0, %v3336
    %v3338 = vpop.f32.mrb[0].mxu0
    %3339 = vdwg.mxu0
    %v3340 = vadd.f32 %v3269, %v3337
    %v3341 = vadd.f32 %v3340, %v1959
    %v3342 = vxor.u32 %v3341, 2147483648
    %v3343 = vmul.f32 %v3342, 1.442695
    %v3344 = vpow.pop %v3343
    %v3345 = vadd.f32 %v3344, 1.0
    %v3346 = vrcp.pop %v3345
    %v3347 = vmul.f32 1.0, %v3346
    %v3348 = vtanh.pop %v3341
    %v3349 = vmul.f32 %v3347, %v3083
    %3351 = vrot.lane.b32.xlu0 %v3348, 64
    %v3352 = vpop.permute.xlu0 %3351
    %v3354 = vmul.f32 %v3347, %v3352
    %3356 = vrot.lane.b32.xlu0 %v3354, 32
    %v3357 = vpop.permute.xlu0 %3356
    %v3359 = vadd.f32 %v3349, %v3357
    %v3360 = vtanh.pop %v3359
    %3362 = vrot.lane.b32.xlu0 %v3360, 64
    %v3363 = vpop.permute.xlu0 %3362
    %v3365 = vmul.f32 %v3347, %v3363
    %3367 = vrot.lane.b32.xlu0 %v3264, 32
    %v3368 = vpop.permute.xlu0 %3367
    %v3369 = vsel %vm299, %v3368, 0
    %3371 = vmatprep.subr.mxu0 0.0
    %3372 = vmatpush1.msra.mxu0 %v1871
    %3373 = vmatprep.subr.mxu0 0.0
    %3374 = vmatpush1.msra.mxu0 %v1872
    %3375 = vmatprep.subr.mxu0 0.0
    %3376 = vmatpush1.msra.mxu0 %v1873
    %3377 = vmatprep.subr.mxu0 0.0
    %3378 = vmatpush1.msra.mxu0 %v1874
    %3379 = vmatprep.subr.mxu0 0.0
    %3380 = vmatpush1.msra.mxu0 0.0
    %3381 = vmatprep.subr.mxu0 0.0
    %3382 = vmatpush1.msra.mxu0 0.0
    %3383 = vmatprep.subr.mxu0 0.0
    %3384 = vmatpush1.msra.mxu0 0.0
    %3385 = vmatprep.subr.mxu0 0.0
    %3386 = vmatpush1.msra.mxu0 0.0
    %3387 = vmatprep.subr.mxu0 0.0
    %3388 = vmatpush1.msra.mxu0 0.0
    %3389 = vmatprep.subr.mxu0 0.0
    %3390 = vmatpush1.msra.mxu0 0.0
    %3391 = vmatprep.subr.mxu0 0.0
    %3392 = vmatpush1.msra.mxu0 0.0
    %3393 = vmatprep.subr.mxu0 0.0
    %3394 = vmatpush1.msra.mxu0 0.0
    %3395 = vmatprep.subr.mxu0 0.0
    %3396 = vmatpush1.msra.mxu0 0.0
    %3397 = vmatprep.subr.mxu0 0.0
    %3398 = vmatpush1.msra.mxu0 0.0
    %3399 = vmatprep.subr.mxu0 0.0
    %3400 = vmatpush1.msra.mxu0 0.0
    %3401 = vmatprep.subr.mxu0 0.0
    %3402 = vmatpush1.msra.mxu0 0.0
    %3403 = vmatprep.subr.mxu0 0.0
    %3404 = vmatpush1.msra.mxu0 0.0
    %3405 = vmatprep.subr.mxu0 0.0
    %3406 = vmatpush1.msra.mxu0 0.0
    %3407 = vmatprep.subr.mxu0 0.0
    %3408 = vmatpush1.msra.mxu0 0.0
    %3409 = vmatprep.subr.mxu0 0.0
    %3410 = vmatpush1.msra.mxu0 0.0
    %3411 = vmatprep.subr.mxu0 0.0
    %3412 = vmatpush1.msra.mxu0 0.0
    %3413 = vmatprep.subr.mxu0 0.0
    %3414 = vmatpush1.msra.mxu0 0.0
    %3415 = vmatprep.subr.mxu0 0.0
    %3416 = vmatpush1.msra.mxu0 0.0
    %3417 = vmatprep.subr.mxu0 0.0
    %3418 = vmatpush1.msra.mxu0 0.0
    %3419 = vmatprep.subr.mxu0 0.0
    %3420 = vmatpush1.msra.mxu0 0.0
    %3421 = vmatprep.subr.mxu0 0.0
    %3422 = vmatpush1.msra.mxu0 0.0
    %3423 = vmatprep.subr.mxu0 0.0
    %3424 = vmatpush1.msra.mxu0 0.0
    %3425 = vmatprep.subr.mxu0 0.0
    %3426 = vmatpush1.msra.mxu0 0.0
    %3427 = vmatprep.subr.mxu0 0.0
    %3428 = vmatpush1.msra.mxu0 0.0
    %3429 = vmatprep.subr.mxu0 0.0
    %3430 = vmatpush1.msra.mxu0 0.0
    %3431 = vmatprep.subr.mxu0 0.0
    %3432 = vmatpush1.msra.mxu0 0.0
    %3433 = vmatprep.subr.mxu0 0.0
    %3434 = vmatpush1.msra.mxu0 0.0
    %3435 = vmatprep.mubr.f32.mxu0 0.0
    %3436 = vmatmul.mubr.f32.gmra.mrb[0].mxu0 %v3369
    %v3437 = vpop.f32.mrb[0].mxu0
    %v3438 = vadd.f32 0.0, %v3437
    %v3439 = vpop.f32.mrb[0].mxu0
    %3440 = vdwg.mxu0
    %3442 = vrot.lane.b32.xlu0 %v3365, 32
    %v3443 = vpop.permute.xlu0 %3442
    %v3444 = vsel %vm299, %v3443, 0
    %3446 = vmatprep.subr.mxu0 0.0
    %3447 = vmatpush1.msra.mxu0 %v1867
    %3448 = vmatprep.subr.mxu0 0.0
    %3449 = vmatpush1.msra.mxu0 %v1868
    %3450 = vmatprep.subr.mxu0 0.0
    %3451 = vmatpush1.msra.mxu0 %v1869
    %3452 = vmatprep.subr.mxu0 0.0
    %3453 = vmatpush1.msra.mxu0 %v1870
    %3454 = vmatprep.subr.mxu0 0.0
    %3455 = vmatpush1.msra.mxu0 0.0
    %3456 = vmatprep.subr.mxu0 0.0
    %3457 = vmatpush1.msra.mxu0 0.0
    %3458 = vmatprep.subr.mxu0 0.0
    %3459 = vmatpush1.msra.mxu0 0.0
    %3460 = vmatprep.subr.mxu0 0.0
    %3461 = vmatpush1.msra.mxu0 0.0
    %3462 = vmatprep.subr.mxu0 0.0
    %3463 = vmatpush1.msra.mxu0 0.0
    %3464 = vmatprep.subr.mxu0 0.0
    %3465 = vmatpush1.msra.mxu0 0.0
    %3466 = vmatprep.subr.mxu0 0.0
    %3467 = vmatpush1.msra.mxu0 0.0
    %3468 = vmatprep.subr.mxu0 0.0
    %3469 = vmatpush1.msra.mxu0 0.0
    %3470 = vmatprep.subr.mxu0 0.0
    %3471 = vmatpush1.msra.mxu0 0.0
    %3472 = vmatprep.subr.mxu0 0.0
    %3473 = vmatpush1.msra.mxu0 0.0
    %3474 = vmatprep.subr.mxu0 0.0
    %3475 = vmatpush1.msra.mxu0 0.0
    %3476 = vmatprep.subr.mxu0 0.0
    %3477 = vmatpush1.msra.mxu0 0.0
    %3478 = vmatprep.subr.mxu0 0.0
    %3479 = vmatpush1.msra.mxu0 0.0
    %3480 = vmatprep.subr.mxu0 0.0
    %3481 = vmatpush1.msra.mxu0 0.0
    %3482 = vmatprep.subr.mxu0 0.0
    %3483 = vmatpush1.msra.mxu0 0.0
    %3484 = vmatprep.subr.mxu0 0.0
    %3485 = vmatpush1.msra.mxu0 0.0
    %3486 = vmatprep.subr.mxu0 0.0
    %3487 = vmatpush1.msra.mxu0 0.0
    %3488 = vmatprep.subr.mxu0 0.0
    %3489 = vmatpush1.msra.mxu0 0.0
    %3490 = vmatprep.subr.mxu0 0.0
    %3491 = vmatpush1.msra.mxu0 0.0
    %3492 = vmatprep.subr.mxu0 0.0
    %3493 = vmatpush1.msra.mxu0 0.0
    %3494 = vmatprep.subr.mxu0 0.0
    %3495 = vmatpush1.msra.mxu0 0.0
    %3496 = vmatprep.subr.mxu0 0.0
    %3497 = vmatpush1.msra.mxu0 0.0
    %3498 = vmatprep.subr.mxu0 0.0
    %3499 = vmatpush1.msra.mxu0 0.0
    %3500 = vmatprep.subr.mxu0 0.0
    %3501 = vmatpush1.msra.mxu0 0.0
    %3502 = vmatprep.subr.mxu0 0.0
    %3503 = vmatpush1.msra.mxu0 0.0
    %3504 = vmatprep.subr.mxu0 0.0
    %3505 = vmatpush1.msra.mxu0 0.0
    %3506 = vmatprep.subr.mxu0 0.0
    %3507 = vmatpush1.msra.mxu0 0.0
    %3508 = vmatprep.subr.mxu0 0.0
    %3509 = vmatpush1.msra.mxu0 0.0
    %3510 = vmatprep.mubr.f32.mxu0 0.0
    %3511 = vmatmul.mubr.f32.gmra.mrb[0].mxu0 %v3444
    %v3512 = vpop.f32.mrb[0].mxu0
    %v3513 = vadd.f32 %v3438, %v3512
    %v3514 = vpop.f32.mrb[0].mxu0
    %3515 = vdwg.mxu0
    %v3516 = vadd.f32 %v3513, %v2135
    %v3517 = vxor.u32 %v3516, 2147483648
    %v3518 = vmul.f32 %v3517, 1.442695
    %v3519 = vpow.pop %v3518
    %v3520 = vadd.f32 %v3519, 1.0
    %v3521 = vrcp.pop %v3520
    %v3522 = vmul.f32 1.0, %v3521
    %v3523 = vtanh.pop %v3516
    %v3524 = vmul.f32 %v3522, %v3258
    %3526 = vrot.lane.b32.xlu0 %v3523, 64
    %v3527 = vpop.permute.xlu0 %3526
    %v3529 = vmul.f32 %v3522, %v3527
    %3531 = vrot.lane.b32.xlu0 %v3529, 32
    %v3532 = vpop.permute.xlu0 %3531
    %v3534 = vadd.f32 %v3524, %v3532
    %v3535 = vtanh.pop %v3534
    %3537 = vrot.lane.b32.xlu0 %v3535, 64
    %v3538 = vpop.permute.xlu0 %3537
    %v3540 = vmul.f32 %v3522, %v3538
    %v3541 = vrot.slane %v1496, 6
    %v3543 = vrot.slane %v1861, 5
    %v3545 = vsel %vm1879, %v3541, %v3543
    %3546 = vmatprep.subr.mxu0 0.0
    %3547 = vmatpush1.msra.mxu0 %v1862
    %3548 = vmatprep.subr.mxu0 0.0
    %3549 = vmatpush1.msra.mxu0 %v1863
    %3550 = vmatprep.subr.mxu0 0.0
    %3551 = vmatpush1.msra.mxu0 %v1864
    %3552 = vmatprep.subr.mxu0 0.0
    %3553 = vmatpush1.msra.mxu0 %v1865
    %3554 = vmatprep.subr.mxu0 0.0
    %3555 = vmatpush1.msra.mxu0 0.0
    %3556 = vmatprep.subr.mxu0 0.0
    %3557 = vmatpush1.msra.mxu0 0.0
    %3558 = vmatprep.subr.mxu0 0.0
    %3559 = vmatpush1.msra.mxu0 0.0
    %3560 = vmatprep.subr.mxu0 0.0
    %3561 = vmatpush1.msra.mxu0 0.0
    %3562 = vmatprep.subr.mxu0 0.0
    %3563 = vmatpush1.msra.mxu0 0.0
    %3564 = vmatprep.subr.mxu0 0.0
    %3565 = vmatpush1.msra.mxu0 0.0
    %3566 = vmatprep.subr.mxu0 0.0
    %3567 = vmatpush1.msra.mxu0 0.0
    %3568 = vmatprep.subr.mxu0 0.0
    %3569 = vmatpush1.msra.mxu0 0.0
    %3570 = vmatprep.subr.mxu0 0.0
    %3571 = vmatpush1.msra.mxu0 0.0
    %3572 = vmatprep.subr.mxu0 0.0
    %3573 = vmatpush1.msra.mxu0 0.0
    %3574 = vmatprep.subr.mxu0 0.0
    %3575 = vmatpush1.msra.mxu0 0.0
    %3576 = vmatprep.subr.mxu0 0.0
    %3577 = vmatpush1.msra.mxu0 0.0
    %3578 = vmatprep.subr.mxu0 0.0
    %3579 = vmatpush1.msra.mxu0 0.0
    %3580 = vmatprep.subr.mxu0 0.0
    %3581 = vmatpush1.msra.mxu0 0.0
    %3582 = vmatprep.subr.mxu0 0.0
    %3583 = vmatpush1.msra.mxu0 0.0
    %3584 = vmatprep.subr.mxu0 0.0
    %3585 = vmatpush1.msra.mxu0 0.0
    %3586 = vmatprep.subr.mxu0 0.0
    %3587 = vmatpush1.msra.mxu0 0.0
    %3588 = vmatprep.subr.mxu0 0.0
    %3589 = vmatpush1.msra.mxu0 0.0
    %3590 = vmatprep.subr.mxu0 0.0
    %3591 = vmatpush1.msra.mxu0 0.0
    %3592 = vmatprep.subr.mxu0 0.0
    %3593 = vmatpush1.msra.mxu0 0.0
    %3594 = vmatprep.subr.mxu0 0.0
    %3595 = vmatpush1.msra.mxu0 0.0
    %3596 = vmatprep.subr.mxu0 0.0
    %3597 = vmatpush1.msra.mxu0 0.0
    %3598 = vmatprep.subr.mxu0 0.0
    %3599 = vmatpush1.msra.mxu0 0.0
    %3600 = vmatprep.subr.mxu0 0.0
    %3601 = vmatpush1.msra.mxu0 0.0
    %3602 = vmatprep.subr.mxu0 0.0
    %3603 = vmatpush1.msra.mxu0 0.0
    %3604 = vmatprep.subr.mxu0 0.0
    %3605 = vmatpush1.msra.mxu0 0.0
    %3606 = vmatprep.subr.mxu0 0.0
    %3607 = vmatpush1.msra.mxu0 0.0
    %3608 = vmatprep.subr.mxu0 0.0
    %3609 = vmatpush1.msra.mxu0 0.0
    %3610 = vmatprep.mubr.f32.mxu0 0.0
    %3611 = vmatmul.mubr.f32.gmra.mrb[0].mxu0 %v3444
    %v3612 = vpop.f32.mrb[0].mxu0
    %v3613 = vadd.f32 0.0, %v3612
    %v3614 = vpop.f32.mrb[0].mxu0
    %3615 = vdwg.mxu0
    %v3616 = vadd.f32 %v3545, %v3613
    %v3617 = vadd.f32 %v3616, %v1959
    %v3618 = vxor.u32 %v3617, 2147483648
    %v3619 = vmul.f32 %v3618, 1.442695
    %v3620 = vpow.pop %v3619
    %v3621 = vadd.f32 %v3620, 1.0
    %v3622 = vrcp.pop %v3621
    %v3623 = vmul.f32 1.0, %v3622
    %v3624 = vtanh.pop %v3617
    %v3625 = vmul.f32 %v3623, %v3359
    %3627 = vrot.lane.b32.xlu0 %v3624, 64
    %v3628 = vpop.permute.xlu0 %3627
    %v3630 = vmul.f32 %v3623, %v3628
    %3632 = vrot.lane.b32.xlu0 %v3630, 32
    %v3633 = vpop.permute.xlu0 %3632
    %v3635 = vadd.f32 %v3625, %v3633
    %v3636 = vtanh.pop %v3635
    %3638 = vrot.lane.b32.xlu0 %v3636, 64
    %v3639 = vpop.permute.xlu0 %3638
    %v3641 = vmul.f32 %v3623, %v3639
    %3643 = vrot.lane.b32.xlu0 %v3540, 32
    %v3644 = vpop.permute.xlu0 %3643
    %v3645 = vsel %vm299, %v3644, 0
    %3647 = vmatprep.subr.mxu0 0.0
    %3648 = vmatpush1.msra.mxu0 %v1871
    %3649 = vmatprep.subr.mxu0 0.0
    %3650 = vmatpush1.msra.mxu0 %v1872
    %3651 = vmatprep.subr.mxu0 0.0
    %3652 = vmatpush1.msra.mxu0 %v1873
    %3653 = vmatprep.subr.mxu0 0.0
    %3654 = vmatpush1.msra.mxu0 %v1874
    %3655 = vmatprep.subr.mxu0 0.0
    %3656 = vmatpush1.msra.mxu0 0.0
    %3657 = vmatprep.subr.mxu0 0.0
    %3658 = vmatpush1.msra.mxu0 0.0
    %3659 = vmatprep.subr.mxu0 0.0
    %3660 = vmatpush1.msra.mxu0 0.0
    %3661 = vmatprep.subr.mxu0 0.0
    %3662 = vmatpush1.msra.mxu0 0.0
    %3663 = vmatprep.subr.mxu0 0.0
    %3664 = vmatpush1.msra.mxu0 0.0
    %3665 = vmatprep.subr.mxu0 0.0
    %3666 = vmatpush1.msra.mxu0 0.0
    %3667 = vmatprep.subr.mxu0 0.0
    %3668 = vmatpush1.msra.mxu0 0.0
    %3669 = vmatprep.subr.mxu0 0.0
    %3670 = vmatpush1.msra.mxu0 0.0
    %3671 = vmatprep.subr.mxu0 0.0
    %3672 = vmatpush1.msra.mxu0 0.0
    %3673 = vmatprep.subr.mxu0 0.0
    %3674 = vmatpush1.msra.mxu0 0.0
    %3675 = vmatprep.subr.mxu0 0.0
    %3676 = vmatpush1.msra.mxu0 0.0
    %3677 = vmatprep.subr.mxu0 0.0
    %3678 = vmatpush1.msra.mxu0 0.0
    %3679 = vmatprep.subr.mxu0 0.0
    %3680 = vmatpush1.msra.mxu0 0.0
    %3681 = vmatprep.subr.mxu0 0.0
    %3682 = vmatpush1.msra.mxu0 0.0
    %3683 = vmatprep.subr.mxu0 0.0
    %3684 = vmatpush1.msra.mxu0 0.0
    %3685 = vmatprep.subr.mxu0 0.0
    %3686 = vmatpush1.msra.mxu0 0.0
    %3687 = vmatprep.subr.mxu0 0.0
    %3688 = vmatpush1.msra.mxu0 0.0
    %3689 = vmatprep.subr.mxu0 0.0
    %3690 = vmatpush1.msra.mxu0 0.0
    %3691 = vmatprep.subr.mxu0 0.0
    %3692 = vmatpush1.msra.mxu0 0.0
    %3693 = vmatprep.subr.mxu0 0.0
    %3694 = vmatpush1.msra.mxu0 0.0
    %3695 = vmatprep.subr.mxu0 0.0
    %3696 = vmatpush1.msra.mxu0 0.0
    %3697 = vmatprep.subr.mxu0 0.0
    %3698 = vmatpush1.msra.mxu0 0.0
    %3699 = vmatprep.subr.mxu0 0.0
    %3700 = vmatpush1.msra.mxu0 0.0
    %3701 = vmatprep.subr.mxu0 0.0
    %3702 = vmatpush1.msra.mxu0 0.0
    %3703 = vmatprep.subr.mxu0 0.0
    %3704 = vmatpush1.msra.mxu0 0.0
    %3705 = vmatprep.subr.mxu0 0.0
    %3706 = vmatpush1.msra.mxu0 0.0
    %3707 = vmatprep.subr.mxu0 0.0
    %3708 = vmatpush1.msra.mxu0 0.0
    %3709 = vmatprep.subr.mxu0 0.0
    %3710 = vmatpush1.msra.mxu0 0.0
    %3711 = vmatprep.mubr.f32.mxu0 0.0
    %3712 = vmatmul.mubr.f32.gmra.mrb[0].mxu0 %v3645
    %v3713 = vpop.f32.mrb[0].mxu0
    %v3714 = vadd.f32 0.0, %v3713
    %v3715 = vpop.f32.mrb[0].mxu0
    %3716 = vdwg.mxu0
    %3718 = vrot.lane.b32.xlu0 %v3641, 32
    %v3719 = vpop.permute.xlu0 %3718
    %v3720 = vsel %vm299, %v3719, 0
    %3722 = vmatprep.subr.mxu0 0.0
    %3723 = vmatpush1.msra.mxu0 %v1867
    %3724 = vmatprep.subr.mxu0 0.0
    %3725 = vmatpush1.msra.mxu0 %v1868
    %3726 = vmatprep.subr.mxu0 0.0
    %3727 = vmatpush1.msra.mxu0 %v1869
    %3728 = vmatprep.subr.mxu0 0.0
    %3729 = vmatpush1.msra.mxu0 %v1870
    %3730 = vmatprep.subr.mxu0 0.0
    %3731 = vmatpush1.msra.mxu0 0.0
    %3732 = vmatprep.subr.mxu0 0.0
    %3733 = vmatpush1.msra.mxu0 0.0
    %3734 = vmatprep.subr.mxu0 0.0
    %3735 = vmatpush1.msra.mxu0 0.0
    %3736 = vmatprep.subr.mxu0 0.0
    %3737 = vmatpush1.msra.mxu0 0.0
    %3738 = vmatprep.subr.mxu0 0.0
    %3739 = vmatpush1.msra.mxu0 0.0
    %3740 = vmatprep.subr.mxu0 0.0
    %3741 = vmatpush1.msra.mxu0 0.0
    %3742 = vmatprep.subr.mxu0 0.0
    %3743 = vmatpush1.msra.mxu0 0.0
    %3744 = vmatprep.subr.mxu0 0.0
    %3745 = vmatpush1.msra.mxu0 0.0
    %3746 = vmatprep.subr.mxu0 0.0
    %3747 = vmatpush1.msra.mxu0 0.0
    %3748 = vmatprep.subr.mxu0 0.0
    %3749 = vmatpush1.msra.mxu0 0.0
    %3750 = vmatprep.subr.mxu0 0.0
    %3751 = vmatpush1.msra.mxu0 0.0
    %3752 = vmatprep.subr.mxu0 0.0
    %3753 = vmatpush1.msra.mxu0 0.0
    %3754 = vmatprep.subr.mxu0 0.0
    %3755 = vmatpush1.msra.mxu0 0.0
    %3756 = vmatprep.subr.mxu0 0.0
    %3757 = vmatpush1.msra.mxu0 0.0
    %3758 = vmatprep.subr.mxu0 0.0
    %3759 = vmatpush1.msra.mxu0 0.0
    %3760 = vmatprep.subr.mxu0 0.0
    %3761 = vmatpush1.msra.mxu0 0.0
    %3762 = vmatprep.subr.mxu0 0.0
    %3763 = vmatpush1.msra.mxu0 0.0
    %3764 = vmatprep.subr.mxu0 0.0
    %3765 = vmatpush1.msra.mxu0 0.0
    %3766 = vmatprep.subr.mxu0 0.0
    %3767 = vmatpush1.msra.mxu0 0.0
    %3768 = vmatprep.subr.mxu0 0.0
    %3769 = vmatpush1.msra.mxu0 0.0
    %3770 = vmatprep.subr.mxu0 0.0
    %3771 = vmatpush1.msra.mxu0 0.0
    %3772 = vmatprep.subr.mxu0 0.0
    %3773 = vmatpush1.msra.mxu0 0.0
    %3774 = vmatprep.subr.mxu0 0.0
    %3775 = vmatpush1.msra.mxu0 0.0
    %3776 = vmatprep.subr.mxu0 0.0
    %3777 = vmatpush1.msra.mxu0 0.0
    %3778 = vmatprep.subr.mxu0 0.0
    %3779 = vmatpush1.msra.mxu0 0.0
    %3780 = vmatprep.subr.mxu0 0.0
    %3781 = vmatpush1.msra.mxu0 0.0
    %3782 = vmatprep.subr.mxu0 0.0
    %3783 = vmatpush1.msra.mxu0 0.0
    %3784 = vmatprep.subr.mxu0 0.0
    %3785 = vmatpush1.msra.mxu0 0.0
    %3786 = vmatprep.mubr.f32.mxu0 0.0
    %3787 = vmatmul.mubr.f32.gmra.mrb[0].mxu0 %v3720
    %v3788 = vpop.f32.mrb[0].mxu0
    %v3789 = vadd.f32 %v3714, %v3788
    %v3790 = vpop.f32.mrb[0].mxu0
    %3791 = vdwg.mxu0
    %v3792 = vadd.f32 %v3789, %v2135
    %v3793 = vxor.u32 %v3792, 2147483648
    %v3794 = vmul.f32 %v3793, 1.442695
    %v3795 = vpow.pop %v3794
    %v3796 = vadd.f32 %v3795, 1.0
    %v3797 = vrcp.pop %v3796
    %v3798 = vmul.f32 1.0, %v3797
    %v3799 = vtanh.pop %v3792
    %v3800 = vmul.f32 %v3798, %v3534
    %3802 = vrot.lane.b32.xlu0 %v3799, 64
    %v3803 = vpop.permute.xlu0 %3802
    %v3805 = vmul.f32 %v3798, %v3803
    %3807 = vrot.lane.b32.xlu0 %v3805, 32
    %v3808 = vpop.permute.xlu0 %3807
    %v3810 = vadd.f32 %v3800, %v3808
    %v3811 = vtanh.pop %v3810
    %3813 = vrot.lane.b32.xlu0 %v3811, 64
    %v3814 = vpop.permute.xlu0 %3813
    %v3816 = vmul.f32 %v3798, %v3814
    %v3817 = vrot.slane %v1496, 7
    %v3819 = vrot.slane %v1861, 6
    %v3821 = vsel %vm1879, %v3817, %v3819
    %3822 = vmatprep.subr.mxu0 0.0
    %3823 = vmatpush1.msra.mxu0 %v1862
    %3824 = vmatprep.subr.mxu0 0.0
    %3825 = vmatpush1.msra.mxu0 %v1863
    %3826 = vmatprep.subr.mxu0 0.0
    %3827 = vmatpush1.msra.mxu0 %v1864
    %3828 = vmatprep.subr.mxu0 0.0
    %3829 = vmatpush1.msra.mxu0 %v1865
    %3830 = vmatprep.subr.mxu0 0.0
    %3831 = vmatpush1.msra.mxu0 0.0
    %3832 = vmatprep.subr.mxu0 0.0
    %3833 = vmatpush1.msra.mxu0 0.0
    %3834 = vmatprep.subr.mxu0 0.0
    %3835 = vmatpush1.msra.mxu0 0.0
    %3836 = vmatprep.subr.mxu0 0.0
    %3837 = vmatpush1.msra.mxu0 0.0
    %3838 = vmatprep.subr.mxu0 0.0
    %3839 = vmatpush1.msra.mxu0 0.0
    %3840 = vmatprep.subr.mxu0 0.0
    %3841 = vmatpush1.msra.mxu0 0.0
    %3842 = vmatprep.subr.mxu0 0.0
    %3843 = vmatpush1.msra.mxu0 0.0
    %3844 = vmatprep.subr.mxu0 0.0
    %3845 = vmatpush1.msra.mxu0 0.0
    %3846 = vmatprep.subr.mxu0 0.0
    %3847 = vmatpush1.msra.mxu0 0.0
    %3848 = vmatprep.subr.mxu0 0.0
    %3849 = vmatpush1.msra.mxu0 0.0
    %3850 = vmatprep.subr.mxu0 0.0
    %3851 = vmatpush1.msra.mxu0 0.0
    %3852 = vmatprep.subr.mxu0 0.0
    %3853 = vmatpush1.msra.mxu0 0.0
    %3854 = vmatprep.subr.mxu0 0.0
    %3855 = vmatpush1.msra.mxu0 0.0
    %3856 = vmatprep.subr.mxu0 0.0
    %3857 = vmatpush1.msra.mxu0 0.0
    %3858 = vmatprep.subr.mxu0 0.0
    %3859 = vmatpush1.msra.mxu0 0.0
    %3860 = vmatprep.subr.mxu0 0.0
    %3861 = vmatpush1.msra.mxu0 0.0
    %3862 = vmatprep.subr.mxu0 0.0
    %3863 = vmatpush1.msra.mxu0 0.0
    %3864 = vmatprep.subr.mxu0 0.0
    %3865 = vmatpush1.msra.mxu0 0.0
    %3866 = vmatprep.subr.mxu0 0.0
    %3867 = vmatpush1.msra.mxu0 0.0
    %3868 = vmatprep.subr.mxu0 0.0
    %3869 = vmatpush1.msra.mxu0 0.0
    %3870 = vmatprep.subr.mxu0 0.0
    %3871 = vmatpush1.msra.mxu0 0.0
    %3872 = vmatprep.subr.mxu0 0.0
    %3873 = vmatpush1.msra.mxu0 0.0
    %3874 = vmatprep.subr.mxu0 0.0
    %3875 = vmatpush1.msra.mxu0 0.0
    %3876 = vmatprep.subr.mxu0 0.0
    %3877 = vmatpush1.msra.mxu0 0.0
    %3878 = vmatprep.subr.mxu0 0.0
    %3879 = vmatpush1.msra.mxu0 0.0
    %3880 = vmatprep.subr.mxu0 0.0
    %3881 = vmatpush1.msra.mxu0 0.0
    %3882 = vmatprep.subr.mxu0 0.0
    %3883 = vmatpush1.msra.mxu0 0.0
    %3884 = vmatprep.subr.mxu0 0.0
    %3885 = vmatpush1.msra.mxu0 0.0
    %3886 = vmatprep.mubr.f32.mxu0 0.0
    %3887 = vmatmul.mubr.f32.gmra.mrb[0].mxu0 %v3720
    %v3888 = vpop.f32.mrb[0].mxu0
    %v3889 = vadd.f32 0.0, %v3888
    %v3890 = vpop.f32.mrb[0].mxu0
    %3891 = vdwg.mxu0
    %v3892 = vadd.f32 %v3821, %v3889
    %v3893 = vadd.f32 %v3892, %v1959
    %v3894 = vxor.u32 %v3893, 2147483648
    %v3895 = vmul.f32 %v3894, 1.442695
    %v3896 = vpow.pop %v3895
    %v3897 = vadd.f32 %v3896, 1.0
    %v3898 = vrcp.pop %v3897
    %v3899 = vmul.f32 1.0, %v3898
    %v3900 = vtanh.pop %v3893
    %v3901 = vmul.f32 %v3899, %v3635
    %3903 = vrot.lane.b32.xlu0 %v3900, 64
    %v3904 = vpop.permute.xlu0 %3903
    %v3906 = vmul.f32 %v3899, %v3904
    %3908 = vrot.lane.b32.xlu0 %v3906, 32
    %v3909 = vpop.permute.xlu0 %3908
    %v3911 = vadd.f32 %v3901, %v3909
    %v3912 = vtanh.pop %v3911
    %3914 = vrot.lane.b32.xlu0 %v3912, 64
    %v3915 = vpop.permute.xlu0 %3914
    %v3917 = vmul.f32 %v3899, %v3915
    %3919 = vrot.lane.b32.xlu0 %v3816, 32
    %v3920 = vpop.permute.xlu0 %3919
    %v3921 = vsel %vm299, %v3920, 0
    %3923 = vmatprep.subr.mxu0 0.0
    %3924 = vmatpush1.msra.mxu0 %v1871
    %3925 = vmatprep.subr.mxu0 0.0
    %3926 = vmatpush1.msra.mxu0 %v1872
    %3927 = vmatprep.subr.mxu0 0.0
    %3928 = vmatpush1.msra.mxu0 %v1873
    %3929 = vmatprep.subr.mxu0 0.0
    %3930 = vmatpush1.msra.mxu0 %v1874
    %3931 = vmatprep.subr.mxu0 0.0
    %3932 = vmatpush1.msra.mxu0 0.0
    %3933 = vmatprep.subr.mxu0 0.0
    %3934 = vmatpush1.msra.mxu0 0.0
    %3935 = vmatprep.subr.mxu0 0.0
    %3936 = vmatpush1.msra.mxu0 0.0
    %3937 = vmatprep.subr.mxu0 0.0
    %3938 = vmatpush1.msra.mxu0 0.0
    %3939 = vmatprep.subr.mxu0 0.0
    %3940 = vmatpush1.msra.mxu0 0.0
    %3941 = vmatprep.subr.mxu0 0.0
    %3942 = vmatpush1.msra.mxu0 0.0
    %3943 = vmatprep.subr.mxu0 0.0
    %3944 = vmatpush1.msra.mxu0 0.0
    %3945 = vmatprep.subr.mxu0 0.0
    %3946 = vmatpush1.msra.mxu0 0.0
    %3947 = vmatprep.subr.mxu0 0.0
    %3948 = vmatpush1.msra.mxu0 0.0
    %3949 = vmatprep.subr.mxu0 0.0
    %3950 = vmatpush1.msra.mxu0 0.0
    %3951 = vmatprep.subr.mxu0 0.0
    %3952 = vmatpush1.msra.mxu0 0.0
    %3953 = vmatprep.subr.mxu0 0.0
    %3954 = vmatpush1.msra.mxu0 0.0
    %3955 = vmatprep.subr.mxu0 0.0
    %3956 = vmatpush1.msra.mxu0 0.0
    %3957 = vmatprep.subr.mxu0 0.0
    %3958 = vmatpush1.msra.mxu0 0.0
    %3959 = vmatprep.subr.mxu0 0.0
    %3960 = vmatpush1.msra.mxu0 0.0
    %3961 = vmatprep.subr.mxu0 0.0
    %3962 = vmatpush1.msra.mxu0 0.0
    %3963 = vmatprep.subr.mxu0 0.0
    %3964 = vmatpush1.msra.mxu0 0.0
    %3965 = vmatprep.subr.mxu0 0.0
    %3966 = vmatpush1.msra.mxu0 0.0
    %3967 = vmatprep.subr.mxu0 0.0
    %3968 = vmatpush1.msra.mxu0 0.0
    %3969 = vmatprep.subr.mxu0 0.0
    %3970 = vmatpush1.msra.mxu0 0.0
    %3971 = vmatprep.subr.mxu0 0.0
    %3972 = vmatpush1.msra.mxu0 0.0
    %3973 = vmatprep.subr.mxu0 0.0
    %3974 = vmatpush1.msra.mxu0 0.0
    %3975 = vmatprep.subr.mxu0 0.0
    %3976 = vmatpush1.msra.mxu0 0.0
    %3977 = vmatprep.subr.mxu0 0.0
    %3978 = vmatpush1.msra.mxu0 0.0
    %3979 = vmatprep.subr.mxu0 0.0
    %3980 = vmatpush1.msra.mxu0 0.0
    %3981 = vmatprep.subr.mxu0 0.0
    %3982 = vmatpush1.msra.mxu0 0.0
    %3983 = vmatprep.subr.mxu0 0.0
    %3984 = vmatpush1.msra.mxu0 0.0
    %3985 = vmatprep.subr.mxu0 0.0
    %3986 = vmatpush1.msra.mxu0 0.0
    %3987 = vmatprep.mubr.f32.mxu0 0.0
    %3988 = vmatmul.mubr.f32.gmra.mrb[0].mxu0 %v3921
    %v3989 = vpop.f32.mrb[0].mxu0
    %v3990 = vadd.f32 0.0, %v3989
    %v3991 = vpop.f32.mrb[0].mxu0
    %3992 = vdwg.mxu0
    %3994 = vrot.lane.b32.xlu0 %v3917, 32
    %v3995 = vpop.permute.xlu0 %3994
    %v3996 = vsel %vm299, %v3995, 0
    %3998 = vmatprep.subr.mxu0 0.0
    %3999 = vmatpush1.msra.mxu0 %v1867
    %4000 = vmatprep.subr.mxu0 0.0
    %4001 = vmatpush1.msra.mxu0 %v1868
    %4002 = vmatprep.subr.mxu0 0.0
    %4003 = vmatpush1.msra.mxu0 %v1869
    %4004 = vmatprep.subr.mxu0 0.0
    %4005 = vmatpush1.msra.mxu0 %v1870
    %4006 = vmatprep.subr.mxu0 0.0
    %4007 = vmatpush1.msra.mxu0 0.0
    %4008 = vmatprep.subr.mxu0 0.0
    %4009 = vmatpush1.msra.mxu0 0.0
    %4010 = vmatprep.subr.mxu0 0.0
    %4011 = vmatpush1.msra.mxu0 0.0
    %4012 = vmatprep.subr.mxu0 0.0
    %4013 = vmatpush1.msra.mxu0 0.0
    %4014 = vmatprep.subr.mxu0 0.0
    %4015 = vmatpush1.msra.mxu0 0.0
    %4016 = vmatprep.subr.mxu0 0.0
    %4017 = vmatpush1.msra.mxu0 0.0
    %4018 = vmatprep.subr.mxu0 0.0
    %4019 = vmatpush1.msra.mxu0 0.0
    %4020 = vmatprep.subr.mxu0 0.0
    %4021 = vmatpush1.msra.mxu0 0.0
    %4022 = vmatprep.subr.mxu0 0.0
    %4023 = vmatpush1.msra.mxu0 0.0
    %4024 = vmatprep.subr.mxu0 0.0
    %4025 = vmatpush1.msra.mxu0 0.0
    %4026 = vmatprep.subr.mxu0 0.0
    %4027 = vmatpush1.msra.mxu0 0.0
    %4028 = vmatprep.subr.mxu0 0.0
    %4029 = vmatpush1.msra.mxu0 0.0
    %4030 = vmatprep.subr.mxu0 0.0
    %4031 = vmatpush1.msra.mxu0 0.0
    %4032 = vmatprep.subr.mxu0 0.0
    %4033 = vmatpush1.msra.mxu0 0.0
    %4034 = vmatprep.subr.mxu0 0.0
    %4035 = vmatpush1.msra.mxu0 0.0
    %4036 = vmatprep.subr.mxu0 0.0
    %4037 = vmatpush1.msra.mxu0 0.0
    %4038 = vmatprep.subr.mxu0 0.0
    %4039 = vmatpush1.msra.mxu0 0.0
    %4040 = vmatprep.subr.mxu0 0.0
    %4041 = vmatpush1.msra.mxu0 0.0
    %4042 = vmatprep.subr.mxu0 0.0
    %4043 = vmatpush1.msra.mxu0 0.0
    %4044 = vmatprep.subr.mxu0 0.0
    %4045 = vmatpush1.msra.mxu0 0.0
    %4046 = vmatprep.subr.mxu0 0.0
    %4047 = vmatpush1.msra.mxu0 0.0
    %4048 = vmatprep.subr.mxu0 0.0
    %4049 = vmatpush1.msra.mxu0 0.0
    %4050 = vmatprep.subr.mxu0 0.0
    %4051 = vmatpush1.msra.mxu0 0.0
    %4052 = vmatprep.subr.mxu0 0.0
    %4053 = vmatpush1.msra.mxu0 0.0
    %4054 = vmatprep.subr.mxu0 0.0
    %4055 = vmatpush1.msra.mxu0 0.0
    %4056 = vmatprep.subr.mxu0 0.0
    %4057 = vmatpush1.msra.mxu0 0.0
    %4058 = vmatprep.subr.mxu0 0.0
    %4059 = vmatpush1.msra.mxu0 0.0
    %4060 = vmatprep.subr.mxu0 0.0
    %4061 = vmatpush1.msra.mxu0 0.0
    %4062 = vmatprep.mubr.f32.mxu0 0.0
    %4063 = vmatmul.mubr.f32.gmra.mrb[0].mxu0 %v3996
    %v4064 = vpop.f32.mrb[0].mxu0
    %v4065 = vadd.f32 %v3990, %v4064
    %v4066 = vpop.f32.mrb[0].mxu0
    %4067 = vdwg.mxu0
    %v4068 = vadd.f32 %v4065, %v2135
    %v4069 = vxor.u32 %v4068, 2147483648
    %v4070 = vmul.f32 %v4069, 1.442695
    %v4071 = vpow.pop %v4070
    %v4072 = vadd.f32 %v4071, 1.0
    %v4073 = vrcp.pop %v4072
    %v4074 = vmul.f32 1.0, %v4073
    %v4075 = vtanh.pop %v4068
    %v4076 = vmul.f32 %v4074, %v3810
    %4078 = vrot.lane.b32.xlu0 %v4075, 64
    %v4079 = vpop.permute.xlu0 %4078
    %v4081 = vmul.f32 %v4074, %v4079
    %4083 = vrot.lane.b32.xlu0 %v4081, 32
    %v4084 = vpop.permute.xlu0 %4083
    %v4086 = vadd.f32 %v4076, %v4084
    %v4087 = vtanh.pop %v4086
    %4089 = vrot.lane.b32.xlu0 %v4087, 64
    %v4090 = vpop.permute.xlu0 %4089
    %v4092 = vmul.f32 %v4074, %v4090
    %v4093 = vld [vmem:[%s19] sm:$0xff]
    %v4094 = vld [vmem:[%s19 + $0x8] sm:$0xff]
    %v4095 = vld [vmem:[%s19 + $0x10] sm:$0xff]
    %v4096 = vld [vmem:[%s19 + $0x18] sm:$0xff]
    %v4097 = vld [vmem:[%s20] sm:$0x1]
    %v4099 = vlaneseq
    %v4100 = vshrl.u32 %v4099, 7
    %v4101 = vsub.s32 0, %v4100
    %v4102 = vrot.slane %v4097, %v4101
    %4105 = vrot.lane.b32.xlu0 %v4092, 32
    %v4106 = vpop.permute.xlu0 %4105
    %v4107 = vsel %vm299, %v4106, 0
    %4109 = vmatprep.subr.mxu0 0.0
    %4110 = vmatpush1.msra.mxu0 %v4093
    %4111 = vmatprep.subr.mxu0 0.0
    %4112 = vmatpush1.msra.mxu0 %v4094
    %4113 = vmatprep.subr.mxu0 0.0
    %4114 = vmatpush1.msra.mxu0 %v4095
    %4115 = vmatprep.subr.mxu0 0.0
    %4116 = vmatpush1.msra.mxu0 %v4096
    %4117 = vmatprep.subr.mxu0 0.0
    %4118 = vmatpush1.msra.mxu0 0.0
    %4119 = vmatprep.subr.mxu0 0.0
    %4120 = vmatpush1.msra.mxu0 0.0
    %4121 = vmatprep.subr.mxu0 0.0
    %4122 = vmatpush1.msra.mxu0 0.0
    %4123 = vmatprep.subr.mxu0 0.0
    %4124 = vmatpush1.msra.mxu0 0.0
    %4125 = vmatprep.subr.mxu0 0.0
    %4126 = vmatpush1.msra.mxu0 0.0
    %4127 = vmatprep.subr.mxu0 0.0
    %4128 = vmatpush1.msra.mxu0 0.0
    %4129 = vmatprep.subr.mxu0 0.0
    %4130 = vmatpush1.msra.mxu0 0.0
    %4131 = vmatprep.subr.mxu0 0.0
    %4132 = vmatpush1.msra.mxu0 0.0
    %4133 = vmatprep.subr.mxu0 0.0
    %4134 = vmatpush1.msra.mxu0 0.0
    %4135 = vmatprep.subr.mxu0 0.0
    %4136 = vmatpush1.msra.mxu0 0.0
    %4137 = vmatprep.subr.mxu0 0.0
    %4138 = vmatpush1.msra.mxu0 0.0
    %4139 = vmatprep.subr.mxu0 0.0
    %4140 = vmatpush1.msra.mxu0 0.0
    %4141 = vmatprep.subr.mxu0 0.0
    %4142 = vmatpush1.msra.mxu0 0.0
    %4143 = vmatprep.subr.mxu0 0.0
    %4144 = vmatpush1.msra.mxu0 0.0
    %4145 = vmatprep.subr.mxu0 0.0
    %4146 = vmatpush1.msra.mxu0 0.0
    %4147 = vmatprep.subr.mxu0 0.0
    %4148 = vmatpush1.msra.mxu0 0.0
    %4149 = vmatprep.subr.mxu0 0.0
    %4150 = vmatpush1.msra.mxu0 0.0
    %4151 = vmatprep.subr.mxu0 0.0
    %4152 = vmatpush1.msra.mxu0 0.0
    %4153 = vmatprep.subr.mxu0 0.0
    %4154 = vmatpush1.msra.mxu0 0.0
    %4155 = vmatprep.subr.mxu0 0.0
    %4156 = vmatpush1.msra.mxu0 0.0
    %4157 = vmatprep.subr.mxu0 0.0
    %4158 = vmatpush1.msra.mxu0 0.0
    %4159 = vmatprep.subr.mxu0 0.0
    %4160 = vmatpush1.msra.mxu0 0.0
    %4161 = vmatprep.subr.mxu0 0.0
    %4162 = vmatpush1.msra.mxu0 0.0
    %4163 = vmatprep.subr.mxu0 0.0
    %4164 = vmatpush1.msra.mxu0 0.0
    %4165 = vmatprep.subr.mxu0 0.0
    %4166 = vmatpush1.msra.mxu0 0.0
    %4167 = vmatprep.subr.mxu0 0.0
    %4168 = vmatpush1.msra.mxu0 0.0
    %4169 = vmatprep.subr.mxu0 0.0
    %4170 = vmatpush1.msra.mxu0 0.0
    %4171 = vmatprep.subr.mxu0 0.0
    %4172 = vmatpush1.msra.mxu0 0.0
    %4173 = vmatprep.mubr.f32.mxu0 0.0
    %4174 = vmatmul.mubr.f32.gmra.mrb[0].mxu0 %v4107
    %v4175 = vpop.f32.mrb[0].mxu0
    %v4176 = vadd.f32 %v4102, %v4175
    %v4177 = vpop.f32.mrb[0].mxu0
    %4178 = vdwg.mxu0
    %vm4179 = vcmask 123904
    %4180 = vst.msk [vmem:[#allocation20] sm:$0x3] %vm4179, %v4176
    // Predicated region
    $region130: #{tpu_custom_call.1} parent=1 // pred_check
      _
    $region131: #{tpu_custom_call.1} parent=1 // pred_check_branch
      %4182 = sbr.rel (0) target = $region133
    $region132: #{tpu_custom_call.1} parent=1 // pred_region
      %s4184 = ssub.s32 32, 32
      %4185 = vsyncadd [#allocation4], %s4184
      %s4187 = sshll.u32 [#allocation20], 4
      %s4188 = int_to_ptr.vmem [resolvable:$true] %s4187
      %4190 = dma.vmem_to_hbm [thread:$0]  %s4188, 32, %s21, [#allocation4]
    $region133: #{tpu_custom_call.1} parent=1 // pred_fallthru
      _
    // Predicated region
    $region134: #{tpu_custom_call.1} parent=1 // pred_check
      _
    $region135: #{tpu_custom_call.1} parent=1 // pred_check_branch
      %4192 = sbr.rel (0) target = $region137
    $region136: #{tpu_custom_call.1} parent=1 // pred_region
      %4193 = dma.done [#allocation4], 32
    $region137: #{tpu_custom_call.1} parent=1 // pred_fallthru
      _
    %4194 = vsyncpa [#allocation3], 1
    %4195 = vsyncpa [#allocation6], 1
    %4196 = vsyncpa [#allocation9], 1
    %4197 = vsyncpa [#allocation12], 1
    %4198 = vsyncpa [#allocation15], 1
    %4199 = vsyncpa [#allocation18], 1
    %4200 = vsyncpa [#allocation4], 1

</llo_original>
